<compile_context>
chip_gen: v5e
topology: v5e:2x2
jax: 0.10.0
libtpu: 0.0.40
codegen_flags: <defaults>
</compile_context>

<pallas_src>
import jax
import jax.numpy as jnp
from jax import lax
from jax.experimental import pallas as pl
from jax.experimental.pallas import tpu as pltpu

NEG_SLOPE = 0.01  # nn.LeakyReLU default negative_slope


def _lrelu(v):
    return jnp.where(v > 0, v, NEG_SLOPE * v)


def _dot(a, b):
    return jnp.dot(a, b, preferred_element_type=jnp.float32)


# ----------------------------- Pallas kernel ------------------------------ #
def siamese_kernel(pix_ref, patch_ref, u_ref,
                   w1_ref, w11_ref, wm1_ref, wm2_ref, wm3_ref, m_ref,
                   out_ref):
    hw = pix_ref.shape[-1]

    pix = pix_ref[0]        # (8,  HW)  bf16: rows 0-2 = x chans, 3-5 = y chans, 6-7 = 0
    patches = patch_ref[0]  # (726, P2) bf16: rows 0-362 = x patches, 363-725 = y patches

    # conv1x1 for BOTH images in one matmul (block-diagonal weight).
    a = _dot(w1_ref[...], pix)                              # (64, HW)  f32
    # dilated 11x11 conv (im2col) for both images in one matmul.
    c = _dot(w11_ref[...], patches)                         # (64, P2)  f32
    # bilinear upsample (align_corners=True) as a matmul; x/y fuse for free
    # because they are stacked on the sublane axis.
    b = _dot(c.astype(jnp.bfloat16), u_ref[...])            # (64, HW)  f32

    # LeakyReLU(concat([conv1x1, upsample])) -> single conv_m1 matmul.
    z = jnp.concatenate([_lrelu(a), _lrelu(b)], axis=0).astype(jnp.bfloat16)  # (128, HW)
    h = _dot(wm1_ref[...], z)                                # (64, HW)  x:0-31,  y:32-63
    h = _dot(wm2_ref[...], _lrelu(h).astype(jnp.bfloat16))   # (32, HW)  x:0-15,  y:16-31
    h = _dot(wm3_ref[...], _lrelu(h).astype(jnp.bfloat16))   # (32, HW)  x:0-11,  y:16-27

    # |ox - oy| and per-pixel quadratic form d^T M d (f32 tail).
    d = jnp.abs(h[0:16, :] - h[16:32, :])                    # (16, HW), rows 12-15 are 0
    md = jnp.dot(m_ref[...], d, preferred_element_type=jnp.float32)
    q = jnp.sum(d * md, axis=0, keepdims=True)               # (1, HW)
    score = jnp.sqrt(1e-8 + q)
    mean = jnp.sum(score) * (1.0 / hw)                       # constant-multiply, no divide
    out_ref[...] = jnp.full(out_ref.shape, mean, dtype=out_ref.dtype)


# ------------------------------ JAX glue ----------------------------------- #
def _interp_matrix(out_size, in_size):
    # bilinear, align_corners=True
    denom = max(out_size - 1, 1)
    src = jnp.arange(out_size, dtype=jnp.float32) * (in_size - 1) / denom
    i0 = jnp.clip(jnp.floor(src).astype(jnp.int32), 0, in_size - 1)
    i1 = jnp.clip(i0 + 1, 0, in_size - 1)
    w1 = src - i0.astype(jnp.float32)
    w0 = 1.0 - w1
    return (w0[:, None] * jax.nn.one_hot(i0, in_size, dtype=jnp.float32)
            + w1[:, None] * jax.nn.one_hot(i1, in_size, dtype=jnp.float32))


def _im2col_dilated(x, k=11, pad=5, dil=3):
    # TODO(synk): for non-toy resolutions switch to lax.conv_general_dilated_patches
    # (or an in-kernel DMA gather) to avoid materializing the 121x-inflated patch
    # tensor in HBM; at demo scale the Python-loop im2col is glue-only.
    n, c, h, w = x.shape
    h2 = h + 2 * pad - dil * (k - 1)
    w2 = w + 2 * pad - dil * (k - 1)
    xp = jnp.pad(x, ((0, 0), (0, 0), (pad, pad), (pad, pad)))
    cols = []
    for ki in range(k):
        for kj in range(k):
            cols.append(xp[:, :, dil * ki:dil * ki + h2, dil * kj:dil * kj + w2])
    p = jnp.stack(cols, axis=2)                 # (N, C, k*k, h2, w2)
    return p.reshape(n, c * k * k, h2 * w2), h2, w2   # channel-major, HW-on-lanes


def siamese_forward(x, y, matrix, params):
    n, cin, h, w = x.shape
    hw = h * w
    kk = 11 * 11
    f32, bf16 = jnp.float32, jnp.bfloat16

    # matrix prep, same as torch forward; pad to (16,16) so the x/y halves of
    # the fused activations split at sublane-aligned offsets.
    m = jnp.abs(matrix)
    m = (m.T + m) / 2.0
    m_pad = jnp.zeros((16, 16), f32).at[:12, :12].set(m)

    # ---- per-image operands: x/y stacked along the channel (sublane) axis ----
    pix = jnp.concatenate(
        [x.reshape(n, cin, hw), y.reshape(n, cin, hw),
         jnp.zeros((n, 2, hw), x.dtype)], axis=1).astype(bf16)        # (N, 8, HW)

    px, h2, w2 = _im2col_dilated(x)
    py, _, _ = _im2col_dilated(y)
    p2 = h2 * w2
    patches = jnp.concatenate([px, py], axis=1).astype(bf16)          # (N, 726, P2)

    # bilinear upsample matrix, applied in-kernel as (64,P2) @ (P2,HW).
    # TODO(synk): keep uh/uw separable at larger resolutions (dense u is O(P2*HW) VMEM).
    uh = _interp_matrix(h, h2)
    uw = _interp_matrix(w, w2)
    u_t = jnp.einsum('ha,wb->abhw', uh, uw).reshape(p2, hw).astype(bf16)  # (P2, HW)

    # ---- block-diagonal / permuted weights so both images share one matmul stream ----
    w1 = params['w1']                         # (32, 3)
    w11f = params['w11'].reshape(32, cin * kk)  # (32, 363), (c, ki, kj) ordering
    wm1 = params['wm1']                       # (32, 64)
    wm2 = params['wm2']                       # (16, 32)
    wm3 = params['wm3']                       # (12, 16)

    w1_blk = (jnp.zeros((64, 8), f32)
              .at[0:32, 0:cin].set(w1)
              .at[32:64, cin:2 * cin].set(w1)).astype(bf16)
    w11_blk = (jnp.zeros((64, 2 * cin * kk), f32)
               .at[0:32, 0:cin * kk].set(w11f)
               .at[32:64, cin * kk:].set(w11f)).astype(bf16)
    # fused operand z = [a_x; a_y; b_x; b_y] (128 rows)
    wm1_big = (jnp.zeros((64, 128), f32)
               .at[0:32, 0:32].set(wm1[:, 0:32])
               .at[0:32, 64:96].set(wm1[:, 32:64])
               .at[32:64, 32:64].set(wm1[:, 0:32])
               .at[32:64, 96:128].set(wm1[:, 32:64])).astype(bf16)
    wm2_blk = (jnp.zeros((32, 64), f32)
               .at[0:16, 0:32].set(wm2)
               .at[16:32, 32:64].set(wm2)).astype(bf16)
    # pad conv_m3 outputs to 16 channels per image so the x/y split lands on
    # sublane-aligned row offsets (0:16 / 16:32).
    wm3_pad = (jnp.zeros((32, 32), f32)
               .at[0:12, 0:16].set(wm3)
               .at[16:28, 16:32].set(wm3)).astype(bf16)

    per_img = lambda shp: pl.BlockSpec((1,) + shp, lambda b: (b, 0, 0))
    shared = lambda shp: pl.BlockSpec(shp, lambda b: (0, 0))

    out = pl.pallas_call(
        siamese_kernel,
        out_shape=jax.ShapeDtypeStruct((n, 8, 128), jnp.float32),
        grid=(n,),
        in_specs=[
            per_img((8, hw)),                 # pix (x/y stacked on channels)
            per_img((2 * cin * kk, p2)),      # im2col patches (x/y stacked)
            shared((p2, hw)),                 # upsample matrix
            shared((64, 8)),                  # conv1x1 block-diag
            shared((64, 2 * cin * kk)),       # conv11x11 block-diag
            shared((64, 128)),                # conv_m1 permuted block
            shared((32, 64)),                 # conv_m2 block-diag
            shared((32, 32)),                 # conv_m3 padded block-diag
            shared((16, 16)),                 # symmetrized |matrix|, padded
        ],
        out_specs=pl.BlockSpec((1, 8, 128), lambda b: (b, 0, 0)),
        compiler_params=pltpu.CompilerParams(dimension_semantics=("parallel",)),
    )(pix, patches, u_t, w1_blk, w11_blk, wm1_big, wm2_blk, wm3_pad, m_pad)
    return out[:, 0, 0]


# --------------------------- pure-JAX reference ----------------------------- #
def siamese_ref(x, y, matrix, params):
    m = jnp.abs(matrix)
    m = (m.T + m) / 2.0
    n, _, h, w = x.shape
    dn = ('NCHW', 'OIHW', 'NCHW')
    hp = lax.Precision.HIGHEST

    def conv1(inp, wgt):
        return lax.conv_general_dilated(inp, wgt, (1, 1), 'VALID',
                                        dimension_numbers=dn, precision=hp)

    def forward_once(inp):
        x1 = conv1(inp, params['w1'][:, :, None, None])
        x2 = lax.conv_general_dilated(inp, params['w11'], (1, 1),
                                      [(5, 5), (5, 5)], rhs_dilation=(3, 3),
                                      dimension_numbers=dn, precision=hp)
        uh = _interp_matrix(h, x2.shape[2])
        uw = _interp_matrix(w, x2.shape[3])
        up = jnp.einsum('ha,ncab,wb->nchw', uh, x2, uw, precision=hp)
        t = jnp.concatenate([x1, up], axis=1)
        t = _lrelu(t)
        t = conv1(t, params['wm1'][:, :, None, None])
        t = _lrelu(t)
        t = conv1(t, params['wm2'][:, :, None, None])
        t = _lrelu(t)
        t = conv1(t, params['wm3'][:, :, None, None])
        return t

    ox = forward_once(x)
    oy = forward_once(y)
    d = jnp.abs(ox - oy).reshape(n, 12, -1).transpose(0, 2, 1)   # (N, HW, 12)
    q = jnp.einsum('npi,ij,npj->np', d, m, d, precision=hp)
    return jnp.mean(jnp.sqrt(1e-8 + q), axis=1)


if __name__ == "__main__":
    key = jax.random.PRNGKey(0)
    ks = jax.random.split(key, 8)
    N, H, W = 2, 32, 32   # HW=1024 (lane-aligned), dilated-conv output 12x12
    x = jax.random.normal(ks[0], (N, 3, H, W), jnp.float32)
    y = jax.random.normal(ks[1], (N, 3, H, W), jnp.float32)
    matrix = jax.random.normal(ks[2], (12, 12), jnp.float32)
    params = {
        'w1':  0.30 * jax.random.normal(ks[3], (32, 3), jnp.float32),
        'w11': 0.05 * jax.random.normal(ks[4], (32, 3, 11, 11), jnp.float32),
        'wm1': 0.20 * jax.random.normal(ks[5], (32, 64), jnp.float32),
        'wm2': 0.20 * jax.random.normal(ks[6], (16, 32), jnp.float32),
        'wm3': 0.20 * jax.random.normal(ks[7], (12, 16), jnp.float32),
    }

    out = jax.block_until_ready(siamese_forward(x, y, matrix, params))
    ref = jax.block_until_ready(siamese_ref(x, y, matrix, params))

    assert out.shape == (N,), out.shape
    # bf16 matmul operands (f32 accumulation) vs f32-HIGHEST reference => slightly
    # looser tolerance than the pure-f32 v1 kernel.
    assert jnp.allclose(out, ref, rtol=3e-2, atol=3e-2), (out, ref)
    print("KERNEL_OK")
</pallas_src>

<mosaic_0001>
module attributes {stable_mosaic.version = 11 : i64} {
  func.func @siamese_kernel(%arg0: i32, %arg1: memref<1x8x1024xbf16, #tpu.memory_space<vmem>>, %arg2: memref<1x726x144xbf16, #tpu.memory_space<vmem>>, %arg3: memref<144x1024xbf16, #tpu.memory_space<vmem>>, %arg4: memref<64x8xbf16, #tpu.memory_space<vmem>>, %arg5: memref<64x726xbf16, #tpu.memory_space<vmem>>, %arg6: memref<64x128xbf16, #tpu.memory_space<vmem>>, %arg7: memref<32x64xbf16, #tpu.memory_space<vmem>>, %arg8: memref<32x32xbf16, #tpu.memory_space<vmem>>, %arg9: memref<16x16xf32, #tpu.memory_space<vmem>>, %arg10: memref<1x8x128xf32, #tpu.memory_space<vmem>>) attributes {dimension_semantics = [#tpu.dimension_semantics<parallel>], iteration_bounds = array<i64: 2>, scalar_prefetch = 0 : i64, scratch_operands = 0 : i64, tpu.core_type = #tpu.core_type<tc>, window_params = [{transform_indices = @transform_0, window_bounds = array<i64: 1, 8, 1024>}, {transform_indices = @transform_1, window_bounds = array<i64: 1, 726, 144>}, {pipeline_mode = #tpu.pipeline_mode<synchronous>, transform_indices = @transform_2, window_bounds = array<i64: 144, 1024>}, {pipeline_mode = #tpu.pipeline_mode<synchronous>, transform_indices = @transform_3, window_bounds = array<i64: 64, 8>}, {pipeline_mode = #tpu.pipeline_mode<synchronous>, transform_indices = @transform_4, window_bounds = array<i64: 64, 726>}, {pipeline_mode = #tpu.pipeline_mode<synchronous>, transform_indices = @transform_5, window_bounds = array<i64: 64, 128>}, {pipeline_mode = #tpu.pipeline_mode<synchronous>, transform_indices = @transform_6, window_bounds = array<i64: 32, 64>}, {pipeline_mode = #tpu.pipeline_mode<synchronous>, transform_indices = @transform_7, window_bounds = array<i64: 32, 32>}, {pipeline_mode = #tpu.pipeline_mode<synchronous>, transform_indices = @transform_8, window_bounds = array<i64: 16, 16>}, {transform_indices = @transform_9, window_bounds = array<i64: 1, 8, 128>}]} {
    %c0 = arith.constant 0 : index
    %c0_0 = arith.constant 0 : index
    %c0_1 = arith.constant 0 : index
    %0 = vector.load %arg1[%c0, %c0_0, %c0_1] : memref<1x8x1024xbf16, #tpu.memory_space<vmem>>, vector<1x8x1024xbf16>
    %1 = vector.shape_cast %0 : vector<1x8x1024xbf16> to vector<8x1024xbf16>
    %c0_2 = arith.constant 0 : index
    %c0_3 = arith.constant 0 : index
    %c0_4 = arith.constant 0 : index
    %2 = vector.load %arg2[%c0_2, %c0_3, %c0_4] : memref<1x726x144xbf16, #tpu.memory_space<vmem>>, vector<1x726x144xbf16>
    %3 = vector.shape_cast %2 : vector<1x726x144xbf16> to vector<726x144xbf16>
    %c0_5 = arith.constant 0 : index
    %c0_6 = arith.constant 0 : index
    %4 = vector.load %arg4[%c0_5, %c0_6] : memref<64x8xbf16, #tpu.memory_space<vmem>>, vector<64x8xbf16>
    %cst = arith.constant dense<0.000000e+00> : vector<64x1024xf32>
    %5 = tpu.matmul %4, %1, %cst {dimension_numbers = #tpu.dot_dimension_numbers<[1], [0], [0], [1], [0, 0, 1, 1], [], []>} : vector<64x8xbf16>, vector<8x1024xbf16>, vector<64x1024xf32> -> vector<64x1024xf32>
    %c0_7 = arith.constant 0 : index
    %c0_8 = arith.constant 0 : index
    %6 = vector.load %arg5[%c0_7, %c0_8] : memref<64x726xbf16, #tpu.memory_space<vmem>>, vector<64x726xbf16>
    %cst_9 = arith.constant dense<0.000000e+00> : vector<64x144xf32>
    %7 = tpu.matmul %6, %3, %cst_9 {dimension_numbers = #tpu.dot_dimension_numbers<[1], [0], [0], [1], [0, 0, 1, 1], [], []>} : vector<64x726xbf16>, vector<726x144xbf16>, vector<64x144xf32> -> vector<64x144xf32>
    %8 = arith.truncf %7 : vector<64x144xf32> to vector<64x144xbf16>
    %c0_10 = arith.constant 0 : index
    %c0_11 = arith.constant 0 : index
    %9 = vector.load %arg3[%c0_10, %c0_11] : memref<144x1024xbf16, #tpu.memory_space<vmem>>, vector<144x1024xbf16>
    %cst_12 = arith.constant dense<0.000000e+00> : vector<64x1024xf32>
    %10 = tpu.matmul %8, %9, %cst_12 {dimension_numbers = #tpu.dot_dimension_numbers<[1], [0], [0], [1], [0, 0, 1, 1], [], []>} : vector<64x144xbf16>, vector<144x1024xbf16>, vector<64x1024xf32> -> vector<64x1024xf32>
    %cst_13 = arith.constant 0.000000e+00 : f32
    %11 = vector.broadcast %cst_13 : f32 to vector<64x1024xf32>
    %12 = arith.cmpf ogt, %5, %11 : vector<64x1024xf32>
    %cst_14 = arith.constant 0.00999999977 : f32
    %13 = vector.broadcast %cst_14 : f32 to vector<64x1024xf32>
    %14 = arith.mulf %13, %5 : vector<64x1024xf32>
    %15 = arith.select %12, %5, %14 : vector<64x1024xi1>, vector<64x1024xf32>
    %cst_15 = arith.constant 0.000000e+00 : f32
    %16 = vector.broadcast %cst_15 : f32 to vector<64x1024xf32>
    %17 = arith.cmpf ogt, %10, %16 : vector<64x1024xf32>
    %cst_16 = arith.constant 0.00999999977 : f32
    %18 = vector.broadcast %cst_16 : f32 to vector<64x1024xf32>
    %19 = arith.mulf %18, %10 : vector<64x1024xf32>
    %20 = arith.select %17, %10, %19 : vector<64x1024xi1>, vector<64x1024xf32>
    %21 = tpu.concatenate %15, %20 in 0 : vector<64x1024xf32>, vector<64x1024xf32> -> vector<128x1024xf32>
    %22 = arith.truncf %21 : vector<128x1024xf32> to vector<128x1024xbf16>
    %c0_17 = arith.constant 0 : index
    %c0_18 = arith.constant 0 : index
    %23 = vector.load %arg6[%c0_17, %c0_18] : memref<64x128xbf16, #tpu.memory_space<vmem>>, vector<64x128xbf16>
    %cst_19 = arith.constant dense<0.000000e+00> : vector<64x1024xf32>
    %24 = tpu.matmul %23, %22, %cst_19 {dimension_numbers = #tpu.dot_dimension_numbers<[1], [0], [0], [1], [0, 0, 1, 1], [], []>} : vector<64x128xbf16>, vector<128x1024xbf16>, vector<64x1024xf32> -> vector<64x1024xf32>
    %c0_20 = arith.constant 0 : index
    %c0_21 = arith.constant 0 : index
    %25 = vector.load %arg7[%c0_20, %c0_21] : memref<32x64xbf16, #tpu.memory_space<vmem>>, vector<32x64xbf16>
    %cst_22 = arith.constant 0.000000e+00 : f32
    %26 = vector.broadcast %cst_22 : f32 to vector<64x1024xf32>
    %27 = arith.cmpf ogt, %24, %26 : vector<64x1024xf32>
    %cst_23 = arith.constant 0.00999999977 : f32
    %28 = vector.broadcast %cst_23 : f32 to vector<64x1024xf32>
    %29 = arith.mulf %28, %24 : vector<64x1024xf32>
    %30 = arith.select %27, %24, %29 : vector<64x1024xi1>, vector<64x1024xf32>
    %31 = arith.truncf %30 : vector<64x1024xf32> to vector<64x1024xbf16>
    %cst_24 = arith.constant dense<0.000000e+00> : vector<32x1024xf32>
    %32 = tpu.matmul %25, %31, %cst_24 {dimension_numbers = #tpu.dot_dimension_numbers<[1], [0], [0], [1], [0, 0, 1, 1], [], []>} : vector<32x64xbf16>, vector<64x1024xbf16>, vector<32x1024xf32> -> vector<32x1024xf32>
    %c0_25 = arith.constant 0 : index
    %c0_26 = arith.constant 0 : index
    %33 = vector.load %arg8[%c0_25, %c0_26] : memref<32x32xbf16, #tpu.memory_space<vmem>>, vector<32x32xbf16>
    %cst_27 = arith.constant 0.000000e+00 : f32
    %34 = vector.broadcast %cst_27 : f32 to vector<32x1024xf32>
    %35 = arith.cmpf ogt, %32, %34 : vector<32x1024xf32>
    %cst_28 = arith.constant 0.00999999977 : f32
    %36 = vector.broadcast %cst_28 : f32 to vector<32x1024xf32>
    %37 = arith.mulf %36, %32 : vector<32x1024xf32>
    %38 = arith.select %35, %32, %37 : vector<32x1024xi1>, vector<32x1024xf32>
    %39 = arith.truncf %38 : vector<32x1024xf32> to vector<32x1024xbf16>
    %cst_29 = arith.constant dense<0.000000e+00> : vector<32x1024xf32>
    %40 = tpu.matmul %33, %39, %cst_29 {dimension_numbers = #tpu.dot_dimension_numbers<[1], [0], [0], [1], [0, 0, 1, 1], [], []>} : vector<32x32xbf16>, vector<32x1024xbf16>, vector<32x1024xf32> -> vector<32x1024xf32>
    %41 = vector.extract_strided_slice %40 {offsets = [0, 0], sizes = [16, 1024], strides = [1, 1]} : vector<32x1024xf32> to vector<16x1024xf32>
    %42 = vector.extract_strided_slice %40 {offsets = [16, 0], sizes = [16, 1024], strides = [1, 1]} : vector<32x1024xf32> to vector<16x1024xf32>
    %43 = arith.subf %41, %42 : vector<16x1024xf32>
    %44 = math.absf %43 : vector<16x1024xf32>
    %c0_30 = arith.constant 0 : index
    %c0_31 = arith.constant 0 : index
    %45 = vector.load %arg9[%c0_30, %c0_31] : memref<16x16xf32, #tpu.memory_space<vmem>>, vector<16x16xf32>
    %cst_32 = arith.constant dense<0.000000e+00> : vector<16x1024xf32>
    %46 = tpu.matmul %45, %44, %cst_32 {dimension_numbers = #tpu.dot_dimension_numbers<[1], [0], [0], [1], [0, 0, 1, 1], [], []>} : vector<16x16xf32>, vector<16x1024xf32>, vector<16x1024xf32> -> vector<16x1024xf32>
    %47 = arith.mulf %44, %46 : vector<16x1024xf32>
    %cst_33 = arith.constant dense<0.000000e+00> : vector<1024xf32>
    %48 = vector.multi_reduction <add>, %47, %cst_33 [0] : vector<16x1024xf32> to vector<1024xf32>
    %49 = vector.shape_cast %48 : vector<1024xf32> to vector<1x1024xf32>
    %cst_34 = arith.constant 9.99999993E-9 : f32
    %50 = vector.broadcast %cst_34 : f32 to vector<1x1024xf32>
    %51 = arith.addf %50, %49 : vector<1x1024xf32>
    %52 = math.sqrt %51 : vector<1x1024xf32>
    %53 = vector.shape_cast %52 : vector<1x1024xf32> to vector<1x1x1024xf32>
    %cst_35 = arith.constant dense<0.000000e+00> : vector<1xf32>
    %54 = vector.multi_reduction <add>, %53, %cst_35 [1, 2] : vector<1x1x1024xf32> to vector<1xf32>
    %55 = vector.shape_cast %54 : vector<1xf32> to vector<1x1x1xf32>
    %56 = vector.extract %55[0, 0, 0] : f32 from vector<1x1x1xf32>
    %cst_36 = arith.constant 9.765625E-4 : f32
    %57 = arith.mulf %56, %cst_36 : f32
    %58 = vector.broadcast %57 : f32 to vector<1x8x128xf32>
    %c0_37 = arith.constant 0 : index
    %c0_38 = arith.constant 0 : index
    %c0_39 = arith.constant 0 : index
    %59 = vector.load %arg10[%c0_37, %c0_38, %c0_39] : memref<1x8x128xf32, #tpu.memory_space<vmem>>, vector<1x8x128xf32>
    tpu.vector_store %arg10[%c0_37, %c0_38, %c0_39], %58 {strides = array<i32>} : memref<1x8x128xf32, #tpu.memory_space<vmem>>, vector<1x8x128xf32>,
    return
  }
  func.func @transform_0(%arg0: i32) -> (i32, i32, i32) {
    %c0_i32 = arith.constant 0 : i32
    %c0_i32_0 = arith.constant 0 : i32
    %c0_i32_1 = arith.constant 0 : i32
    return %arg0, %c0_i32, %c0_i32_0 : i32, i32, i32
  }
  func.func @transform_1(%arg0: i32) -> (i32, i32, i32) {
    %c0_i32 = arith.constant 0 : i32
    %c0_i32_0 = arith.constant 0 : i32
    %c0_i32_1 = arith.constant 0 : i32
    return %arg0, %c0_i32, %c0_i32_0 : i32, i32, i32
  }
  func.func @transform_2(%arg0: i32) -> (i32, i32) {
    %c0_i32 = arith.constant 0 : i32
    %c0_i32_0 = arith.constant 0 : i32
    %c0_i32_1 = arith.constant 0 : i32
    return %c0_i32, %c0_i32_0 : i32, i32
  }
  func.func @transform_3(%arg0: i32) -> (i32, i32) {
    %c0_i32 = arith.constant 0 : i32
    %c0_i32_0 = arith.constant 0 : i32
    %c0_i32_1 = arith.constant 0 : i32
    return %c0_i32, %c0_i32_0 : i32, i32
  }
  func.func @transform_4(%arg0: i32) -> (i32, i32) {
    %c0_i32 = arith.constant 0 : i32
    %c0_i32_0 = arith.constant 0 : i32
    %c0_i32_1 = arith.constant 0 : i32
    return %c0_i32, %c0_i32_0 : i32, i32
  }
  func.func @transform_5(%arg0: i32) -> (i32, i32) {
    %c0_i32 = arith.constant 0 : i32
    %c0_i32_0 = arith.constant 0 : i32
    %c0_i32_1 = arith.constant 0 : i32
    return %c0_i32, %c0_i32_0 : i32, i32
  }
  func.func @transform_6(%arg0: i32) -> (i32, i32) {
    %c0_i32 = arith.constant 0 : i32
    %c0_i32_0 = arith.constant 0 : i32
    %c0_i32_1 = arith.constant 0 : i32
    return %c0_i32, %c0_i32_0 : i32, i32
  }
  func.func @transform_7(%arg0: i32) -> (i32, i32) {
    %c0_i32 = arith.constant 0 : i32
    %c0_i32_0 = arith.constant 0 : i32
    %c0_i32_1 = arith.constant 0 : i32
    return %c0_i32, %c0_i32_0 : i32, i32
  }
  func.func @transform_8(%arg0: i32) -> (i32, i32) {
    %c0_i32 = arith.constant 0 : i32
    %c0_i32_0 = arith.constant 0 : i32
    %c0_i32_1 = arith.constant 0 : i32
    return %c0_i32, %c0_i32_0 : i32, i32
  }
  func.func @transform_9(%arg0: i32) -> (i32, i32, i32) {
    %c0_i32 = arith.constant 0 : i32
    %c0_i32_0 = arith.constant 0 : i32
    %c0_i32_1 = arith.constant 0 : i32
    return %arg0, %c0_i32, %c0_i32_0 : i32, i32, i32
  }
}

</mosaic_0001>

<llo_original>
// kernel: tpu_custom_call.1
$region0: #{tpu_custom_call.1}
  #allocation0 [shape = 'u32[]', space=smem, size = 0x4, offset = 0x4, fixed_abs, tag = 'smem constant byte address 0x4 - core index']
  #allocation1 [shape = 'u32[72,128]{1,0:T(1,128)}', space=vmem, size = 0x9000, scoped, tag = 'internal scratch']
  %s0 = inlined_call_operand.vmem [shape: bf16[2,8,1024], index: 0, kind: input, shape index: {}]
  %s1 = inlined_call_operand.vmem [shape: bf16[2,726,144], index: 1, kind: input, shape index: {}]
  %s2 = inlined_call_operand.vmem [shape: bf16[144,1024], index: 2, kind: input, shape index: {}]
  %s3 = inlined_call_operand.vmem [shape: bf16[64,8], index: 3, kind: input, shape index: {}]
  %s4 = inlined_call_operand.vmem [shape: bf16[64,726], index: 4, kind: input, shape index: {}]
  %s5 = inlined_call_operand.vmem [shape: bf16[64,128], index: 5, kind: input, shape index: {}]
  %s6 = inlined_call_operand.vmem [shape: bf16[32,64], index: 6, kind: input, shape index: {}]
  %s7 = inlined_call_operand.vmem [shape: bf16[32,32], index: 7, kind: input, shape index: {}]
  %s8 = inlined_call_operand.vmem [shape: f32[16,16], index: 8, kind: input, shape index: {}]
  %s9 = inlined_call_operand.hbm [shape: f32[2,8,128], index: 9, kind: output, shape index: {}]
  %s10 = sld [smem:[#allocation0]]
  $region69: #{tpu_custom_call.1} parent=0
    _
  %s12 = ssub.s32 1, %s10
  %s13 = scalar_select 0, %s12, %s10
  $region1: #{tpu_custom_call.1} parent=0
    #allocation2 [shape = 'u8[8192]{0}', space=vmem, size = 0x2000, scoped, tag = 'output window, operand 0']
    #allocation3 [shape = 's32[2]{0}', space=sflag, size = 0x8, scoped, tag = 'scoped memory for tpu_custom_call.1']
    %14 = vsyncpa [#allocation3], 0
    %s15 = scalar_lea.sflag [#allocation3], 1
    %16 = vsyncpa %s15, 0
    loop: start=0, step=1, limit=4
    $region2: #{tpu_custom_call.1} parent=1 // loop_pre_header
      _
    $region3: #{tpu_custom_call.1} parent=1 // loop_header
      %s18 = sphi 0, %s22
      %p19 = scmp.ge.s32.totalorder %s18, 4
      %s28 = sphi 0, %s30
      %s31 = sphi 0, %s28
      %s32 = sphi 0, %s31
      %s48 = sphi 0, %s32
      %s54 = sphi 0, %s56
      %s57 = sphi 0, %s54
      %s58 = sphi 0, %s57
      %s74 = sphi 0, %s58
      %s78 = sphi 0, %s78
      %s80 = sphi 0, %s78
      %s81 = sphi 0, %s80
      %s95 = sphi 0, %s81
      %s99 = sphi 0, %s99
      %s101 = sphi 0, %s99
      %s102 = sphi 0, %s101
      %s116 = sphi 0, %s102
      %s120 = sphi 0, %s120
      %s122 = sphi 0, %s120
      %s123 = sphi 0, %s122
      %s137 = sphi 0, %s123
      %s141 = sphi 0, %s141
      %s143 = sphi 0, %s141
      %s144 = sphi 0, %s143
      %s158 = sphi 0, %s144
      %s162 = sphi 0, %s162
      %s164 = sphi 0, %s162
      %s165 = sphi 0, %s164
      %s179 = sphi 0, %s165
      %s183 = sphi 0, %s183
      %s185 = sphi 0, %s183
      %s186 = sphi 0, %s185
      %s200 = sphi 0, %s186
      %s204 = sphi 0, %s204
      %s206 = sphi 0, %s204
      %s207 = sphi 0, %s206
      %s221 = sphi 0, %s207
      %s227 = sphi 0, %s229
      %s230 = sphi 0, %s227
      %s231 = sphi 0, %s230
      %s247 = sphi 0, %s231
    $region4: #{tpu_custom_call.1} parent=1 // loop_header_branch
      %21 = sbr.rel (%p19) target = $region8
    $region5: #{tpu_custom_call.1} parent=1 // loop_body
      %s23 = ssub.s32 %s18, 1
      %s24 = ssub.s32 %s18, 2
      %s25 = sadd.s32 %s18, 1
      %s26 = ssub.s32 %s18, %s25
      %p27 = scmp.eq.s32.totalorder %s26, 0
      %s29 = sadd.s32 %s28, 1
      %s30 = scalar_select %p27, %s28, %s29
      %p33 = pneg %p27
      %p34 = scmp.eq.s32.totalorder %s18, 1
      %p35 = por %p33, %p34
      %p36 = scmp.ne.s32.totalorder %s28, %s31
      %p37 = scmp.eq.s32.totalorder %s18, 0
      %p38 = por %p36, %p37
      %p39 = scmp.ne.s32.totalorder %s28, %s31
      %p40 = scmp.eq.s32.totalorder %s23, 1
      %p41 = por %p39, %p40
      %p42 = scmp.ne.s32.totalorder %s31, %s32
      %p43 = scmp.eq.s32.totalorder %s23, 0
      %p44 = por %p42, %p43
      %p45 = scmp.ne.s32.totalorder %s31, %s32
      %p46 = scmp.eq.s32.totalorder %s24, 1
      %p47 = por %p45, %p46
      %p49 = scmp.ne.s32.totalorder %s32, %s48
      %p50 = scmp.eq.s32.totalorder %s24, 0
      %p51 = por %p49, %p50
      %s52 = ssub.s32 %s18, %s25
      %p53 = scmp.eq.s32.totalorder %s52, 0
      %s55 = sadd.s32 %s54, 1
      %s56 = scalar_select %p53, %s54, %s55
      %p59 = pneg %p53
      %p60 = scmp.eq.s32.totalorder %s18, 1
      %p61 = por %p59, %p60
      %p62 = scmp.ne.s32.totalorder %s54, %s57
      %p63 = scmp.eq.s32.totalorder %s18, 0
      %p64 = por %p62, %p63
      %p65 = scmp.ne.s32.totalorder %s54, %s57
      %p66 = scmp.eq.s32.totalorder %s23, 1
      %p67 = por %p65, %p66
      %p68 = scmp.ne.s32.totalorder %s57, %s58
      %p69 = scmp.eq.s32.totalorder %s23, 0
      %p70 = por %p68, %p69
      %p71 = scmp.ne.s32.totalorder %s57, %s58
      %p72 = scmp.eq.s32.totalorder %s24, 1
      %p73 = por %p71, %p72
      %p75 = scmp.ne.s32.totalorder %s58, %s74
      %p76 = scmp.eq.s32.totalorder %s24, 0
      %p77 = por %p75, %p76
      %s79 = sadd.s32 %s78, 1
      %p82 = scmp.eq.s32.totalorder %s18, 1
      %p83 = scmp.ne.s32.totalorder %s78, %s80
      %p84 = scmp.eq.s32.totalorder %s18, 0
      %p85 = por %p83, %p84
      %p86 = scmp.ne.s32.totalorder %s78, %s80
      %p87 = scmp.eq.s32.totalorder %s23, 1
      %p88 = por %p86, %p87
      %p89 = scmp.ne.s32.totalorder %s80, %s81
      %p90 = scmp.eq.s32.totalorder %s23, 0
      %p91 = por %p89, %p90
      %p92 = scmp.ne.s32.totalorder %s80, %s81
      %p93 = scmp.eq.s32.totalorder %s24, 1
      %p94 = por %p92, %p93
      %p96 = scmp.ne.s32.totalorder %s81, %s95
      %p97 = scmp.eq.s32.totalorder %s24, 0
      %p98 = por %p96, %p97
      %s100 = sadd.s32 %s99, 1
      %p103 = scmp.eq.s32.totalorder %s18, 1
      %p104 = scmp.ne.s32.totalorder %s99, %s101
      %p105 = scmp.eq.s32.totalorder %s18, 0
      %p106 = por %p104, %p105
      %p107 = scmp.ne.s32.totalorder %s99, %s101
      %p108 = scmp.eq.s32.totalorder %s23, 1
      %p109 = por %p107, %p108
      %p110 = scmp.ne.s32.totalorder %s101, %s102
      %p111 = scmp.eq.s32.totalorder %s23, 0
      %p112 = por %p110, %p111
      %p113 = scmp.ne.s32.totalorder %s101, %s102
      %p114 = scmp.eq.s32.totalorder %s24, 1
      %p115 = por %p113, %p114
      %p117 = scmp.ne.s32.totalorder %s102, %s116
      %p118 = scmp.eq.s32.totalorder %s24, 0
      %p119 = por %p117, %p118
      %s121 = sadd.s32 %s120, 1
      %p124 = scmp.eq.s32.totalorder %s18, 1
      %p125 = scmp.ne.s32.totalorder %s120, %s122
      %p126 = scmp.eq.s32.totalorder %s18, 0
      %p127 = por %p125, %p126
      %p128 = scmp.ne.s32.totalorder %s120, %s122
      %p129 = scmp.eq.s32.totalorder %s23, 1
      %p130 = por %p128, %p129
      %p131 = scmp.ne.s32.totalorder %s122, %s123
      %p132 = scmp.eq.s32.totalorder %s23, 0
      %p133 = por %p131, %p132
      %p134 = scmp.ne.s32.totalorder %s122, %s123
      %p135 = scmp.eq.s32.totalorder %s24, 1
      %p136 = por %p134, %p135
      %p138 = scmp.ne.s32.totalorder %s123, %s137
      %p139 = scmp.eq.s32.totalorder %s24, 0
      %p140 = por %p138, %p139
      %s142 = sadd.s32 %s141, 1
      %p145 = scmp.eq.s32.totalorder %s18, 1
      %p146 = scmp.ne.s32.totalorder %s141, %s143
      %p147 = scmp.eq.s32.totalorder %s18, 0
      %p148 = por %p146, %p147
      %p149 = scmp.ne.s32.totalorder %s141, %s143
      %p150 = scmp.eq.s32.totalorder %s23, 1
      %p151 = por %p149, %p150
      %p152 = scmp.ne.s32.totalorder %s143, %s144
      %p153 = scmp.eq.s32.totalorder %s23, 0
      %p154 = por %p152, %p153
      %p155 = scmp.ne.s32.totalorder %s143, %s144
      %p156 = scmp.eq.s32.totalorder %s24, 1
      %p157 = por %p155, %p156
      %p159 = scmp.ne.s32.totalorder %s144, %s158
      %p160 = scmp.eq.s32.totalorder %s24, 0
      %p161 = por %p159, %p160
      %s163 = sadd.s32 %s162, 1
      %p166 = scmp.eq.s32.totalorder %s18, 1
      %p167 = scmp.ne.s32.totalorder %s162, %s164
      %p168 = scmp.eq.s32.totalorder %s18, 0
      %p169 = por %p167, %p168
      %p170 = scmp.ne.s32.totalorder %s162, %s164
      %p171 = scmp.eq.s32.totalorder %s23, 1
      %p172 = por %p170, %p171
      %p173 = scmp.ne.s32.totalorder %s164, %s165
      %p174 = scmp.eq.s32.totalorder %s23, 0
      %p175 = por %p173, %p174
      %p176 = scmp.ne.s32.totalorder %s164, %s165
      %p177 = scmp.eq.s32.totalorder %s24, 1
      %p178 = por %p176, %p177
      %p180 = scmp.ne.s32.totalorder %s165, %s179
      %p181 = scmp.eq.s32.totalorder %s24, 0
      %p182 = por %p180, %p181
      %s184 = sadd.s32 %s183, 1
      %p187 = scmp.eq.s32.totalorder %s18, 1
      %p188 = scmp.ne.s32.totalorder %s183, %s185
      %p189 = scmp.eq.s32.totalorder %s18, 0
      %p190 = por %p188, %p189
      %p191 = scmp.ne.s32.totalorder %s183, %s185
      %p192 = scmp.eq.s32.totalorder %s23, 1
      %p193 = por %p191, %p192
      %p194 = scmp.ne.s32.totalorder %s185, %s186
      %p195 = scmp.eq.s32.totalorder %s23, 0
      %p196 = por %p194, %p195
      %p197 = scmp.ne.s32.totalorder %s185, %s186
      %p198 = scmp.eq.s32.totalorder %s24, 1
      %p199 = por %p197, %p198
      %p201 = scmp.ne.s32.totalorder %s186, %s200
      %p202 = scmp.eq.s32.totalorder %s24, 0
      %p203 = por %p201, %p202
      %s205 = sadd.s32 %s204, 1
      %p208 = scmp.eq.s32.totalorder %s18, 1
      %p209 = scmp.ne.s32.totalorder %s204, %s206
      %p210 = scmp.eq.s32.totalorder %s18, 0
      %p211 = por %p209, %p210
      %p212 = scmp.ne.s32.totalorder %s204, %s206
      %p213 = scmp.eq.s32.totalorder %s23, 1
      %p214 = por %p212, %p213
      %p215 = scmp.ne.s32.totalorder %s206, %s207
      %p216 = scmp.eq.s32.totalorder %s23, 0
      %p217 = por %p215, %p216
      %p218 = scmp.ne.s32.totalorder %s206, %s207
      %p219 = scmp.eq.s32.totalorder %s24, 1
      %p220 = por %p218, %p219
      %p222 = scmp.ne.s32.totalorder %s207, %s221
      %p223 = scmp.eq.s32.totalorder %s24, 0
      %p224 = por %p222, %p223
      %s225 = ssub.s32 %s18, %s25
      %p226 = scmp.eq.s32.totalorder %s225, 0
      %s228 = sadd.s32 %s227, 1
      %s229 = scalar_select %p226, %s227, %s228
      %p232 = pneg %p226
      %p233 = scmp.eq.s32.totalorder %s18, 1
      %p234 = por %p232, %p233
      %p235 = scmp.ne.s32.totalorder %s227, %s230
      %p236 = scmp.eq.s32.totalorder %s18, 0
      %p237 = por %p235, %p236
      %p238 = scmp.ne.s32.totalorder %s227, %s230
      %p239 = scmp.eq.s32.totalorder %s23, 1
      %p240 = por %p238, %p239
      %p241 = scmp.ne.s32.totalorder %s230, %s231
      %p242 = scmp.eq.s32.totalorder %s23, 0
      %p243 = por %p241, %p242
      %p244 = scmp.ne.s32.totalorder %s230, %s231
      %p245 = scmp.eq.s32.totalorder %s24, 1
      %p246 = por %p244, %p245
      %p248 = scmp.ne.s32.totalorder %s231, %s247
      %p249 = scmp.eq.s32.totalorder %s24, 0
      %p250 = por %p248, %p249
      %p251 = scmp.le.s32.totalorder 1, %s18
      %p252 = scmp.lt.s32.totalorder %s18, 3
      %p253 = pnand %p251, %p252
      %p254 = pneg %p253
      // Predicated region
      $region9: #{tpu_custom_call.1} parent=5 // pred_check
        _
      $region10: #{tpu_custom_call.1} parent=5 // pred_check_branch
        %256 = sbr.rel (%p253) target = $region12
      $region11: #{tpu_custom_call.1} parent=5 // pred_region
        %s257 = ssub.s32 %s18, 1
        // Predicated region
        $region13: #{tpu_custom_call.1} parent=11 // pred_check
          %p258 = pneg %p91
        $region14: #{tpu_custom_call.1} parent=11 // pred_check_branch
          %260 = sbr.rel (%p258) target = $region16
        $region15: #{tpu_custom_call.1} parent=11 // pred_region
          _
        $region16: #{tpu_custom_call.1} parent=11 // pred_fallthru
          _
        // Predicated region
        $region17: #{tpu_custom_call.1} parent=11 // pred_check
          %p261 = pneg %p112
        $region18: #{tpu_custom_call.1} parent=11 // pred_check_branch
          %263 = sbr.rel (%p261) target = $region20
        $region19: #{tpu_custom_call.1} parent=11 // pred_region
          _
        $region20: #{tpu_custom_call.1} parent=11 // pred_fallthru
          _
        // Predicated region
        $region21: #{tpu_custom_call.1} parent=11 // pred_check
          %p264 = pneg %p133
        $region22: #{tpu_custom_call.1} parent=11 // pred_check_branch
          %266 = sbr.rel (%p264) target = $region24
        $region23: #{tpu_custom_call.1} parent=11 // pred_region
          _
        $region24: #{tpu_custom_call.1} parent=11 // pred_fallthru
          _
        // Predicated region
        $region25: #{tpu_custom_call.1} parent=11 // pred_check
          %p267 = pneg %p154
        $region26: #{tpu_custom_call.1} parent=11 // pred_check_branch
          %269 = sbr.rel (%p267) target = $region28
        $region27: #{tpu_custom_call.1} parent=11 // pred_region
          _
        $region28: #{tpu_custom_call.1} parent=11 // pred_fallthru
          _
        // Predicated region
        $region29: #{tpu_custom_call.1} parent=11 // pred_check
          %p270 = pneg %p175
        $region30: #{tpu_custom_call.1} parent=11 // pred_check_branch
          %272 = sbr.rel (%p270) target = $region32
        $region31: #{tpu_custom_call.1} parent=11 // pred_region
          _
        $region32: #{tpu_custom_call.1} parent=11 // pred_fallthru
          _
        // Predicated region
        $region33: #{tpu_custom_call.1} parent=11 // pred_check
          %p273 = pneg %p196
        $region34: #{tpu_custom_call.1} parent=11 // pred_check_branch
          %275 = sbr.rel (%p273) target = $region36
        $region35: #{tpu_custom_call.1} parent=11 // pred_region
          _
        $region36: #{tpu_custom_call.1} parent=11 // pred_fallthru
          _
        // Predicated region
        $region37: #{tpu_custom_call.1} parent=11 // pred_check
          %p276 = pneg %p217
        $region38: #{tpu_custom_call.1} parent=11 // pred_check_branch
          %278 = sbr.rel (%p276) target = $region40
        $region39: #{tpu_custom_call.1} parent=11 // pred_region
          _
        $region40: #{tpu_custom_call.1} parent=11 // pred_fallthru
          _
      $region12: #{tpu_custom_call.1} parent=5 // pred_fallthru
        _
      %p279 = scmp.lt.s32.totalorder %s18, 2
      // Predicated region
      $region41: #{tpu_custom_call.1} parent=5 // pred_check
        %p280 = pneg %p279
      $region42: #{tpu_custom_call.1} parent=5 // pred_check_branch
        %282 = sbr.rel (%p280) target = $region44
      $region43: #{tpu_custom_call.1} parent=5 // pred_region
        // Predicated region
        $region45: #{tpu_custom_call.1} parent=43 // pred_check
          %p283 = pneg %p38
        $region46: #{tpu_custom_call.1} parent=43 // pred_check_branch
          %285 = sbr.rel (%p283) target = $region48
        $region47: #{tpu_custom_call.1} parent=43 // pred_region
          %p286 = scmp.lt.s32.totalorder %s18, 1
          %s287 = scalar_select %p286, %s18, 1
          %s288 = smul.addr %s287, 8
          %s289 = smul.addr %s288, 4
          %s290 = scalar_lea.vmem %s0, %s289
        $region48: #{tpu_custom_call.1} parent=43 // pred_fallthru
          _
        // Predicated region
        $region49: #{tpu_custom_call.1} parent=43 // pred_check
          %p291 = pneg %p64
        $region50: #{tpu_custom_call.1} parent=43 // pred_check_branch
          %293 = sbr.rel (%p291) target = $region52
        $region51: #{tpu_custom_call.1} parent=43 // pred_region
          %p294 = scmp.lt.s32.totalorder %s18, 1
          %s295 = scalar_select %p294, %s18, 1
          %s296 = smul.addr %s295, 182
          %s297 = smul.addr %s296, 4
          %s298 = scalar_lea.vmem %s1, %s297
        $region52: #{tpu_custom_call.1} parent=43 // pred_fallthru
          _
      $region44: #{tpu_custom_call.1} parent=5 // pred_fallthru
        _
      %p299 = scmp.le.s32.totalorder 1, %s18
      %p300 = scmp.lt.s32.totalorder %s18, 3
      %p301 = pnand %p299, %p300
      %p302 = pneg %p301
      // Predicated region
      $region53: #{tpu_custom_call.1} parent=5 // pred_check
        _
      $region54: #{tpu_custom_call.1} parent=5 // pred_check_branch
        %304 = sbr.rel (%p301) target = $region56
      $region55: #{tpu_custom_call.1} parent=5 // pred_region
        %s305 = ssub.s32 %s18, 1
        %p306 = scmp.lt.s32.totalorder %s23, 1
        %s307 = scalar_select %p306, %s23, 1
        %s308 = smul.addr %s307, 8
        %s309 = smul.addr %s308, 4
        %s310 = scalar_lea.vmem %s0, %s309
        %p311 = pneg %p44
        %p312 = pneg %p41
        %p313 = scmp.lt.s32.totalorder %s23, 1
        %s314 = scalar_select %p313, %s23, 1
        %s315 = smul.addr %s314, 182
        %s316 = smul.addr %s315, 4
        %s317 = scalar_lea.vmem %s1, %s316
        %p318 = pneg %p70
        %p319 = pneg %p67
        %p320 = pneg %p91
        %p321 = pneg %p88
        %p322 = pneg %p112
        %p323 = pneg %p109
        %p324 = pneg %p133
        %p325 = pneg %p130
        %p326 = pneg %p154
        %p327 = pneg %p151
        %p328 = pneg %p175
        %p329 = pneg %p172
        %p330 = pneg %p196
        %p331 = pneg %p193
        %p332 = pneg %p217
        %p333 = pneg %p214
        %p334 = pneg %p243
        %p335 = pneg %p240
        %s336 = sand.u32 %s230, 1
        %s337 = scalar_lea.sflag [#allocation3], %s336
        %s338 = sand.u32 %s230, 1
        %s339 = smul.addr %s338, 8
        %s340 = scalar_lea.vmem [#allocation2], %s339
        %p341 = scmp.lt.s32.totalorder %s23, 1
        %s342 = scalar_select %p341, %s23, 1
        %s343 = smul.addr %s342, 8
        %s344 = smul.addr %s343, 4
        %s345 = scalar_lea.vmem %s0, %s344
        %p346 = scmp.lt.s32.totalorder %s23, 1
        %s347 = scalar_select %p346, %s23, 1
        %s348 = smul.addr %s347, 182
        %s349 = smul.addr %s348, 4
        %s350 = scalar_lea.vmem %s1, %s349
        %v352 = vld [vmem:[%s345] sm:$0xff]
        %v353 = vld [vmem:[%s345 + $0x8] sm:$0xff]
        %v354 = vld [vmem:[%s345 + $0x10] sm:$0xff]
        %v355 = vld [vmem:[%s345 + $0x18] sm:$0xff]
        %v356 = vld [vmem:[%s350] sm:$0xff]
        %v357 = vld [vmem:[%s350 + $0x8] sm:$0xff]
        %v358 = vld [vmem:[%s350 + $0x10] sm:$0xff]
        %v359 = vld [vmem:[%s350 + $0x18] sm:$0xff]
        %v360 = vld [vmem:[%s350 + $0x20] sm:$0xff]
        %v361 = vld [vmem:[%s350 + $0x28] sm:$0xff]
        %v362 = vld [vmem:[%s350 + $0x30] sm:$0xff]
        %v363 = vld [vmem:[%s350 + $0x38] sm:$0xff]
        %v364 = vld [vmem:[%s350 + $0x40] sm:$0xff]
        %v365 = vld [vmem:[%s350 + $0x48] sm:$0xff]
        %v366 = vld [vmem:[%s350 + $0x50] sm:$0xff]
        %v367 = vld [vmem:[%s350 + $0x58] sm:$0xff]
        %v368 = vld [vmem:[%s350 + $0x60] sm:$0xff]
        %v369 = vld [vmem:[%s350 + $0x68] sm:$0xff]
        %v370 = vld [vmem:[%s350 + $0x70] sm:$0xff]
        %v371 = vld [vmem:[%s350 + $0x78] sm:$0xff]
        %v372 = vld [vmem:[%s350 + $0x80] sm:$0xff]
        %v373 = vld [vmem:[%s350 + $0x88] sm:$0xff]
        %v374 = vld [vmem:[%s350 + $0x90] sm:$0xff]
        %v375 = vld [vmem:[%s350 + $0x98] sm:$0xff]
        %v376 = vld [vmem:[%s350 + $0xa0] sm:$0xff]
        %v377 = vld [vmem:[%s350 + $0xa8] sm:$0xff]
        %v378 = vld [vmem:[%s350 + $0xb0] sm:$0xff]
        %v379 = vld [vmem:[%s350 + $0xb8] sm:$0xff]
        %v380 = vld [vmem:[%s350 + $0xc0] sm:$0xff]
        %v381 = vld [vmem:[%s350 + $0xc8] sm:$0xff]
        %v382 = vld [vmem:[%s350 + $0xd0] sm:$0xff]
        %v383 = vld [vmem:[%s350 + $0xd8] sm:$0xff]
        %v384 = vld [vmem:[%s350 + $0xe0] sm:$0xff]
        %v385 = vld [vmem:[%s350 + $0xe8] sm:$0xff]
        %v386 = vld [vmem:[%s350 + $0xf0] sm:$0xff]
        %v387 = vld [vmem:[%s350 + $0xf8] sm:$0xff]
        %v388 = vld [vmem:[%s350 + $0x100] sm:$0xff]
        %v389 = vld [vmem:[%s350 + $0x108] sm:$0xff]
        %v390 = vld [vmem:[%s350 + $0x110] sm:$0xff]
        %v391 = vld [vmem:[%s350 + $0x118] sm:$0xff]
        %v392 = vld [vmem:[%s350 + $0x120] sm:$0xff]
        %v393 = vld [vmem:[%s350 + $0x128] sm:$0xff]
        %v394 = vld [vmem:[%s350 + $0x130] sm:$0xff]
        %v395 = vld [vmem:[%s350 + $0x138] sm:$0xff]
        %v396 = vld [vmem:[%s350 + $0x140] sm:$0xff]
        %v397 = vld [vmem:[%s350 + $0x148] sm:$0xff]
        %v398 = vld [vmem:[%s350 + $0x150] sm:$0xff]
        %v399 = vld [vmem:[%s350 + $0x158] sm:$0xff]
        %v400 = vld [vmem:[%s350 + $0x160] sm:$0xff]
        %v401 = vld [vmem:[%s350 + $0x168] sm:$0xff]
        %v402 = vld [vmem:[%s350 + $0x170] sm:$0xff]
        %v403 = vld [vmem:[%s350 + $0x178] sm:$0xff]
        %v404 = vld [vmem:[%s350 + $0x180] sm:$0xff]
        %v405 = vld [vmem:[%s350 + $0x188] sm:$0xff]
        %v406 = vld [vmem:[%s350 + $0x190] sm:$0xff]
        %v407 = vld [vmem:[%s350 + $0x198] sm:$0xff]
        %v408 = vld [vmem:[%s350 + $0x1a0] sm:$0xff]
        %v409 = vld [vmem:[%s350 + $0x1a8] sm:$0xff]
        %v410 = vld [vmem:[%s350 + $0x1b0] sm:$0xff]
        %v411 = vld [vmem:[%s350 + $0x1b8] sm:$0xff]
        %v412 = vld [vmem:[%s350 + $0x1c0] sm:$0xff]
        %v413 = vld [vmem:[%s350 + $0x1c8] sm:$0xff]
        %v414 = vld [vmem:[%s350 + $0x1d0] sm:$0xff]
        %v415 = vld [vmem:[%s350 + $0x1d8] sm:$0xff]
        %v416 = vld [vmem:[%s350 + $0x1e0] sm:$0xff]
        %v417 = vld [vmem:[%s350 + $0x1e8] sm:$0xff]
        %v418 = vld [vmem:[%s350 + $0x1f0] sm:$0xff]
        %v419 = vld [vmem:[%s350 + $0x1f8] sm:$0xff]
        %v420 = vld [vmem:[%s350 + $0x200] sm:$0xff]
        %v421 = vld [vmem:[%s350 + $0x208] sm:$0xff]
        %v422 = vld [vmem:[%s350 + $0x210] sm:$0xff]
        %v423 = vld [vmem:[%s350 + $0x218] sm:$0xff]
        %v424 = vld [vmem:[%s350 + $0x220] sm:$0xff]
        %v425 = vld [vmem:[%s350 + $0x228] sm:$0xff]
        %v426 = vld [vmem:[%s350 + $0x230] sm:$0xff]
        %v427 = vld [vmem:[%s350 + $0x238] sm:$0xff]
        %v428 = vld [vmem:[%s350 + $0x240] sm:$0xff]
        %v429 = vld [vmem:[%s350 + $0x248] sm:$0xff]
        %v430 = vld [vmem:[%s350 + $0x250] sm:$0xff]
        %v431 = vld [vmem:[%s350 + $0x258] sm:$0xff]
        %v432 = vld [vmem:[%s350 + $0x260] sm:$0xff]
        %v433 = vld [vmem:[%s350 + $0x268] sm:$0xff]
        %v434 = vld [vmem:[%s350 + $0x270] sm:$0xff]
        %v435 = vld [vmem:[%s350 + $0x278] sm:$0xff]
        %v436 = vld [vmem:[%s350 + $0x280] sm:$0xff]
        %v437 = vld [vmem:[%s350 + $0x288] sm:$0xff]
        %v438 = vld [vmem:[%s350 + $0x290] sm:$0xff]
        %v439 = vld [vmem:[%s350 + $0x298] sm:$0xff]
        %v440 = vld [vmem:[%s350 + $0x2a0] sm:$0xff]
        %v441 = vld [vmem:[%s350 + $0x2a8] sm:$0xff]
        %v442 = vld [vmem:[%s350 + $0x2b0] sm:$0xff]
        %v443 = vld [vmem:[%s350 + $0x2b8] sm:$0xff]
        %v444 = vld [vmem:[%s350 + $0x2c0] sm:$0xff]
        %v445 = vld [vmem:[%s350 + $0x2c8] sm:$0xff]
        %v446 = vld [vmem:[%s350 + $0x2d0] sm:$0x77]
        %v447 = vld [vmem:[%s3] sm:$0xf]
        %v448 = vld [vmem:[%s3 + $0x4] sm:$0xf]
        %v449 = vld [vmem:[%s3 + $0x8] sm:$0xf]
        %v450 = vld [vmem:[%s3 + $0xc] sm:$0xf]
        %v451 = vld [vmem:[%s3 + $0x10] sm:$0xf]
        %v452 = vld [vmem:[%s3 + $0x14] sm:$0xf]
        %v453 = vld [vmem:[%s3 + $0x18] sm:$0xf]
        %v454 = vld [vmem:[%s3 + $0x1c] sm:$0xf]
        %v463 = vunpack.c.l.b16 %v447
        %v464 = vunpack.c.l.b16 %v448
        %v465 = vunpack.c.l.b16 %v449
        %v466 = vunpack.c.l.b16 %v450
        %v467 = vunpack.c.l.b16 %v451
        %v468 = vunpack.c.l.b16 %v452
        %v469 = vunpack.c.l.b16 %v453
        %v470 = vunpack.c.l.b16 %v454
        %v471 = vpack.c.b16 %v464, %v463
        %v472 = vpack.c.b16 %v466, %v465
        %v473 = vpack.c.b16 %v468, %v467
        %v474 = vpack.c.b16 %v470, %v469
        %v479 = vunpack.c.l.b16 %v352
        %v480 = vunpack.c.h.b16 %v352
        %v481 = vunpack.c.l.b16 %v353
        %v482 = vunpack.c.h.b16 %v353
        %v483 = vunpack.c.l.b16 %v354
        %v484 = vunpack.c.h.b16 %v354
        %v485 = vunpack.c.l.b16 %v355
        %v486 = vunpack.c.h.b16 %v355
        %v487 = vpack.c.b16 %v479, %v479
        %v488 = vpack.c.b16 %v480, %v480
        %v489 = vpack.c.b16 %v481, %v481
        %v490 = vpack.c.b16 %v482, %v482
        %v491 = vpack.c.b16 %v483, %v483
        %v492 = vpack.c.b16 %v484, %v484
        %v493 = vpack.c.b16 %v485, %v485
        %v494 = vpack.c.b16 %v486, %v486
        %vm495 = vcmask 64512
        %v497 = vsel %vm495, %v471, 0
        %v500 = vsel %vm495, %v472, 0
        %v503 = vsel %vm495, %v473, 0
        %v506 = vsel %vm495, %v474, 0
        %vm508 = vcmask 1043456
        %v510 = vsel %vm508, %v487, 0
        %v513 = vsel %vm508, %v488, 0
        %v516 = vsel %vm508, %v489, 0
        %v519 = vsel %vm508, %v490, 0
        %v522 = vsel %vm508, %v491, 0
        %v525 = vsel %vm508, %v492, 0
        %v528 = vsel %vm508, %v493, 0
        %v531 = vsel %vm508, %v494, 0
        %533 = vmatpush.bf16.msra.mxu0 0
        %534 = vmatpush.bf16.msra.mxu0 0
        %535 = vmatpush.bf16.msra.mxu0 0
        %536 = vmatpush.bf16.msra.mxu0 0
        %537 = vmatpush.bf16.msra.mxu0 0
        %538 = vmatpush.bf16.msra.mxu0 0
        %539 = vmatpush.bf16.msra.mxu0 0
        %540 = vmatpush.bf16.msra.mxu0 %v510
        %541 = vmatmul.bf16.gmra.mxu0 %v497
        %v542 = vpop.f32.mrf.mxu0
        %v543 = vadd.f32 0.0, %v542
        %v544 = vpop.f32.mrf.mxu0
        %v545 = vadd.f32 0.0, %v544
        %546 = vmatmul.bf16.gmra.mxu0 %v500
        %v547 = vpop.f32.mrf.mxu0
        %v548 = vadd.f32 0.0, %v547
        %v549 = vpop.f32.mrf.mxu0
        %v550 = vadd.f32 0.0, %v549
        %551 = vmatmul.bf16.gmra.mxu0 %v503
        %v552 = vpop.f32.mrf.mxu0
        %v553 = vadd.f32 0.0, %v552
        %v554 = vpop.f32.mrf.mxu0
        %v555 = vadd.f32 0.0, %v554
        %556 = vmatmul.bf16.gmra.mxu0 %v506
        %v557 = vpop.f32.mrf.mxu0
        %v558 = vadd.f32 0.0, %v557
        %v559 = vpop.f32.mrf.mxu0
        %v560 = vadd.f32 0.0, %v559
        %561 = vdwg.mxu0
        %562 = vmatpush.bf16.msra.mxu0 0
        %563 = vmatpush.bf16.msra.mxu0 0
        %564 = vmatpush.bf16.msra.mxu0 0
        %565 = vmatpush.bf16.msra.mxu0 0
        %566 = vmatpush.bf16.msra.mxu0 0
        %567 = vmatpush.bf16.msra.mxu0 0
        %568 = vmatpush.bf16.msra.mxu0 0
        %569 = vmatpush.bf16.msra.mxu0 %v513
        %570 = vmatmul.bf16.gmra.mxu0 %v497
        %v571 = vpop.f32.mrf.mxu0
        %v572 = vadd.f32 0.0, %v571
        %v573 = vpop.f32.mrf.mxu0
        %v574 = vadd.f32 0.0, %v573
        %575 = vmatmul.bf16.gmra.mxu0 %v500
        %v576 = vpop.f32.mrf.mxu0
        %v577 = vadd.f32 0.0, %v576
        %v578 = vpop.f32.mrf.mxu0
        %v579 = vadd.f32 0.0, %v578
        %580 = vmatmul.bf16.gmra.mxu0 %v503
        %v581 = vpop.f32.mrf.mxu0
        %v582 = vadd.f32 0.0, %v581
        %v583 = vpop.f32.mrf.mxu0
        %v584 = vadd.f32 0.0, %v583
        %585 = vmatmul.bf16.gmra.mxu0 %v506
        %v586 = vpop.f32.mrf.mxu0
        %v587 = vadd.f32 0.0, %v586
        %v588 = vpop.f32.mrf.mxu0
        %v589 = vadd.f32 0.0, %v588
        %590 = vdwg.mxu0
        %591 = vmatpush.bf16.msra.mxu0 0
        %592 = vmatpush.bf16.msra.mxu0 0
        %593 = vmatpush.bf16.msra.mxu0 0
        %594 = vmatpush.bf16.msra.mxu0 0
        %595 = vmatpush.bf16.msra.mxu0 0
        %596 = vmatpush.bf16.msra.mxu0 0
        %597 = vmatpush.bf16.msra.mxu0 0
        %598 = vmatpush.bf16.msra.mxu0 %v516
        %599 = vmatmul.bf16.gmra.mxu0 %v497
        %v600 = vpop.f32.mrf.mxu0
        %v601 = vadd.f32 0.0, %v600
        %v602 = vpop.f32.mrf.mxu0
        %v603 = vadd.f32 0.0, %v602
        %604 = vmatmul.bf16.gmra.mxu0 %v500
        %v605 = vpop.f32.mrf.mxu0
        %v606 = vadd.f32 0.0, %v605
        %v607 = vpop.f32.mrf.mxu0
        %v608 = vadd.f32 0.0, %v607
        %609 = vmatmul.bf16.gmra.mxu0 %v503
        %v610 = vpop.f32.mrf.mxu0
        %v611 = vadd.f32 0.0, %v610
        %v612 = vpop.f32.mrf.mxu0
        %v613 = vadd.f32 0.0, %v612
        %614 = vmatmul.bf16.gmra.mxu0 %v506
        %v615 = vpop.f32.mrf.mxu0
        %v616 = vadd.f32 0.0, %v615
        %v617 = vpop.f32.mrf.mxu0
        %v618 = vadd.f32 0.0, %v617
        %619 = vdwg.mxu0
        %620 = vmatpush.bf16.msra.mxu0 0
        %621 = vmatpush.bf16.msra.mxu0 0
        %622 = vmatpush.bf16.msra.mxu0 0
        %623 = vmatpush.bf16.msra.mxu0 0
        %624 = vmatpush.bf16.msra.mxu0 0
        %625 = vmatpush.bf16.msra.mxu0 0
        %626 = vmatpush.bf16.msra.mxu0 0
        %627 = vmatpush.bf16.msra.mxu0 %v519
        %628 = vmatmul.bf16.gmra.mxu0 %v497
        %v629 = vpop.f32.mrf.mxu0
        %v630 = vadd.f32 0.0, %v629
        %v631 = vpop.f32.mrf.mxu0
        %v632 = vadd.f32 0.0, %v631
        %633 = vmatmul.bf16.gmra.mxu0 %v500
        %v634 = vpop.f32.mrf.mxu0
        %v635 = vadd.f32 0.0, %v634
        %v636 = vpop.f32.mrf.mxu0
        %v637 = vadd.f32 0.0, %v636
        %638 = vmatmul.bf16.gmra.mxu0 %v503
        %v639 = vpop.f32.mrf.mxu0
        %v640 = vadd.f32 0.0, %v639
        %v641 = vpop.f32.mrf.mxu0
        %v642 = vadd.f32 0.0, %v641
        %643 = vmatmul.bf16.gmra.mxu0 %v506
        %v644 = vpop.f32.mrf.mxu0
        %v645 = vadd.f32 0.0, %v644
        %v646 = vpop.f32.mrf.mxu0
        %v647 = vadd.f32 0.0, %v646
        %648 = vdwg.mxu0
        %649 = vmatpush.bf16.msra.mxu0 0
        %650 = vmatpush.bf16.msra.mxu0 0
        %651 = vmatpush.bf16.msra.mxu0 0
        %652 = vmatpush.bf16.msra.mxu0 0
        %653 = vmatpush.bf16.msra.mxu0 0
        %654 = vmatpush.bf16.msra.mxu0 0
        %655 = vmatpush.bf16.msra.mxu0 0
        %656 = vmatpush.bf16.msra.mxu0 %v522
        %657 = vmatmul.bf16.gmra.mxu0 %v497
        %v658 = vpop.f32.mrf.mxu0
        %v659 = vadd.f32 0.0, %v658
        %v660 = vpop.f32.mrf.mxu0
        %v661 = vadd.f32 0.0, %v660
        %662 = vmatmul.bf16.gmra.mxu0 %v500
        %v663 = vpop.f32.mrf.mxu0
        %v664 = vadd.f32 0.0, %v663
        %v665 = vpop.f32.mrf.mxu0
        %v666 = vadd.f32 0.0, %v665
        %667 = vmatmul.bf16.gmra.mxu0 %v503
        %v668 = vpop.f32.mrf.mxu0
        %v669 = vadd.f32 0.0, %v668
        %v670 = vpop.f32.mrf.mxu0
        %v671 = vadd.f32 0.0, %v670
        %672 = vmatmul.bf16.gmra.mxu0 %v506
        %v673 = vpop.f32.mrf.mxu0
        %v674 = vadd.f32 0.0, %v673
        %v675 = vpop.f32.mrf.mxu0
        %v676 = vadd.f32 0.0, %v675
        %677 = vdwg.mxu0
        %678 = vmatpush.bf16.msra.mxu0 0
        %679 = vmatpush.bf16.msra.mxu0 0
        %680 = vmatpush.bf16.msra.mxu0 0
        %681 = vmatpush.bf16.msra.mxu0 0
        %682 = vmatpush.bf16.msra.mxu0 0
        %683 = vmatpush.bf16.msra.mxu0 0
        %684 = vmatpush.bf16.msra.mxu0 0
        %685 = vmatpush.bf16.msra.mxu0 %v525
        %686 = vmatmul.bf16.gmra.mxu0 %v497
        %v687 = vpop.f32.mrf.mxu0
        %v688 = vadd.f32 0.0, %v687
        %v689 = vpop.f32.mrf.mxu0
        %v690 = vadd.f32 0.0, %v689
        %691 = vmatmul.bf16.gmra.mxu0 %v500
        %v692 = vpop.f32.mrf.mxu0
        %v693 = vadd.f32 0.0, %v692
        %v694 = vpop.f32.mrf.mxu0
        %v695 = vadd.f32 0.0, %v694
        %696 = vmatmul.bf16.gmra.mxu0 %v503
        %v697 = vpop.f32.mrf.mxu0
        %v698 = vadd.f32 0.0, %v697
        %v699 = vpop.f32.mrf.mxu0
        %v700 = vadd.f32 0.0, %v699
        %701 = vmatmul.bf16.gmra.mxu0 %v506
        %v702 = vpop.f32.mrf.mxu0
        %v703 = vadd.f32 0.0, %v702
        %v704 = vpop.f32.mrf.mxu0
        %v705 = vadd.f32 0.0, %v704
        %706 = vdwg.mxu0
        %707 = vmatpush.bf16.msra.mxu0 0
        %708 = vmatpush.bf16.msra.mxu0 0
        %709 = vmatpush.bf16.msra.mxu0 0
        %710 = vmatpush.bf16.msra.mxu0 0
        %711 = vmatpush.bf16.msra.mxu0 0
        %712 = vmatpush.bf16.msra.mxu0 0
        %713 = vmatpush.bf16.msra.mxu0 0
        %714 = vmatpush.bf16.msra.mxu0 %v528
        %715 = vmatmul.bf16.gmra.mxu0 %v497
        %v716 = vpop.f32.mrf.mxu0
        %v717 = vadd.f32 0.0, %v716
        %v718 = vpop.f32.mrf.mxu0
        %v719 = vadd.f32 0.0, %v718
        %720 = vmatmul.bf16.gmra.mxu0 %v500
        %v721 = vpop.f32.mrf.mxu0
        %v722 = vadd.f32 0.0, %v721
        %v723 = vpop.f32.mrf.mxu0
        %v724 = vadd.f32 0.0, %v723
        %725 = vmatmul.bf16.gmra.mxu0 %v503
        %v726 = vpop.f32.mrf.mxu0
        %v727 = vadd.f32 0.0, %v726
        %v728 = vpop.f32.mrf.mxu0
        %v729 = vadd.f32 0.0, %v728
        %730 = vmatmul.bf16.gmra.mxu0 %v506
        %v731 = vpop.f32.mrf.mxu0
        %v732 = vadd.f32 0.0, %v731
        %v733 = vpop.f32.mrf.mxu0
        %v734 = vadd.f32 0.0, %v733
        %735 = vdwg.mxu0
        %736 = vmatpush.bf16.msra.mxu0 0
        %737 = vmatpush.bf16.msra.mxu0 0
        %738 = vmatpush.bf16.msra.mxu0 0
        %739 = vmatpush.bf16.msra.mxu0 0
        %740 = vmatpush.bf16.msra.mxu0 0
        %741 = vmatpush.bf16.msra.mxu0 0
        %742 = vmatpush.bf16.msra.mxu0 0
        %743 = vmatpush.bf16.msra.mxu0 %v531
        %744 = vmatmul.bf16.gmra.mxu0 %v497
        %v745 = vpop.f32.mrf.mxu0
        %v746 = vadd.f32 0.0, %v745
        %v747 = vpop.f32.mrf.mxu0
        %v748 = vadd.f32 0.0, %v747
        %749 = vmatmul.bf16.gmra.mxu0 %v500
        %v750 = vpop.f32.mrf.mxu0
        %v751 = vadd.f32 0.0, %v750
        %v752 = vpop.f32.mrf.mxu0
        %v753 = vadd.f32 0.0, %v752
        %754 = vmatmul.bf16.gmra.mxu0 %v503
        %v755 = vpop.f32.mrf.mxu0
        %v756 = vadd.f32 0.0, %v755
        %v757 = vpop.f32.mrf.mxu0
        %v758 = vadd.f32 0.0, %v757
        %759 = vmatmul.bf16.gmra.mxu0 %v506
        %v760 = vpop.f32.mrf.mxu0
        %v761 = vadd.f32 0.0, %v760
        %v762 = vpop.f32.mrf.mxu0
        %v763 = vadd.f32 0.0, %v762
        %764 = vdwg.mxu0
        %v765 = vld [vmem:[%s4] sm:$0xff]
        %v766 = vld [vmem:[%s4 + $0x8] sm:$0xff]
        %v767 = vld [vmem:[%s4 + $0x10] sm:$0xff]
        %v768 = vld [vmem:[%s4 + $0x18] sm:$0xff]
        %v769 = vld [vmem:[%s4 + $0x20] sm:$0xff]
        %v770 = vld [vmem:[%s4 + $0x28] sm:$0xff]
        %v771 = vld [vmem:[%s4 + $0x30] sm:$0xff]
        %v772 = vld [vmem:[%s4 + $0x38] sm:$0xff]
        %v773 = vld [vmem:[%s4 + $0x40] sm:$0xff]
        %v774 = vld [vmem:[%s4 + $0x48] sm:$0xff]
        %v775 = vld [vmem:[%s4 + $0x50] sm:$0xff]
        %v776 = vld [vmem:[%s4 + $0x58] sm:$0xff]
        %v777 = vld [vmem:[%s4 + $0x60] sm:$0xff]
        %v778 = vld [vmem:[%s4 + $0x68] sm:$0xff]
        %v779 = vld [vmem:[%s4 + $0x70] sm:$0xff]
        %v780 = vld [vmem:[%s4 + $0x78] sm:$0xff]
        %v781 = vld [vmem:[%s4 + $0x80] sm:$0xff]
        %v782 = vld [vmem:[%s4 + $0x88] sm:$0xff]
        %v783 = vld [vmem:[%s4 + $0x90] sm:$0xff]
        %v784 = vld [vmem:[%s4 + $0x98] sm:$0xff]
        %v785 = vld [vmem:[%s4 + $0xa0] sm:$0xff]
        %v786 = vld [vmem:[%s4 + $0xa8] sm:$0xff]
        %v787 = vld [vmem:[%s4 + $0xb0] sm:$0xff]
        %v788 = vld [vmem:[%s4 + $0xb8] sm:$0xff]
        %v813 = vunpack.c.l.b16 %v765
        %v814 = vunpack.c.h.b16 %v765
        %v815 = vunpack.c.l.b16 %v766
        %v816 = vunpack.c.h.b16 %v766
        %v817 = vunpack.c.l.b16 %v767
        %v818 = vunpack.c.h.b16 %v767
        %v819 = vunpack.c.l.b16 %v768
        %v820 = vunpack.c.h.b16 %v768
        %v821 = vunpack.c.l.b16 %v769
        %v822 = vunpack.c.h.b16 %v769
        %v823 = vunpack.c.l.b16 %v770
        %v824 = vunpack.c.h.b16 %v770
        %v825 = vunpack.c.l.b16 %v771
        %v826 = vunpack.c.h.b16 %v771
        %v827 = vunpack.c.l.b16 %v772
        %v828 = vunpack.c.h.b16 %v772
        %v829 = vunpack.c.l.b16 %v773
        %v830 = vunpack.c.h.b16 %v773
        %v831 = vunpack.c.l.b16 %v774
        %v832 = vunpack.c.h.b16 %v774
        %v833 = vunpack.c.l.b16 %v775
        %v834 = vunpack.c.h.b16 %v775
        %v835 = vunpack.c.l.b16 %v776
        %v836 = vunpack.c.h.b16 %v776
        %v837 = vunpack.c.l.b16 %v777
        %v838 = vunpack.c.h.b16 %v777
        %v839 = vunpack.c.l.b16 %v778
        %v840 = vunpack.c.h.b16 %v778
        %v841 = vunpack.c.l.b16 %v779
        %v842 = vunpack.c.h.b16 %v779
        %v843 = vunpack.c.l.b16 %v780
        %v844 = vunpack.c.h.b16 %v780
        %v845 = vunpack.c.l.b16 %v781
        %v846 = vunpack.c.h.b16 %v781
        %v847 = vunpack.c.l.b16 %v782
        %v848 = vunpack.c.h.b16 %v782
        %v849 = vunpack.c.l.b16 %v783
        %v850 = vunpack.c.h.b16 %v783
        %v851 = vunpack.c.l.b16 %v784
        %v852 = vunpack.c.h.b16 %v784
        %v853 = vunpack.c.l.b16 %v785
        %v854 = vunpack.c.h.b16 %v785
        %v855 = vunpack.c.l.b16 %v786
        %v856 = vunpack.c.h.b16 %v786
        %v857 = vunpack.c.l.b16 %v787
        %v858 = vunpack.c.h.b16 %v787
        %v859 = vunpack.c.l.b16 %v788
        %v860 = vunpack.c.h.b16 %v788
        %v861 = vpack.c.b16 %v819, %v813
        %v862 = vpack.c.b16 %v820, %v814
        %v863 = vpack.c.b16 %v821, %v815
        %v864 = vpack.c.b16 %v822, %v816
        %v865 = vpack.c.b16 %v823, %v817
        %v866 = vpack.c.b16 %v824, %v818
        %v867 = vpack.c.b16 %v831, %v825
        %v868 = vpack.c.b16 %v832, %v826
        %v869 = vpack.c.b16 %v833, %v827
        %v870 = vpack.c.b16 %v834, %v828
        %v871 = vpack.c.b16 %v835, %v829
        %v872 = vpack.c.b16 %v836, %v830
        %v873 = vpack.c.b16 %v843, %v837
        %v874 = vpack.c.b16 %v844, %v838
        %v875 = vpack.c.b16 %v845, %v839
        %v876 = vpack.c.b16 %v846, %v840
        %v877 = vpack.c.b16 %v847, %v841
        %v878 = vpack.c.b16 %v848, %v842
        %v879 = vpack.c.b16 %v855, %v849
        %v880 = vpack.c.b16 %v856, %v850
        %v881 = vpack.c.b16 %v857, %v851
        %v882 = vpack.c.b16 %v858, %v852
        %v883 = vpack.c.b16 %v859, %v853
        %v884 = vpack.c.b16 %v860, %v854
        %v996 = vunpack.c.l.b16 %v356
        %v997 = vunpack.c.h.b16 %v356
        %v998 = vunpack.c.l.b16 %v357
        %v999 = vunpack.c.h.b16 %v357
        %v1000 = vunpack.c.l.b16 %v358
        %v1001 = vunpack.c.h.b16 %v358
        %v1002 = vunpack.c.l.b16 %v359
        %v1003 = vunpack.c.h.b16 %v359
        %v1004 = vunpack.c.l.b16 %v360
        %v1005 = vunpack.c.h.b16 %v360
        %v1006 = vunpack.c.l.b16 %v361
        %v1007 = vunpack.c.h.b16 %v361
        %v1008 = vunpack.c.l.b16 %v362
        %v1009 = vunpack.c.h.b16 %v362
        %v1010 = vunpack.c.l.b16 %v363
        %v1011 = vunpack.c.h.b16 %v363
        %v1012 = vunpack.c.l.b16 %v364
        %v1013 = vunpack.c.h.b16 %v364
        %v1014 = vunpack.c.l.b16 %v365
        %v1015 = vunpack.c.h.b16 %v365
        %v1016 = vunpack.c.l.b16 %v366
        %v1017 = vunpack.c.h.b16 %v366
        %v1018 = vunpack.c.l.b16 %v367
        %v1019 = vunpack.c.h.b16 %v367
        %v1020 = vunpack.c.l.b16 %v368
        %v1021 = vunpack.c.h.b16 %v368
        %v1022 = vunpack.c.l.b16 %v369
        %v1023 = vunpack.c.h.b16 %v369
        %v1024 = vunpack.c.l.b16 %v370
        %v1025 = vunpack.c.h.b16 %v370
        %v1026 = vunpack.c.l.b16 %v371
        %v1027 = vunpack.c.h.b16 %v371
        %v1028 = vunpack.c.l.b16 %v372
        %v1029 = vunpack.c.h.b16 %v372
        %v1030 = vunpack.c.l.b16 %v373
        %v1031 = vunpack.c.h.b16 %v373
        %v1032 = vunpack.c.l.b16 %v374
        %v1033 = vunpack.c.h.b16 %v374
        %v1034 = vunpack.c.l.b16 %v375
        %v1035 = vunpack.c.h.b16 %v375
        %v1036 = vunpack.c.l.b16 %v376
        %v1037 = vunpack.c.h.b16 %v376
        %v1038 = vunpack.c.l.b16 %v377
        %v1039 = vunpack.c.h.b16 %v377
        %v1040 = vunpack.c.l.b16 %v378
        %v1041 = vunpack.c.h.b16 %v378
        %v1042 = vunpack.c.l.b16 %v379
        %v1043 = vunpack.c.h.b16 %v379
        %v1044 = vunpack.c.l.b16 %v380
        %v1045 = vunpack.c.h.b16 %v380
        %v1046 = vunpack.c.l.b16 %v381
        %v1047 = vunpack.c.h.b16 %v381
        %v1048 = vunpack.c.l.b16 %v382
        %v1049 = vunpack.c.h.b16 %v382
        %v1050 = vunpack.c.l.b16 %v383
        %v1051 = vunpack.c.h.b16 %v383
        %v1052 = vunpack.c.l.b16 %v384
        %v1053 = vunpack.c.h.b16 %v384
        %v1054 = vunpack.c.l.b16 %v385
        %v1055 = vunpack.c.h.b16 %v385
        %v1056 = vunpack.c.l.b16 %v386
        %v1057 = vunpack.c.h.b16 %v386
        %v1058 = vunpack.c.l.b16 %v387
        %v1059 = vunpack.c.h.b16 %v387
        %v1060 = vunpack.c.l.b16 %v388
        %v1061 = vunpack.c.h.b16 %v388
        %v1062 = vunpack.c.l.b16 %v389
        %v1063 = vunpack.c.h.b16 %v389
        %v1064 = vunpack.c.l.b16 %v390
        %v1065 = vunpack.c.h.b16 %v390
        %v1066 = vunpack.c.l.b16 %v391
        %v1067 = vunpack.c.h.b16 %v391
        %v1068 = vunpack.c.l.b16 %v392
        %v1069 = vunpack.c.h.b16 %v392
        %v1070 = vunpack.c.l.b16 %v393
        %v1071 = vunpack.c.h.b16 %v393
        %v1072 = vunpack.c.l.b16 %v394
        %v1073 = vunpack.c.h.b16 %v394
        %v1074 = vunpack.c.l.b16 %v395
        %v1075 = vunpack.c.h.b16 %v395
        %v1076 = vunpack.c.l.b16 %v396
        %v1077 = vunpack.c.h.b16 %v396
        %v1078 = vunpack.c.l.b16 %v397
        %v1079 = vunpack.c.h.b16 %v397
        %v1080 = vunpack.c.l.b16 %v398
        %v1081 = vunpack.c.h.b16 %v398
        %v1082 = vunpack.c.l.b16 %v399
        %v1083 = vunpack.c.h.b16 %v399
        %v1084 = vunpack.c.l.b16 %v400
        %v1085 = vunpack.c.h.b16 %v400
        %v1086 = vunpack.c.l.b16 %v401
        %v1087 = vunpack.c.h.b16 %v401
        %v1088 = vunpack.c.l.b16 %v402
        %v1089 = vunpack.c.h.b16 %v402
        %v1090 = vunpack.c.l.b16 %v403
        %v1091 = vunpack.c.h.b16 %v403
        %v1092 = vunpack.c.l.b16 %v404
        %v1093 = vunpack.c.h.b16 %v404
        %v1094 = vunpack.c.l.b16 %v405
        %v1095 = vunpack.c.h.b16 %v405
        %v1096 = vunpack.c.l.b16 %v406
        %v1097 = vunpack.c.h.b16 %v406
        %v1098 = vunpack.c.l.b16 %v407
        %v1099 = vunpack.c.h.b16 %v407
        %v1100 = vunpack.c.l.b16 %v408
        %v1101 = vunpack.c.h.b16 %v408
        %v1102 = vunpack.c.l.b16 %v409
        %v1103 = vunpack.c.h.b16 %v409
        %v1104 = vunpack.c.l.b16 %v410
        %v1105 = vunpack.c.h.b16 %v410
        %v1106 = vunpack.c.l.b16 %v411
        %v1107 = vunpack.c.h.b16 %v411
        %v1108 = vunpack.c.l.b16 %v412
        %v1109 = vunpack.c.h.b16 %v412
        %v1110 = vunpack.c.l.b16 %v413
        %v1111 = vunpack.c.h.b16 %v413
        %v1112 = vunpack.c.l.b16 %v414
        %v1113 = vunpack.c.h.b16 %v414
        %v1114 = vunpack.c.l.b16 %v415
        %v1115 = vunpack.c.h.b16 %v415
        %v1116 = vunpack.c.l.b16 %v416
        %v1117 = vunpack.c.h.b16 %v416
        %v1118 = vunpack.c.l.b16 %v417
        %v1119 = vunpack.c.h.b16 %v417
        %v1120 = vunpack.c.l.b16 %v418
        %v1121 = vunpack.c.h.b16 %v418
        %v1122 = vunpack.c.l.b16 %v419
        %v1123 = vunpack.c.h.b16 %v419
        %v1124 = vunpack.c.l.b16 %v420
        %v1125 = vunpack.c.h.b16 %v420
        %v1126 = vunpack.c.l.b16 %v421
        %v1127 = vunpack.c.h.b16 %v421
        %v1128 = vunpack.c.l.b16 %v422
        %v1129 = vunpack.c.h.b16 %v422
        %v1130 = vunpack.c.l.b16 %v423
        %v1131 = vunpack.c.h.b16 %v423
        %v1132 = vunpack.c.l.b16 %v424
        %v1133 = vunpack.c.h.b16 %v424
        %v1134 = vunpack.c.l.b16 %v425
        %v1135 = vunpack.c.h.b16 %v425
        %v1136 = vunpack.c.l.b16 %v426
        %v1137 = vunpack.c.h.b16 %v426
        %v1138 = vunpack.c.l.b16 %v427
        %v1139 = vunpack.c.h.b16 %v427
        %v1140 = vunpack.c.l.b16 %v428
        %v1141 = vunpack.c.h.b16 %v428
        %v1142 = vunpack.c.l.b16 %v429
        %v1143 = vunpack.c.h.b16 %v429
        %v1144 = vunpack.c.l.b16 %v430
        %v1145 = vunpack.c.h.b16 %v430
        %v1146 = vunpack.c.l.b16 %v431
        %v1147 = vunpack.c.h.b16 %v431
        %v1148 = vunpack.c.l.b16 %v432
        %v1149 = vunpack.c.h.b16 %v432
        %v1150 = vunpack.c.l.b16 %v433
        %v1151 = vunpack.c.h.b16 %v433
        %v1152 = vunpack.c.l.b16 %v434
        %v1153 = vunpack.c.h.b16 %v434
        %v1154 = vunpack.c.l.b16 %v435
        %v1155 = vunpack.c.h.b16 %v435
        %v1156 = vunpack.c.l.b16 %v436
        %v1157 = vunpack.c.h.b16 %v436
        %v1158 = vunpack.c.l.b16 %v437
        %v1159 = vunpack.c.h.b16 %v437
        %v1160 = vunpack.c.l.b16 %v438
        %v1161 = vunpack.c.h.b16 %v438
        %v1162 = vunpack.c.l.b16 %v439
        %v1163 = vunpack.c.h.b16 %v439
        %v1164 = vunpack.c.l.b16 %v440
        %v1165 = vunpack.c.h.b16 %v440
        %v1166 = vunpack.c.l.b16 %v441
        %v1167 = vunpack.c.h.b16 %v441
        %v1168 = vunpack.c.l.b16 %v442
        %v1169 = vunpack.c.h.b16 %v442
        %v1170 = vunpack.c.l.b16 %v443
        %v1171 = vunpack.c.h.b16 %v443
        %v1172 = vunpack.c.l.b16 %v444
        %v1173 = vunpack.c.h.b16 %v444
        %v1174 = vunpack.c.l.b16 %v445
        %v1175 = vunpack.c.h.b16 %v445
        %v1176 = vunpack.c.l.b16 %v446
        %v1177 = vunpack.c.h.b16 %v446
        %v1178 = vpack.c.b16 %v998, %v996
        %v1179 = vpack.c.b16 %v999, %v997
        %v1180 = vpack.c.b16 %v1002, %v1000
        %v1181 = vpack.c.b16 %v1003, %v1001
        %v1182 = vpack.c.b16 %v1006, %v1004
        %v1183 = vpack.c.b16 %v1007, %v1005
        %v1184 = vpack.c.b16 %v1010, %v1008
        %v1185 = vpack.c.b16 %v1011, %v1009
        %v1186 = vpack.c.b16 %v1014, %v1012
        %v1187 = vpack.c.b16 %v1015, %v1013
        %v1188 = vpack.c.b16 %v1018, %v1016
        %v1189 = vpack.c.b16 %v1019, %v1017
        %v1190 = vpack.c.b16 %v1022, %v1020
        %v1191 = vpack.c.b16 %v1023, %v1021
        %v1192 = vpack.c.b16 %v1026, %v1024
        %v1193 = vpack.c.b16 %v1027, %v1025
        %v1194 = vpack.c.b16 %v1030, %v1028
        %v1195 = vpack.c.b16 %v1031, %v1029
        %v1196 = vpack.c.b16 %v1034, %v1032
        %v1197 = vpack.c.b16 %v1035, %v1033
        %v1198 = vpack.c.b16 %v1038, %v1036
        %v1199 = vpack.c.b16 %v1039, %v1037
        %v1200 = vpack.c.b16 %v1042, %v1040
        %v1201 = vpack.c.b16 %v1043, %v1041
        %v1202 = vpack.c.b16 %v1046, %v1044
        %v1203 = vpack.c.b16 %v1047, %v1045
        %v1204 = vpack.c.b16 %v1050, %v1048
        %v1205 = vpack.c.b16 %v1051, %v1049
        %v1206 = vpack.c.b16 %v1054, %v1052
        %v1207 = vpack.c.b16 %v1055, %v1053
        %v1208 = vpack.c.b16 %v1058, %v1056
        %v1209 = vpack.c.b16 %v1059, %v1057
        %v1210 = vpack.c.b16 %v1062, %v1060
        %v1211 = vpack.c.b16 %v1063, %v1061
        %v1212 = vpack.c.b16 %v1066, %v1064
        %v1213 = vpack.c.b16 %v1067, %v1065
        %v1214 = vpack.c.b16 %v1070, %v1068
        %v1215 = vpack.c.b16 %v1071, %v1069
        %v1216 = vpack.c.b16 %v1074, %v1072
        %v1217 = vpack.c.b16 %v1075, %v1073
        %v1218 = vpack.c.b16 %v1078, %v1076
        %v1219 = vpack.c.b16 %v1079, %v1077
        %v1220 = vpack.c.b16 %v1082, %v1080
        %v1221 = vpack.c.b16 %v1083, %v1081
        %v1222 = vpack.c.b16 %v1086, %v1084
        %v1223 = vpack.c.b16 %v1087, %v1085
        %v1224 = vpack.c.b16 %v1090, %v1088
        %v1225 = vpack.c.b16 %v1091, %v1089
        %v1226 = vpack.c.b16 %v1094, %v1092
        %v1227 = vpack.c.b16 %v1095, %v1093
        %v1228 = vpack.c.b16 %v1098, %v1096
        %v1229 = vpack.c.b16 %v1099, %v1097
        %v1230 = vpack.c.b16 %v1102, %v1100
        %v1231 = vpack.c.b16 %v1103, %v1101
        %v1232 = vpack.c.b16 %v1106, %v1104
        %v1233 = vpack.c.b16 %v1107, %v1105
        %v1234 = vpack.c.b16 %v1110, %v1108
        %v1235 = vpack.c.b16 %v1111, %v1109
        %v1236 = vpack.c.b16 %v1114, %v1112
        %v1237 = vpack.c.b16 %v1115, %v1113
        %v1238 = vpack.c.b16 %v1118, %v1116
        %v1239 = vpack.c.b16 %v1119, %v1117
        %v1240 = vpack.c.b16 %v1122, %v1120
        %v1241 = vpack.c.b16 %v1123, %v1121
        %v1242 = vpack.c.b16 %v1126, %v1124
        %v1243 = vpack.c.b16 %v1127, %v1125
        %v1244 = vpack.c.b16 %v1130, %v1128
        %v1245 = vpack.c.b16 %v1131, %v1129
        %v1246 = vpack.c.b16 %v1134, %v1132
        %v1247 = vpack.c.b16 %v1135, %v1133
        %v1248 = vpack.c.b16 %v1138, %v1136
        %v1249 = vpack.c.b16 %v1139, %v1137
        %v1250 = vpack.c.b16 %v1142, %v1140
        %v1251 = vpack.c.b16 %v1143, %v1141
        %v1252 = vpack.c.b16 %v1146, %v1144
        %v1253 = vpack.c.b16 %v1147, %v1145
        %v1254 = vpack.c.b16 %v1150, %v1148
        %v1255 = vpack.c.b16 %v1151, %v1149
        %v1256 = vpack.c.b16 %v1154, %v1152
        %v1257 = vpack.c.b16 %v1155, %v1153
        %v1258 = vpack.c.b16 %v1158, %v1156
        %v1259 = vpack.c.b16 %v1159, %v1157
        %v1260 = vpack.c.b16 %v1162, %v1160
        %v1261 = vpack.c.b16 %v1163, %v1161
        %v1262 = vpack.c.b16 %v1166, %v1164
        %v1263 = vpack.c.b16 %v1167, %v1165
        %v1264 = vpack.c.b16 %v1170, %v1168
        %v1265 = vpack.c.b16 %v1171, %v1169
        %v1266 = vpack.c.b16 %v1174, %v1172
        %v1267 = vpack.c.b16 %v1175, %v1173
        %v1268 = vpack.c.b16 %v1176, %v1176
        %v1269 = vpack.c.b16 %v1177, %v1177
        %vm1360 = vcmask 703488
        %v1362 = vsel %vm1360, %v866, 0
        %v1365 = vsel %vm1360, %v872, 0
        %v1368 = vsel %vm1360, %v878, 0
        %v1371 = vsel %vm1360, %v884, 0
        %vm1373 = vcmask 1042432
        %v1375 = vsel %vm1373, %v1268, 0
        %v1378 = vsel %vm1373, %v1269, 0
        %1380 = vmatpush.bf16.msra.mxu0 %v1192
        %1381 = vmatpush.bf16.msra.mxu0 %v1190
        %1382 = vmatpush.bf16.msra.mxu0 %v1188
        %1383 = vmatpush.bf16.msra.mxu0 %v1186
        %1384 = vmatpush.bf16.msra.mxu0 %v1184
        %1385 = vmatpush.bf16.msra.mxu0 %v1182
        %1386 = vmatpush.bf16.msra.mxu0 %v1180
        %1387 = vmatpush.bf16.msra.mxu0 %v1178
        %1388 = vmatmul.bf16.gmra.mxu0 %v861
        %v1389 = vpop.f32.mrf.mxu0
        %v1390 = vadd.f32 0.0, %v1389
        %v1391 = vpop.f32.mrf.mxu0
        %v1392 = vadd.f32 0.0, %v1391
        %1393 = vmatmul.bf16.gmra.mxu0 %v867
        %v1394 = vpop.f32.mrf.mxu0
        %v1395 = vadd.f32 0.0, %v1394
        %v1396 = vpop.f32.mrf.mxu0
        %v1397 = vadd.f32 0.0, %v1396
        %1398 = vmatmul.bf16.gmra.mxu0 %v873
        %v1399 = vpop.f32.mrf.mxu0
        %v1400 = vadd.f32 0.0, %v1399
        %v1401 = vpop.f32.mrf.mxu0
        %v1402 = vadd.f32 0.0, %v1401
        %1403 = vmatmul.bf16.gmra.mxu0 %v879
        %v1404 = vpop.f32.mrf.mxu0
        %v1405 = vadd.f32 0.0, %v1404
        %v1406 = vpop.f32.mrf.mxu0
        %v1407 = vadd.f32 0.0, %v1406
        %1408 = vdwg.mxu0
        %1409 = vmatpush.bf16.msra.mxu0 %v1208
        %1410 = vmatpush.bf16.msra.mxu0 %v1206
        %1411 = vmatpush.bf16.msra.mxu0 %v1204
        %1412 = vmatpush.bf16.msra.mxu0 %v1202
        %1413 = vmatpush.bf16.msra.mxu0 %v1200
        %1414 = vmatpush.bf16.msra.mxu0 %v1198
        %1415 = vmatpush.bf16.msra.mxu0 %v1196
        %1416 = vmatpush.bf16.msra.mxu0 %v1194
        %1417 = vmatmul.bf16.gmra.mxu0 %v862
        %v1418 = vpop.f32.mrf.mxu0
        %v1419 = vadd.f32 %v1390, %v1418
        %v1420 = vpop.f32.mrf.mxu0
        %v1421 = vadd.f32 %v1392, %v1420
        %1422 = vmatmul.bf16.gmra.mxu0 %v868
        %v1423 = vpop.f32.mrf.mxu0
        %v1424 = vadd.f32 %v1395, %v1423
        %v1425 = vpop.f32.mrf.mxu0
        %v1426 = vadd.f32 %v1397, %v1425
        %1427 = vmatmul.bf16.gmra.mxu0 %v874
        %v1428 = vpop.f32.mrf.mxu0
        %v1429 = vadd.f32 %v1400, %v1428
        %v1430 = vpop.f32.mrf.mxu0
        %v1431 = vadd.f32 %v1402, %v1430
        %1432 = vmatmul.bf16.gmra.mxu0 %v880
        %v1433 = vpop.f32.mrf.mxu0
        %v1434 = vadd.f32 %v1405, %v1433
        %v1435 = vpop.f32.mrf.mxu0
        %v1436 = vadd.f32 %v1407, %v1435
        %1437 = vdwg.mxu0
        %1438 = vmatpush.bf16.msra.mxu0 %v1224
        %1439 = vmatpush.bf16.msra.mxu0 %v1222
        %1440 = vmatpush.bf16.msra.mxu0 %v1220
        %1441 = vmatpush.bf16.msra.mxu0 %v1218
        %1442 = vmatpush.bf16.msra.mxu0 %v1216
        %1443 = vmatpush.bf16.msra.mxu0 %v1214
        %1444 = vmatpush.bf16.msra.mxu0 %v1212
        %1445 = vmatpush.bf16.msra.mxu0 %v1210
        %1446 = vmatmul.bf16.gmra.mxu0 %v863
        %v1447 = vpop.f32.mrf.mxu0
        %v1448 = vadd.f32 %v1419, %v1447
        %v1449 = vpop.f32.mrf.mxu0
        %v1450 = vadd.f32 %v1421, %v1449
        %1451 = vmatmul.bf16.gmra.mxu0 %v869
        %v1452 = vpop.f32.mrf.mxu0
        %v1453 = vadd.f32 %v1424, %v1452
        %v1454 = vpop.f32.mrf.mxu0
        %v1455 = vadd.f32 %v1426, %v1454
        %1456 = vmatmul.bf16.gmra.mxu0 %v875
        %v1457 = vpop.f32.mrf.mxu0
        %v1458 = vadd.f32 %v1429, %v1457
        %v1459 = vpop.f32.mrf.mxu0
        %v1460 = vadd.f32 %v1431, %v1459
        %1461 = vmatmul.bf16.gmra.mxu0 %v881
        %v1462 = vpop.f32.mrf.mxu0
        %v1463 = vadd.f32 %v1434, %v1462
        %v1464 = vpop.f32.mrf.mxu0
        %v1465 = vadd.f32 %v1436, %v1464
        %1466 = vdwg.mxu0
        %1467 = vmatpush.bf16.msra.mxu0 %v1240
        %1468 = vmatpush.bf16.msra.mxu0 %v1238
        %1469 = vmatpush.bf16.msra.mxu0 %v1236
        %1470 = vmatpush.bf16.msra.mxu0 %v1234
        %1471 = vmatpush.bf16.msra.mxu0 %v1232
        %1472 = vmatpush.bf16.msra.mxu0 %v1230
        %1473 = vmatpush.bf16.msra.mxu0 %v1228
        %1474 = vmatpush.bf16.msra.mxu0 %v1226
        %1475 = vmatmul.bf16.gmra.mxu0 %v864
        %v1476 = vpop.f32.mrf.mxu0
        %v1477 = vadd.f32 %v1448, %v1476
        %v1478 = vpop.f32.mrf.mxu0
        %v1479 = vadd.f32 %v1450, %v1478
        %1480 = vmatmul.bf16.gmra.mxu0 %v870
        %v1481 = vpop.f32.mrf.mxu0
        %v1482 = vadd.f32 %v1453, %v1481
        %v1483 = vpop.f32.mrf.mxu0
        %v1484 = vadd.f32 %v1455, %v1483
        %1485 = vmatmul.bf16.gmra.mxu0 %v876
        %v1486 = vpop.f32.mrf.mxu0
        %v1487 = vadd.f32 %v1458, %v1486
        %v1488 = vpop.f32.mrf.mxu0
        %v1489 = vadd.f32 %v1460, %v1488
        %1490 = vmatmul.bf16.gmra.mxu0 %v882
        %v1491 = vpop.f32.mrf.mxu0
        %v1492 = vadd.f32 %v1463, %v1491
        %v1493 = vpop.f32.mrf.mxu0
        %v1494 = vadd.f32 %v1465, %v1493
        %1495 = vdwg.mxu0
        %1496 = vmatpush.bf16.msra.mxu0 %v1256
        %1497 = vmatpush.bf16.msra.mxu0 %v1254
        %1498 = vmatpush.bf16.msra.mxu0 %v1252
        %1499 = vmatpush.bf16.msra.mxu0 %v1250
        %1500 = vmatpush.bf16.msra.mxu0 %v1248
        %1501 = vmatpush.bf16.msra.mxu0 %v1246
        %1502 = vmatpush.bf16.msra.mxu0 %v1244
        %1503 = vmatpush.bf16.msra.mxu0 %v1242
        %1504 = vmatmul.bf16.gmra.mxu0 %v865
        %v1505 = vpop.f32.mrf.mxu0
        %v1506 = vadd.f32 %v1477, %v1505
        %v1507 = vpop.f32.mrf.mxu0
        %v1508 = vadd.f32 %v1479, %v1507
        %1509 = vmatmul.bf16.gmra.mxu0 %v871
        %v1510 = vpop.f32.mrf.mxu0
        %v1511 = vadd.f32 %v1482, %v1510
        %v1512 = vpop.f32.mrf.mxu0
        %v1513 = vadd.f32 %v1484, %v1512
        %1514 = vmatmul.bf16.gmra.mxu0 %v877
        %v1515 = vpop.f32.mrf.mxu0
        %v1516 = vadd.f32 %v1487, %v1515
        %v1517 = vpop.f32.mrf.mxu0
        %v1518 = vadd.f32 %v1489, %v1517
        %1519 = vmatmul.bf16.gmra.mxu0 %v883
        %v1520 = vpop.f32.mrf.mxu0
        %v1521 = vadd.f32 %v1492, %v1520
        %v1522 = vpop.f32.mrf.mxu0
        %v1523 = vadd.f32 %v1494, %v1522
        %1524 = vdwg.mxu0
        %1525 = vmatpush.bf16.msra.mxu0 0
        %1526 = vmatpush.bf16.msra.mxu0 0
        %1527 = vmatpush.bf16.msra.mxu0 %v1375
        %1528 = vmatpush.bf16.msra.mxu0 %v1266
        %1529 = vmatpush.bf16.msra.mxu0 %v1264
        %1530 = vmatpush.bf16.msra.mxu0 %v1262
        %1531 = vmatpush.bf16.msra.mxu0 %v1260
        %1532 = vmatpush.bf16.msra.mxu0 %v1258
        %1533 = vmatmul.bf16.gmra.mxu0 %v1362
        %v1534 = vpop.f32.mrf.mxu0
        %v1535 = vadd.f32 %v1506, %v1534
        %v1536 = vpop.f32.mrf.mxu0
        %v1537 = vadd.f32 %v1508, %v1536
        %1538 = vmatmul.bf16.gmra.mxu0 %v1365
        %v1539 = vpop.f32.mrf.mxu0
        %v1540 = vadd.f32 %v1511, %v1539
        %v1541 = vpop.f32.mrf.mxu0
        %v1542 = vadd.f32 %v1513, %v1541
        %1543 = vmatmul.bf16.gmra.mxu0 %v1368
        %v1544 = vpop.f32.mrf.mxu0
        %v1545 = vadd.f32 %v1516, %v1544
        %v1546 = vpop.f32.mrf.mxu0
        %v1547 = vadd.f32 %v1518, %v1546
        %1548 = vmatmul.bf16.gmra.mxu0 %v1371
        %v1549 = vpop.f32.mrf.mxu0
        %v1550 = vadd.f32 %v1521, %v1549
        %v1551 = vpop.f32.mrf.mxu0
        %v1552 = vadd.f32 %v1523, %v1551
        %1553 = vdwg.mxu0
        %1554 = vmatpush.bf16.msra.mxu0 %v1193
        %1555 = vmatpush.bf16.msra.mxu0 %v1191
        %1556 = vmatpush.bf16.msra.mxu0 %v1189
        %1557 = vmatpush.bf16.msra.mxu0 %v1187
        %1558 = vmatpush.bf16.msra.mxu0 %v1185
        %1559 = vmatpush.bf16.msra.mxu0 %v1183
        %1560 = vmatpush.bf16.msra.mxu0 %v1181
        %1561 = vmatpush.bf16.msra.mxu0 %v1179
        %1562 = vmatmul.bf16.gmra.mxu0 %v861
        %v1563 = vpop.f32.mrf.mxu0
        %v1564 = vadd.f32 0.0, %v1563
        %v1565 = vpop.f32.mrf.mxu0
        %v1566 = vadd.f32 0.0, %v1565
        %1567 = vmatmul.bf16.gmra.mxu0 %v867
        %v1568 = vpop.f32.mrf.mxu0
        %v1569 = vadd.f32 0.0, %v1568
        %v1570 = vpop.f32.mrf.mxu0
        %v1571 = vadd.f32 0.0, %v1570
        %1572 = vmatmul.bf16.gmra.mxu0 %v873
        %v1573 = vpop.f32.mrf.mxu0
        %v1574 = vadd.f32 0.0, %v1573
        %v1575 = vpop.f32.mrf.mxu0
        %v1576 = vadd.f32 0.0, %v1575
        %1577 = vmatmul.bf16.gmra.mxu0 %v879
        %v1578 = vpop.f32.mrf.mxu0
        %v1579 = vadd.f32 0.0, %v1578
        %v1580 = vpop.f32.mrf.mxu0
        %v1581 = vadd.f32 0.0, %v1580
        %1582 = vdwg.mxu0
        %1583 = vmatpush.bf16.msra.mxu0 %v1209
        %1584 = vmatpush.bf16.msra.mxu0 %v1207
        %1585 = vmatpush.bf16.msra.mxu0 %v1205
        %1586 = vmatpush.bf16.msra.mxu0 %v1203
        %1587 = vmatpush.bf16.msra.mxu0 %v1201
        %1588 = vmatpush.bf16.msra.mxu0 %v1199
        %1589 = vmatpush.bf16.msra.mxu0 %v1197
        %1590 = vmatpush.bf16.msra.mxu0 %v1195
        %1591 = vmatmul.bf16.gmra.mxu0 %v862
        %v1592 = vpop.f32.mrf.mxu0
        %v1593 = vadd.f32 %v1564, %v1592
        %v1594 = vpop.f32.mrf.mxu0
        %v1595 = vadd.f32 %v1566, %v1594
        %1596 = vmatmul.bf16.gmra.mxu0 %v868
        %v1597 = vpop.f32.mrf.mxu0
        %v1598 = vadd.f32 %v1569, %v1597
        %v1599 = vpop.f32.mrf.mxu0
        %v1600 = vadd.f32 %v1571, %v1599
        %1601 = vmatmul.bf16.gmra.mxu0 %v874
        %v1602 = vpop.f32.mrf.mxu0
        %v1603 = vadd.f32 %v1574, %v1602
        %v1604 = vpop.f32.mrf.mxu0
        %v1605 = vadd.f32 %v1576, %v1604
        %1606 = vmatmul.bf16.gmra.mxu0 %v880
        %v1607 = vpop.f32.mrf.mxu0
        %v1608 = vadd.f32 %v1579, %v1607
        %v1609 = vpop.f32.mrf.mxu0
        %v1610 = vadd.f32 %v1581, %v1609
        %1611 = vdwg.mxu0
        %1612 = vmatpush.bf16.msra.mxu0 %v1225
        %1613 = vmatpush.bf16.msra.mxu0 %v1223
        %1614 = vmatpush.bf16.msra.mxu0 %v1221
        %1615 = vmatpush.bf16.msra.mxu0 %v1219
        %1616 = vmatpush.bf16.msra.mxu0 %v1217
        %1617 = vmatpush.bf16.msra.mxu0 %v1215
        %1618 = vmatpush.bf16.msra.mxu0 %v1213
        %1619 = vmatpush.bf16.msra.mxu0 %v1211
        %1620 = vmatmul.bf16.gmra.mxu0 %v863
        %v1621 = vpop.f32.mrf.mxu0
        %v1622 = vadd.f32 %v1593, %v1621
        %v1623 = vpop.f32.mrf.mxu0
        %v1624 = vadd.f32 %v1595, %v1623
        %1625 = vmatmul.bf16.gmra.mxu0 %v869
        %v1626 = vpop.f32.mrf.mxu0
        %v1627 = vadd.f32 %v1598, %v1626
        %v1628 = vpop.f32.mrf.mxu0
        %v1629 = vadd.f32 %v1600, %v1628
        %1630 = vmatmul.bf16.gmra.mxu0 %v875
        %v1631 = vpop.f32.mrf.mxu0
        %v1632 = vadd.f32 %v1603, %v1631
        %v1633 = vpop.f32.mrf.mxu0
        %v1634 = vadd.f32 %v1605, %v1633
        %1635 = vmatmul.bf16.gmra.mxu0 %v881
        %v1636 = vpop.f32.mrf.mxu0
        %v1637 = vadd.f32 %v1608, %v1636
        %v1638 = vpop.f32.mrf.mxu0
        %v1639 = vadd.f32 %v1610, %v1638
        %1640 = vdwg.mxu0
        %1641 = vmatpush.bf16.msra.mxu0 %v1241
        %1642 = vmatpush.bf16.msra.mxu0 %v1239
        %1643 = vmatpush.bf16.msra.mxu0 %v1237
        %1644 = vmatpush.bf16.msra.mxu0 %v1235
        %1645 = vmatpush.bf16.msra.mxu0 %v1233
        %1646 = vmatpush.bf16.msra.mxu0 %v1231
        %1647 = vmatpush.bf16.msra.mxu0 %v1229
        %1648 = vmatpush.bf16.msra.mxu0 %v1227
        %1649 = vmatmul.bf16.gmra.mxu0 %v864
        %v1650 = vpop.f32.mrf.mxu0
        %v1651 = vadd.f32 %v1622, %v1650
        %v1652 = vpop.f32.mrf.mxu0
        %v1653 = vadd.f32 %v1624, %v1652
        %1654 = vmatmul.bf16.gmra.mxu0 %v870
        %v1655 = vpop.f32.mrf.mxu0
        %v1656 = vadd.f32 %v1627, %v1655
        %v1657 = vpop.f32.mrf.mxu0
        %v1658 = vadd.f32 %v1629, %v1657
        %1659 = vmatmul.bf16.gmra.mxu0 %v876
        %v1660 = vpop.f32.mrf.mxu0
        %v1661 = vadd.f32 %v1632, %v1660
        %v1662 = vpop.f32.mrf.mxu0
        %v1663 = vadd.f32 %v1634, %v1662
        %1664 = vmatmul.bf16.gmra.mxu0 %v882
        %v1665 = vpop.f32.mrf.mxu0
        %v1666 = vadd.f32 %v1637, %v1665
        %v1667 = vpop.f32.mrf.mxu0
        %v1668 = vadd.f32 %v1639, %v1667
        %1669 = vdwg.mxu0
        %1670 = vmatpush.bf16.msra.mxu0 %v1257
        %1671 = vmatpush.bf16.msra.mxu0 %v1255
        %1672 = vmatpush.bf16.msra.mxu0 %v1253
        %1673 = vmatpush.bf16.msra.mxu0 %v1251
        %1674 = vmatpush.bf16.msra.mxu0 %v1249
        %1675 = vmatpush.bf16.msra.mxu0 %v1247
        %1676 = vmatpush.bf16.msra.mxu0 %v1245
        %1677 = vmatpush.bf16.msra.mxu0 %v1243
        %1678 = vmatmul.bf16.gmra.mxu0 %v865
        %v1679 = vpop.f32.mrf.mxu0
        %v1680 = vadd.f32 %v1651, %v1679
        %v1681 = vpop.f32.mrf.mxu0
        %v1682 = vadd.f32 %v1653, %v1681
        %1683 = vmatmul.bf16.gmra.mxu0 %v871
        %v1684 = vpop.f32.mrf.mxu0
        %v1685 = vadd.f32 %v1656, %v1684
        %v1686 = vpop.f32.mrf.mxu0
        %v1687 = vadd.f32 %v1658, %v1686
        %1688 = vmatmul.bf16.gmra.mxu0 %v877
        %v1689 = vpop.f32.mrf.mxu0
        %v1690 = vadd.f32 %v1661, %v1689
        %v1691 = vpop.f32.mrf.mxu0
        %v1692 = vadd.f32 %v1663, %v1691
        %1693 = vmatmul.bf16.gmra.mxu0 %v883
        %v1694 = vpop.f32.mrf.mxu0
        %v1695 = vadd.f32 %v1666, %v1694
        %v1696 = vpop.f32.mrf.mxu0
        %v1697 = vadd.f32 %v1668, %v1696
        %1698 = vdwg.mxu0
        %1699 = vmatpush.bf16.msra.mxu0 0
        %1700 = vmatpush.bf16.msra.mxu0 0
        %1701 = vmatpush.bf16.msra.mxu0 %v1378
        %1702 = vmatpush.bf16.msra.mxu0 %v1267
        %1703 = vmatpush.bf16.msra.mxu0 %v1265
        %1704 = vmatpush.bf16.msra.mxu0 %v1263
        %1705 = vmatpush.bf16.msra.mxu0 %v1261
        %1706 = vmatpush.bf16.msra.mxu0 %v1259
        %1707 = vmatmul.bf16.gmra.mxu0 %v1362
        %v1708 = vpop.f32.mrf.mxu0
        %v1709 = vadd.f32 %v1680, %v1708
        %v1710 = vpop.f32.mrf.mxu0
        %v1711 = vadd.f32 %v1682, %v1710
        %1712 = vmatmul.bf16.gmra.mxu0 %v1365
        %v1713 = vpop.f32.mrf.mxu0
        %v1714 = vadd.f32 %v1685, %v1713
        %v1715 = vpop.f32.mrf.mxu0
        %v1716 = vadd.f32 %v1687, %v1715
        %1717 = vmatmul.bf16.gmra.mxu0 %v1368
        %v1718 = vpop.f32.mrf.mxu0
        %v1719 = vadd.f32 %v1690, %v1718
        %v1720 = vpop.f32.mrf.mxu0
        %v1721 = vadd.f32 %v1692, %v1720
        %1722 = vmatmul.bf16.gmra.mxu0 %v1371
        %v1723 = vpop.f32.mrf.mxu0
        %v1724 = vadd.f32 %v1695, %v1723
        %v1725 = vpop.f32.mrf.mxu0
        %v1726 = vadd.f32 %v1697, %v1725
        %1727 = vdwg.mxu0
        %v1728 = vpack.c.bf16 %v1537, %v1535
        %v1729 = vpack.c.bf16 %v1711, %v1709
        %v1730 = vpack.c.bf16 %v1542, %v1540
        %v1731 = vpack.c.bf16 %v1716, %v1714
        %v1732 = vpack.c.bf16 %v1547, %v1545
        %v1733 = vpack.c.bf16 %v1721, %v1719
        %v1734 = vpack.c.bf16 %v1552, %v1550
        %v1735 = vpack.c.bf16 %v1726, %v1724
        %v1736 = vld [vmem:[%s2] sm:$0xff]
        %v1737 = vld [vmem:[%s2 + $0x8] sm:$0xff]
        %v1738 = vld [vmem:[%s2 + $0x10] sm:$0xff]
        %v1739 = vld [vmem:[%s2 + $0x18] sm:$0xff]
        %v1740 = vld [vmem:[%s2 + $0x20] sm:$0xff]
        %v1741 = vld [vmem:[%s2 + $0x28] sm:$0xff]
        %v1742 = vld [vmem:[%s2 + $0x30] sm:$0xff]
        %v1743 = vld [vmem:[%s2 + $0x38] sm:$0xff]
        %v1744 = vld [vmem:[%s2 + $0x40] sm:$0xff]
        %v1745 = vld [vmem:[%s2 + $0x48] sm:$0xff]
        %v1746 = vld [vmem:[%s2 + $0x50] sm:$0xff]
        %v1747 = vld [vmem:[%s2 + $0x58] sm:$0xff]
        %v1748 = vld [vmem:[%s2 + $0x60] sm:$0xff]
        %v1749 = vld [vmem:[%s2 + $0x68] sm:$0xff]
        %v1750 = vld [vmem:[%s2 + $0x70] sm:$0xff]
        %v1751 = vld [vmem:[%s2 + $0x78] sm:$0xff]
        %v1752 = vld [vmem:[%s2 + $0x80] sm:$0xff]
        %v1753 = vld [vmem:[%s2 + $0x88] sm:$0xff]
        %v1754 = vld [vmem:[%s2 + $0x90] sm:$0xff]
        %v1755 = vld [vmem:[%s2 + $0x98] sm:$0xff]
        %v1756 = vld [vmem:[%s2 + $0xa0] sm:$0xff]
        %v1757 = vld [vmem:[%s2 + $0xa8] sm:$0xff]
        %v1758 = vld [vmem:[%s2 + $0xb0] sm:$0xff]
        %v1759 = vld [vmem:[%s2 + $0xb8] sm:$0xff]
        %v1760 = vld [vmem:[%s2 + $0xc0] sm:$0xff]
        %v1761 = vld [vmem:[%s2 + $0xc8] sm:$0xff]
        %v1762 = vld [vmem:[%s2 + $0xd0] sm:$0xff]
        %v1763 = vld [vmem:[%s2 + $0xd8] sm:$0xff]
        %v1764 = vld [vmem:[%s2 + $0xe0] sm:$0xff]
        %v1765 = vld [vmem:[%s2 + $0xe8] sm:$0xff]
        %v1766 = vld [vmem:[%s2 + $0xf0] sm:$0xff]
        %v1767 = vld [vmem:[%s2 + $0xf8] sm:$0xff]
        %v1768 = vld [vmem:[%s2 + $0x100] sm:$0xff]
        %v1769 = vld [vmem:[%s2 + $0x108] sm:$0xff]
        %v1770 = vld [vmem:[%s2 + $0x110] sm:$0xff]
        %v1771 = vld [vmem:[%s2 + $0x118] sm:$0xff]
        %v1772 = vld [vmem:[%s2 + $0x120] sm:$0xff]
        %v1773 = vld [vmem:[%s2 + $0x128] sm:$0xff]
        %v1774 = vld [vmem:[%s2 + $0x130] sm:$0xff]
        %v1775 = vld [vmem:[%s2 + $0x138] sm:$0xff]
        %v1776 = vld [vmem:[%s2 + $0x140] sm:$0xff]
        %v1777 = vld [vmem:[%s2 + $0x148] sm:$0xff]
        %v1778 = vld [vmem:[%s2 + $0x150] sm:$0xff]
        %v1779 = vld [vmem:[%s2 + $0x158] sm:$0xff]
        %v1780 = vld [vmem:[%s2 + $0x160] sm:$0xff]
        %v1781 = vld [vmem:[%s2 + $0x168] sm:$0xff]
        %v1782 = vld [vmem:[%s2 + $0x170] sm:$0xff]
        %v1783 = vld [vmem:[%s2 + $0x178] sm:$0xff]
        %v1784 = vld [vmem:[%s2 + $0x180] sm:$0xff]
        %v1785 = vld [vmem:[%s2 + $0x188] sm:$0xff]
        %v1786 = vld [vmem:[%s2 + $0x190] sm:$0xff]
        %v1787 = vld [vmem:[%s2 + $0x198] sm:$0xff]
        %v1788 = vld [vmem:[%s2 + $0x1a0] sm:$0xff]
        %v1789 = vld [vmem:[%s2 + $0x1a8] sm:$0xff]
        %v1790 = vld [vmem:[%s2 + $0x1b0] sm:$0xff]
        %v1791 = vld [vmem:[%s2 + $0x1b8] sm:$0xff]
        %v1792 = vld [vmem:[%s2 + $0x1c0] sm:$0xff]
        %v1793 = vld [vmem:[%s2 + $0x1c8] sm:$0xff]
        %v1794 = vld [vmem:[%s2 + $0x1d0] sm:$0xff]
        %v1795 = vld [vmem:[%s2 + $0x1d8] sm:$0xff]
        %v1796 = vld [vmem:[%s2 + $0x1e0] sm:$0xff]
        %v1797 = vld [vmem:[%s2 + $0x1e8] sm:$0xff]
        %v1798 = vld [vmem:[%s2 + $0x1f0] sm:$0xff]
        %v1799 = vld [vmem:[%s2 + $0x1f8] sm:$0xff]
        %v1800 = vld [vmem:[%s2 + $0x200] sm:$0xff]
        %v1801 = vld [vmem:[%s2 + $0x208] sm:$0xff]
        %v1802 = vld [vmem:[%s2 + $0x210] sm:$0xff]
        %v1803 = vld [vmem:[%s2 + $0x218] sm:$0xff]
        %v1804 = vld [vmem:[%s2 + $0x220] sm:$0xff]
        %v1805 = vld [vmem:[%s2 + $0x228] sm:$0xff]
        %v1806 = vld [vmem:[%s2 + $0x230] sm:$0xff]
        %v1807 = vld [vmem:[%s2 + $0x238] sm:$0xff]
        %v1880 = vunpack.c.l.b16 %v1736
        %v1881 = vunpack.c.h.b16 %v1736
        %v1882 = vunpack.c.l.b16 %v1737
        %v1883 = vunpack.c.h.b16 %v1737
        %v1884 = vunpack.c.l.b16 %v1738
        %v1885 = vunpack.c.h.b16 %v1738
        %v1886 = vunpack.c.l.b16 %v1739
        %v1887 = vunpack.c.h.b16 %v1739
        %v1888 = vunpack.c.l.b16 %v1740
        %v1889 = vunpack.c.h.b16 %v1740
        %v1890 = vunpack.c.l.b16 %v1741
        %v1891 = vunpack.c.h.b16 %v1741
        %v1892 = vunpack.c.l.b16 %v1742
        %v1893 = vunpack.c.h.b16 %v1742
        %v1894 = vunpack.c.l.b16 %v1743
        %v1895 = vunpack.c.h.b16 %v1743
        %v1896 = vunpack.c.l.b16 %v1744
        %v1897 = vunpack.c.h.b16 %v1744
        %v1898 = vunpack.c.l.b16 %v1745
        %v1899 = vunpack.c.h.b16 %v1745
        %v1900 = vunpack.c.l.b16 %v1746
        %v1901 = vunpack.c.h.b16 %v1746
        %v1902 = vunpack.c.l.b16 %v1747
        %v1903 = vunpack.c.h.b16 %v1747
        %v1904 = vunpack.c.l.b16 %v1748
        %v1905 = vunpack.c.h.b16 %v1748
        %v1906 = vunpack.c.l.b16 %v1749
        %v1907 = vunpack.c.h.b16 %v1749
        %v1908 = vunpack.c.l.b16 %v1750
        %v1909 = vunpack.c.h.b16 %v1750
        %v1910 = vunpack.c.l.b16 %v1751
        %v1911 = vunpack.c.h.b16 %v1751
        %v1912 = vunpack.c.l.b16 %v1752
        %v1913 = vunpack.c.h.b16 %v1752
        %v1914 = vunpack.c.l.b16 %v1753
        %v1915 = vunpack.c.h.b16 %v1753
        %v1916 = vunpack.c.l.b16 %v1754
        %v1917 = vunpack.c.h.b16 %v1754
        %v1918 = vunpack.c.l.b16 %v1755
        %v1919 = vunpack.c.h.b16 %v1755
        %v1920 = vunpack.c.l.b16 %v1756
        %v1921 = vunpack.c.h.b16 %v1756
        %v1922 = vunpack.c.l.b16 %v1757
        %v1923 = vunpack.c.h.b16 %v1757
        %v1924 = vunpack.c.l.b16 %v1758
        %v1925 = vunpack.c.h.b16 %v1758
        %v1926 = vunpack.c.l.b16 %v1759
        %v1927 = vunpack.c.h.b16 %v1759
        %v1928 = vunpack.c.l.b16 %v1760
        %v1929 = vunpack.c.h.b16 %v1760
        %v1930 = vunpack.c.l.b16 %v1761
        %v1931 = vunpack.c.h.b16 %v1761
        %v1932 = vunpack.c.l.b16 %v1762
        %v1933 = vunpack.c.h.b16 %v1762
        %v1934 = vunpack.c.l.b16 %v1763
        %v1935 = vunpack.c.h.b16 %v1763
        %v1936 = vunpack.c.l.b16 %v1764
        %v1937 = vunpack.c.h.b16 %v1764
        %v1938 = vunpack.c.l.b16 %v1765
        %v1939 = vunpack.c.h.b16 %v1765
        %v1940 = vunpack.c.l.b16 %v1766
        %v1941 = vunpack.c.h.b16 %v1766
        %v1942 = vunpack.c.l.b16 %v1767
        %v1943 = vunpack.c.h.b16 %v1767
        %v1944 = vunpack.c.l.b16 %v1768
        %v1945 = vunpack.c.h.b16 %v1768
        %v1946 = vunpack.c.l.b16 %v1769
        %v1947 = vunpack.c.h.b16 %v1769
        %v1948 = vunpack.c.l.b16 %v1770
        %v1949 = vunpack.c.h.b16 %v1770
        %v1950 = vunpack.c.l.b16 %v1771
        %v1951 = vunpack.c.h.b16 %v1771
        %v1952 = vunpack.c.l.b16 %v1772
        %v1953 = vunpack.c.h.b16 %v1772
        %v1954 = vunpack.c.l.b16 %v1773
        %v1955 = vunpack.c.h.b16 %v1773
        %v1956 = vunpack.c.l.b16 %v1774
        %v1957 = vunpack.c.h.b16 %v1774
        %v1958 = vunpack.c.l.b16 %v1775
        %v1959 = vunpack.c.h.b16 %v1775
        %v1960 = vunpack.c.l.b16 %v1776
        %v1961 = vunpack.c.h.b16 %v1776
        %v1962 = vunpack.c.l.b16 %v1777
        %v1963 = vunpack.c.h.b16 %v1777
        %v1964 = vunpack.c.l.b16 %v1778
        %v1965 = vunpack.c.h.b16 %v1778
        %v1966 = vunpack.c.l.b16 %v1779
        %v1967 = vunpack.c.h.b16 %v1779
        %v1968 = vunpack.c.l.b16 %v1780
        %v1969 = vunpack.c.h.b16 %v1780
        %v1970 = vunpack.c.l.b16 %v1781
        %v1971 = vunpack.c.h.b16 %v1781
        %v1972 = vunpack.c.l.b16 %v1782
        %v1973 = vunpack.c.h.b16 %v1782
        %v1974 = vunpack.c.l.b16 %v1783
        %v1975 = vunpack.c.h.b16 %v1783
        %v1976 = vunpack.c.l.b16 %v1784
        %v1977 = vunpack.c.h.b16 %v1784
        %v1978 = vunpack.c.l.b16 %v1785
        %v1979 = vunpack.c.h.b16 %v1785
        %v1980 = vunpack.c.l.b16 %v1786
        %v1981 = vunpack.c.h.b16 %v1786
        %v1982 = vunpack.c.l.b16 %v1787
        %v1983 = vunpack.c.h.b16 %v1787
        %v1984 = vunpack.c.l.b16 %v1788
        %v1985 = vunpack.c.h.b16 %v1788
        %v1986 = vunpack.c.l.b16 %v1789
        %v1987 = vunpack.c.h.b16 %v1789
        %v1988 = vunpack.c.l.b16 %v1790
        %v1989 = vunpack.c.h.b16 %v1790
        %v1990 = vunpack.c.l.b16 %v1791
        %v1991 = vunpack.c.h.b16 %v1791
        %v1992 = vunpack.c.l.b16 %v1792
        %v1993 = vunpack.c.h.b16 %v1792
        %v1994 = vunpack.c.l.b16 %v1793
        %v1995 = vunpack.c.h.b16 %v1793
        %v1996 = vunpack.c.l.b16 %v1794
        %v1997 = vunpack.c.h.b16 %v1794
        %v1998 = vunpack.c.l.b16 %v1795
        %v1999 = vunpack.c.h.b16 %v1795
        %v2000 = vunpack.c.l.b16 %v1796
        %v2001 = vunpack.c.h.b16 %v1796
        %v2002 = vunpack.c.l.b16 %v1797
        %v2003 = vunpack.c.h.b16 %v1797
        %v2004 = vunpack.c.l.b16 %v1798
        %v2005 = vunpack.c.h.b16 %v1798
        %v2006 = vunpack.c.l.b16 %v1799
        %v2007 = vunpack.c.h.b16 %v1799
        %v2008 = vunpack.c.l.b16 %v1800
        %v2009 = vunpack.c.h.b16 %v1800
        %v2010 = vunpack.c.l.b16 %v1801
        %v2011 = vunpack.c.h.b16 %v1801
        %v2012 = vunpack.c.l.b16 %v1802
        %v2013 = vunpack.c.h.b16 %v1802
        %v2014 = vunpack.c.l.b16 %v1803
        %v2015 = vunpack.c.h.b16 %v1803
        %v2016 = vunpack.c.l.b16 %v1804
        %v2017 = vunpack.c.h.b16 %v1804
        %v2018 = vunpack.c.l.b16 %v1805
        %v2019 = vunpack.c.h.b16 %v1805
        %v2020 = vunpack.c.l.b16 %v1806
        %v2021 = vunpack.c.h.b16 %v1806
        %v2022 = vunpack.c.l.b16 %v1807
        %v2023 = vunpack.c.h.b16 %v1807
        %v2024 = vpack.c.b16 %v1888, %v1880
        %v2025 = vpack.c.b16 %v1889, %v1881
        %v2026 = vpack.c.b16 %v1890, %v1882
        %v2027 = vpack.c.b16 %v1891, %v1883
        %v2028 = vpack.c.b16 %v1892, %v1884
        %v2029 = vpack.c.b16 %v1893, %v1885
        %v2030 = vpack.c.b16 %v1894, %v1886
        %v2031 = vpack.c.b16 %v1895, %v1887
        %v2032 = vpack.c.b16 %v1904, %v1896
        %v2033 = vpack.c.b16 %v1905, %v1897
        %v2034 = vpack.c.b16 %v1906, %v1898
        %v2035 = vpack.c.b16 %v1907, %v1899
        %v2036 = vpack.c.b16 %v1908, %v1900
        %v2037 = vpack.c.b16 %v1909, %v1901
        %v2038 = vpack.c.b16 %v1910, %v1902
        %v2039 = vpack.c.b16 %v1911, %v1903
        %v2040 = vpack.c.b16 %v1920, %v1912
        %v2041 = vpack.c.b16 %v1921, %v1913
        %v2042 = vpack.c.b16 %v1922, %v1914
        %v2043 = vpack.c.b16 %v1923, %v1915
        %v2044 = vpack.c.b16 %v1924, %v1916
        %v2045 = vpack.c.b16 %v1925, %v1917
        %v2046 = vpack.c.b16 %v1926, %v1918
        %v2047 = vpack.c.b16 %v1927, %v1919
        %v2048 = vpack.c.b16 %v1936, %v1928
        %v2049 = vpack.c.b16 %v1937, %v1929
        %v2050 = vpack.c.b16 %v1938, %v1930
        %v2051 = vpack.c.b16 %v1939, %v1931
        %v2052 = vpack.c.b16 %v1940, %v1932
        %v2053 = vpack.c.b16 %v1941, %v1933
        %v2054 = vpack.c.b16 %v1942, %v1934
        %v2055 = vpack.c.b16 %v1943, %v1935
        %v2056 = vpack.c.b16 %v1952, %v1944
        %v2057 = vpack.c.b16 %v1953, %v1945
        %v2058 = vpack.c.b16 %v1954, %v1946
        %v2059 = vpack.c.b16 %v1955, %v1947
        %v2060 = vpack.c.b16 %v1956, %v1948
        %v2061 = vpack.c.b16 %v1957, %v1949
        %v2062 = vpack.c.b16 %v1958, %v1950
        %v2063 = vpack.c.b16 %v1959, %v1951
        %v2064 = vpack.c.b16 %v1968, %v1960
        %v2065 = vpack.c.b16 %v1969, %v1961
        %v2066 = vpack.c.b16 %v1970, %v1962
        %v2067 = vpack.c.b16 %v1971, %v1963
        %v2068 = vpack.c.b16 %v1972, %v1964
        %v2069 = vpack.c.b16 %v1973, %v1965
        %v2070 = vpack.c.b16 %v1974, %v1966
        %v2071 = vpack.c.b16 %v1975, %v1967
        %v2072 = vpack.c.b16 %v1984, %v1976
        %v2073 = vpack.c.b16 %v1985, %v1977
        %v2074 = vpack.c.b16 %v1986, %v1978
        %v2075 = vpack.c.b16 %v1987, %v1979
        %v2076 = vpack.c.b16 %v1988, %v1980
        %v2077 = vpack.c.b16 %v1989, %v1981
        %v2078 = vpack.c.b16 %v1990, %v1982
        %v2079 = vpack.c.b16 %v1991, %v1983
        %v2080 = vpack.c.b16 %v2000, %v1992
        %v2081 = vpack.c.b16 %v2001, %v1993
        %v2082 = vpack.c.b16 %v2002, %v1994
        %v2083 = vpack.c.b16 %v2003, %v1995
        %v2084 = vpack.c.b16 %v2004, %v1996
        %v2085 = vpack.c.b16 %v2005, %v1997
        %v2086 = vpack.c.b16 %v2006, %v1998
        %v2087 = vpack.c.b16 %v2007, %v1999
        %v2088 = vpack.c.b16 %v2016, %v2008
        %v2089 = vpack.c.b16 %v2017, %v2009
        %v2090 = vpack.c.b16 %v2018, %v2010
        %v2091 = vpack.c.b16 %v2019, %v2011
        %v2092 = vpack.c.b16 %v2020, %v2012
        %v2093 = vpack.c.b16 %v2021, %v2013
        %v2094 = vpack.c.b16 %v2022, %v2014
        %v2095 = vpack.c.b16 %v2023, %v2015
        %vm2168 = vcmask 130048
        %v2170 = vsel %vm2168, %v1729, 0
        %v2173 = vsel %vm2168, %v1731, 0
        %v2176 = vsel %vm2168, %v1733, 0
        %v2179 = vsel %vm2168, %v1735, 0
        %2181 = vmatpush.bf16.msra.mxu0 %v2080
        %2182 = vmatpush.bf16.msra.mxu0 %v2072
        %2183 = vmatpush.bf16.msra.mxu0 %v2064
        %2184 = vmatpush.bf16.msra.mxu0 %v2056
        %2185 = vmatpush.bf16.msra.mxu0 %v2048
        %2186 = vmatpush.bf16.msra.mxu0 %v2040
        %2187 = vmatpush.bf16.msra.mxu0 %v2032
        %2188 = vmatpush.bf16.msra.mxu0 %v2024
        %2189 = vmatmul.bf16.gmra.mxu0 %v1728
        %v2190 = vpop.f32.mrf.mxu0
        %v2191 = vadd.f32 0.0, %v2190
        %v2192 = vpop.f32.mrf.mxu0
        %v2193 = vadd.f32 0.0, %v2192
        %2194 = vmatmul.bf16.gmra.mxu0 %v1730
        %v2195 = vpop.f32.mrf.mxu0
        %v2196 = vadd.f32 0.0, %v2195
        %v2197 = vpop.f32.mrf.mxu0
        %v2198 = vadd.f32 0.0, %v2197
        %2199 = vmatmul.bf16.gmra.mxu0 %v1732
        %v2200 = vpop.f32.mrf.mxu0
        %v2201 = vadd.f32 0.0, %v2200
        %v2202 = vpop.f32.mrf.mxu0
        %v2203 = vadd.f32 0.0, %v2202
        %2204 = vmatmul.bf16.gmra.mxu0 %v1734
        %v2205 = vpop.f32.mrf.mxu0
        %v2206 = vadd.f32 0.0, %v2205
        %v2207 = vpop.f32.mrf.mxu0
        %v2208 = vadd.f32 0.0, %v2207
        %2209 = vdwg.mxu0
        %2210 = vmatpush.bf16.msra.mxu0 0
        %2211 = vmatpush.bf16.msra.mxu0 0
        %2212 = vmatpush.bf16.msra.mxu0 0
        %2213 = vmatpush.bf16.msra.mxu0 0
        %2214 = vmatpush.bf16.msra.mxu0 0
        %2215 = vmatpush.bf16.msra.mxu0 0
        %2216 = vmatpush.bf16.msra.mxu0 0
        %2217 = vmatpush.bf16.msra.mxu0 %v2088
        %2218 = vmatmul.bf16.gmra.mxu0 %v2170
        %v2219 = vpop.f32.mrf.mxu0
        %v2220 = vadd.f32 %v2191, %v2219
        %v2221 = vpop.f32.mrf.mxu0
        %v2222 = vadd.f32 %v2193, %v2221
        %2223 = vmatmul.bf16.gmra.mxu0 %v2173
        %v2224 = vpop.f32.mrf.mxu0
        %v2225 = vadd.f32 %v2196, %v2224
        %v2226 = vpop.f32.mrf.mxu0
        %v2227 = vadd.f32 %v2198, %v2226
        %2228 = vmatmul.bf16.gmra.mxu0 %v2176
        %v2229 = vpop.f32.mrf.mxu0
        %v2230 = vadd.f32 %v2201, %v2229
        %v2231 = vpop.f32.mrf.mxu0
        %v2232 = vadd.f32 %v2203, %v2231
        %2233 = vmatmul.bf16.gmra.mxu0 %v2179
        %v2234 = vpop.f32.mrf.mxu0
        %v2235 = vadd.f32 %v2206, %v2234
        %v2236 = vpop.f32.mrf.mxu0
        %v2237 = vadd.f32 %v2208, %v2236
        %2238 = vdwg.mxu0
        %2239 = vmatpush.bf16.msra.mxu0 %v2081
        %2240 = vmatpush.bf16.msra.mxu0 %v2073
        %2241 = vmatpush.bf16.msra.mxu0 %v2065
        %2242 = vmatpush.bf16.msra.mxu0 %v2057
        %2243 = vmatpush.bf16.msra.mxu0 %v2049
        %2244 = vmatpush.bf16.msra.mxu0 %v2041
        %2245 = vmatpush.bf16.msra.mxu0 %v2033
        %2246 = vmatpush.bf16.msra.mxu0 %v2025
        %2247 = vmatmul.bf16.gmra.mxu0 %v1728
        %v2248 = vpop.f32.mrf.mxu0
        %v2249 = vadd.f32 0.0, %v2248
        %v2250 = vpop.f32.mrf.mxu0
        %v2251 = vadd.f32 0.0, %v2250
        %2252 = vmatmul.bf16.gmra.mxu0 %v1730
        %v2253 = vpop.f32.mrf.mxu0
        %v2254 = vadd.f32 0.0, %v2253
        %v2255 = vpop.f32.mrf.mxu0
        %v2256 = vadd.f32 0.0, %v2255
        %2257 = vmatmul.bf16.gmra.mxu0 %v1732
        %v2258 = vpop.f32.mrf.mxu0
        %v2259 = vadd.f32 0.0, %v2258
        %v2260 = vpop.f32.mrf.mxu0
        %v2261 = vadd.f32 0.0, %v2260
        %2262 = vmatmul.bf16.gmra.mxu0 %v1734
        %v2263 = vpop.f32.mrf.mxu0
        %v2264 = vadd.f32 0.0, %v2263
        %v2265 = vpop.f32.mrf.mxu0
        %v2266 = vadd.f32 0.0, %v2265
        %2267 = vdwg.mxu0
        %2268 = vmatpush.bf16.msra.mxu0 0
        %2269 = vmatpush.bf16.msra.mxu0 0
        %2270 = vmatpush.bf16.msra.mxu0 0
        %2271 = vmatpush.bf16.msra.mxu0 0
        %2272 = vmatpush.bf16.msra.mxu0 0
        %2273 = vmatpush.bf16.msra.mxu0 0
        %2274 = vmatpush.bf16.msra.mxu0 0
        %2275 = vmatpush.bf16.msra.mxu0 %v2089
        %2276 = vmatmul.bf16.gmra.mxu0 %v2170
        %v2277 = vpop.f32.mrf.mxu0
        %v2278 = vadd.f32 %v2249, %v2277
        %v2279 = vpop.f32.mrf.mxu0
        %v2280 = vadd.f32 %v2251, %v2279
        %2281 = vmatmul.bf16.gmra.mxu0 %v2173
        %v2282 = vpop.f32.mrf.mxu0
        %v2283 = vadd.f32 %v2254, %v2282
        %v2284 = vpop.f32.mrf.mxu0
        %v2285 = vadd.f32 %v2256, %v2284
        %2286 = vmatmul.bf16.gmra.mxu0 %v2176
        %v2287 = vpop.f32.mrf.mxu0
        %v2288 = vadd.f32 %v2259, %v2287
        %v2289 = vpop.f32.mrf.mxu0
        %v2290 = vadd.f32 %v2261, %v2289
        %2291 = vmatmul.bf16.gmra.mxu0 %v2179
        %v2292 = vpop.f32.mrf.mxu0
        %v2293 = vadd.f32 %v2264, %v2292
        %v2294 = vpop.f32.mrf.mxu0
        %v2295 = vadd.f32 %v2266, %v2294
        %2296 = vdwg.mxu0
        %2297 = vmatpush.bf16.msra.mxu0 %v2082
        %2298 = vmatpush.bf16.msra.mxu0 %v2074
        %2299 = vmatpush.bf16.msra.mxu0 %v2066
        %2300 = vmatpush.bf16.msra.mxu0 %v2058
        %2301 = vmatpush.bf16.msra.mxu0 %v2050
        %2302 = vmatpush.bf16.msra.mxu0 %v2042
        %2303 = vmatpush.bf16.msra.mxu0 %v2034
        %2304 = vmatpush.bf16.msra.mxu0 %v2026
        %2305 = vmatmul.bf16.gmra.mxu0 %v1728
        %v2306 = vpop.f32.mrf.mxu0
        %v2307 = vadd.f32 0.0, %v2306
        %v2308 = vpop.f32.mrf.mxu0
        %v2309 = vadd.f32 0.0, %v2308
        %2310 = vmatmul.bf16.gmra.mxu0 %v1730
        %v2311 = vpop.f32.mrf.mxu0
        %v2312 = vadd.f32 0.0, %v2311
        %v2313 = vpop.f32.mrf.mxu0
        %v2314 = vadd.f32 0.0, %v2313
        %2315 = vmatmul.bf16.gmra.mxu0 %v1732
        %v2316 = vpop.f32.mrf.mxu0
        %v2317 = vadd.f32 0.0, %v2316
        %v2318 = vpop.f32.mrf.mxu0
        %v2319 = vadd.f32 0.0, %v2318
        %2320 = vmatmul.bf16.gmra.mxu0 %v1734
        %v2321 = vpop.f32.mrf.mxu0
        %v2322 = vadd.f32 0.0, %v2321
        %v2323 = vpop.f32.mrf.mxu0
        %v2324 = vadd.f32 0.0, %v2323
        %2325 = vdwg.mxu0
        %2326 = vmatpush.bf16.msra.mxu0 0
        %2327 = vmatpush.bf16.msra.mxu0 0
        %2328 = vmatpush.bf16.msra.mxu0 0
        %2329 = vmatpush.bf16.msra.mxu0 0
        %2330 = vmatpush.bf16.msra.mxu0 0
        %2331 = vmatpush.bf16.msra.mxu0 0
        %2332 = vmatpush.bf16.msra.mxu0 0
        %2333 = vmatpush.bf16.msra.mxu0 %v2090
        %2334 = vmatmul.bf16.gmra.mxu0 %v2170
        %v2335 = vpop.f32.mrf.mxu0
        %v2336 = vadd.f32 %v2307, %v2335
        %v2337 = vpop.f32.mrf.mxu0
        %v2338 = vadd.f32 %v2309, %v2337
        %2339 = vmatmul.bf16.gmra.mxu0 %v2173
        %v2340 = vpop.f32.mrf.mxu0
        %v2341 = vadd.f32 %v2312, %v2340
        %v2342 = vpop.f32.mrf.mxu0
        %v2343 = vadd.f32 %v2314, %v2342
        %2344 = vmatmul.bf16.gmra.mxu0 %v2176
        %v2345 = vpop.f32.mrf.mxu0
        %v2346 = vadd.f32 %v2317, %v2345
        %v2347 = vpop.f32.mrf.mxu0
        %v2348 = vadd.f32 %v2319, %v2347
        %2349 = vmatmul.bf16.gmra.mxu0 %v2179
        %v2350 = vpop.f32.mrf.mxu0
        %v2351 = vadd.f32 %v2322, %v2350
        %v2352 = vpop.f32.mrf.mxu0
        %v2353 = vadd.f32 %v2324, %v2352
        %2354 = vdwg.mxu0
        %2355 = vmatpush.bf16.msra.mxu0 %v2083
        %2356 = vmatpush.bf16.msra.mxu0 %v2075
        %2357 = vmatpush.bf16.msra.mxu0 %v2067
        %2358 = vmatpush.bf16.msra.mxu0 %v2059
        %2359 = vmatpush.bf16.msra.mxu0 %v2051
        %2360 = vmatpush.bf16.msra.mxu0 %v2043
        %2361 = vmatpush.bf16.msra.mxu0 %v2035
        %2362 = vmatpush.bf16.msra.mxu0 %v2027
        %2363 = vmatmul.bf16.gmra.mxu0 %v1728
        %v2364 = vpop.f32.mrf.mxu0
        %v2365 = vadd.f32 0.0, %v2364
        %v2366 = vpop.f32.mrf.mxu0
        %v2367 = vadd.f32 0.0, %v2366
        %2368 = vmatmul.bf16.gmra.mxu0 %v1730
        %v2369 = vpop.f32.mrf.mxu0
        %v2370 = vadd.f32 0.0, %v2369
        %v2371 = vpop.f32.mrf.mxu0
        %v2372 = vadd.f32 0.0, %v2371
        %2373 = vmatmul.bf16.gmra.mxu0 %v1732
        %v2374 = vpop.f32.mrf.mxu0
        %v2375 = vadd.f32 0.0, %v2374
        %v2376 = vpop.f32.mrf.mxu0
        %v2377 = vadd.f32 0.0, %v2376
        %2378 = vmatmul.bf16.gmra.mxu0 %v1734
        %v2379 = vpop.f32.mrf.mxu0
        %v2380 = vadd.f32 0.0, %v2379
        %v2381 = vpop.f32.mrf.mxu0
        %v2382 = vadd.f32 0.0, %v2381
        %2383 = vdwg.mxu0
        %2384 = vmatpush.bf16.msra.mxu0 0
        %2385 = vmatpush.bf16.msra.mxu0 0
        %2386 = vmatpush.bf16.msra.mxu0 0
        %2387 = vmatpush.bf16.msra.mxu0 0
        %2388 = vmatpush.bf16.msra.mxu0 0
        %2389 = vmatpush.bf16.msra.mxu0 0
        %2390 = vmatpush.bf16.msra.mxu0 0
        %2391 = vmatpush.bf16.msra.mxu0 %v2091
        %2392 = vmatmul.bf16.gmra.mxu0 %v2170
        %v2393 = vpop.f32.mrf.mxu0
        %v2394 = vadd.f32 %v2365, %v2393
        %v2395 = vpop.f32.mrf.mxu0
        %v2396 = vadd.f32 %v2367, %v2395
        %2397 = vmatmul.bf16.gmra.mxu0 %v2173
        %v2398 = vpop.f32.mrf.mxu0
        %v2399 = vadd.f32 %v2370, %v2398
        %v2400 = vpop.f32.mrf.mxu0
        %v2401 = vadd.f32 %v2372, %v2400
        %2402 = vmatmul.bf16.gmra.mxu0 %v2176
        %v2403 = vpop.f32.mrf.mxu0
        %v2404 = vadd.f32 %v2375, %v2403
        %v2405 = vpop.f32.mrf.mxu0
        %v2406 = vadd.f32 %v2377, %v2405
        %2407 = vmatmul.bf16.gmra.mxu0 %v2179
        %v2408 = vpop.f32.mrf.mxu0
        %v2409 = vadd.f32 %v2380, %v2408
        %v2410 = vpop.f32.mrf.mxu0
        %v2411 = vadd.f32 %v2382, %v2410
        %2412 = vdwg.mxu0
        %2413 = vmatpush.bf16.msra.mxu0 %v2084
        %2414 = vmatpush.bf16.msra.mxu0 %v2076
        %2415 = vmatpush.bf16.msra.mxu0 %v2068
        %2416 = vmatpush.bf16.msra.mxu0 %v2060
        %2417 = vmatpush.bf16.msra.mxu0 %v2052
        %2418 = vmatpush.bf16.msra.mxu0 %v2044
        %2419 = vmatpush.bf16.msra.mxu0 %v2036
        %2420 = vmatpush.bf16.msra.mxu0 %v2028
        %2421 = vmatmul.bf16.gmra.mxu0 %v1728
        %v2422 = vpop.f32.mrf.mxu0
        %v2423 = vadd.f32 0.0, %v2422
        %v2424 = vpop.f32.mrf.mxu0
        %v2425 = vadd.f32 0.0, %v2424
        %2426 = vmatmul.bf16.gmra.mxu0 %v1730
        %v2427 = vpop.f32.mrf.mxu0
        %v2428 = vadd.f32 0.0, %v2427
        %v2429 = vpop.f32.mrf.mxu0
        %v2430 = vadd.f32 0.0, %v2429
        %2431 = vmatmul.bf16.gmra.mxu0 %v1732
        %v2432 = vpop.f32.mrf.mxu0
        %v2433 = vadd.f32 0.0, %v2432
        %v2434 = vpop.f32.mrf.mxu0
        %v2435 = vadd.f32 0.0, %v2434
        %2436 = vmatmul.bf16.gmra.mxu0 %v1734
        %v2437 = vpop.f32.mrf.mxu0
        %v2438 = vadd.f32 0.0, %v2437
        %v2439 = vpop.f32.mrf.mxu0
        %v2440 = vadd.f32 0.0, %v2439
        %2441 = vdwg.mxu0
        %2442 = vmatpush.bf16.msra.mxu0 0
        %2443 = vmatpush.bf16.msra.mxu0 0
        %2444 = vmatpush.bf16.msra.mxu0 0
        %2445 = vmatpush.bf16.msra.mxu0 0
        %2446 = vmatpush.bf16.msra.mxu0 0
        %2447 = vmatpush.bf16.msra.mxu0 0
        %2448 = vmatpush.bf16.msra.mxu0 0
        %2449 = vmatpush.bf16.msra.mxu0 %v2092
        %2450 = vmatmul.bf16.gmra.mxu0 %v2170
        %v2451 = vpop.f32.mrf.mxu0
        %v2452 = vadd.f32 %v2423, %v2451
        %v2453 = vpop.f32.mrf.mxu0
        %v2454 = vadd.f32 %v2425, %v2453
        %2455 = vmatmul.bf16.gmra.mxu0 %v2173
        %v2456 = vpop.f32.mrf.mxu0
        %v2457 = vadd.f32 %v2428, %v2456
        %v2458 = vpop.f32.mrf.mxu0
        %v2459 = vadd.f32 %v2430, %v2458
        %2460 = vmatmul.bf16.gmra.mxu0 %v2176
        %v2461 = vpop.f32.mrf.mxu0
        %v2462 = vadd.f32 %v2433, %v2461
        %v2463 = vpop.f32.mrf.mxu0
        %v2464 = vadd.f32 %v2435, %v2463
        %2465 = vmatmul.bf16.gmra.mxu0 %v2179
        %v2466 = vpop.f32.mrf.mxu0
        %v2467 = vadd.f32 %v2438, %v2466
        %v2468 = vpop.f32.mrf.mxu0
        %v2469 = vadd.f32 %v2440, %v2468
        %2470 = vdwg.mxu0
        %2471 = vmatpush.bf16.msra.mxu0 %v2085
        %2472 = vmatpush.bf16.msra.mxu0 %v2077
        %2473 = vmatpush.bf16.msra.mxu0 %v2069
        %2474 = vmatpush.bf16.msra.mxu0 %v2061
        %2475 = vmatpush.bf16.msra.mxu0 %v2053
        %2476 = vmatpush.bf16.msra.mxu0 %v2045
        %2477 = vmatpush.bf16.msra.mxu0 %v2037
        %2478 = vmatpush.bf16.msra.mxu0 %v2029
        %2479 = vmatmul.bf16.gmra.mxu0 %v1728
        %v2480 = vpop.f32.mrf.mxu0
        %v2481 = vadd.f32 0.0, %v2480
        %v2482 = vpop.f32.mrf.mxu0
        %v2483 = vadd.f32 0.0, %v2482
        %2484 = vmatmul.bf16.gmra.mxu0 %v1730
        %v2485 = vpop.f32.mrf.mxu0
        %v2486 = vadd.f32 0.0, %v2485
        %v2487 = vpop.f32.mrf.mxu0
        %v2488 = vadd.f32 0.0, %v2487
        %2489 = vmatmul.bf16.gmra.mxu0 %v1732
        %v2490 = vpop.f32.mrf.mxu0
        %v2491 = vadd.f32 0.0, %v2490
        %v2492 = vpop.f32.mrf.mxu0
        %v2493 = vadd.f32 0.0, %v2492
        %2494 = vmatmul.bf16.gmra.mxu0 %v1734
        %v2495 = vpop.f32.mrf.mxu0
        %v2496 = vadd.f32 0.0, %v2495
        %v2497 = vpop.f32.mrf.mxu0
        %v2498 = vadd.f32 0.0, %v2497
        %2499 = vdwg.mxu0
        %2500 = vmatpush.bf16.msra.mxu0 0
        %2501 = vmatpush.bf16.msra.mxu0 0
        %2502 = vmatpush.bf16.msra.mxu0 0
        %2503 = vmatpush.bf16.msra.mxu0 0
        %2504 = vmatpush.bf16.msra.mxu0 0
        %2505 = vmatpush.bf16.msra.mxu0 0
        %2506 = vmatpush.bf16.msra.mxu0 0
        %2507 = vmatpush.bf16.msra.mxu0 %v2093
        %2508 = vmatmul.bf16.gmra.mxu0 %v2170
        %v2509 = vpop.f32.mrf.mxu0
        %v2510 = vadd.f32 %v2481, %v2509
        %v2511 = vpop.f32.mrf.mxu0
        %v2512 = vadd.f32 %v2483, %v2511
        %2513 = vmatmul.bf16.gmra.mxu0 %v2173
        %v2514 = vpop.f32.mrf.mxu0
        %v2515 = vadd.f32 %v2486, %v2514
        %v2516 = vpop.f32.mrf.mxu0
        %v2517 = vadd.f32 %v2488, %v2516
        %2518 = vmatmul.bf16.gmra.mxu0 %v2176
        %v2519 = vpop.f32.mrf.mxu0
        %v2520 = vadd.f32 %v2491, %v2519
        %v2521 = vpop.f32.mrf.mxu0
        %v2522 = vadd.f32 %v2493, %v2521
        %2523 = vmatmul.bf16.gmra.mxu0 %v2179
        %v2524 = vpop.f32.mrf.mxu0
        %v2525 = vadd.f32 %v2496, %v2524
        %v2526 = vpop.f32.mrf.mxu0
        %v2527 = vadd.f32 %v2498, %v2526
        %2528 = vdwg.mxu0
        %2529 = vmatpush.bf16.msra.mxu0 %v2086
        %2530 = vmatpush.bf16.msra.mxu0 %v2078
        %2531 = vmatpush.bf16.msra.mxu0 %v2070
        %2532 = vmatpush.bf16.msra.mxu0 %v2062
        %2533 = vmatpush.bf16.msra.mxu0 %v2054
        %2534 = vmatpush.bf16.msra.mxu0 %v2046
        %2535 = vmatpush.bf16.msra.mxu0 %v2038
        %2536 = vmatpush.bf16.msra.mxu0 %v2030
        %2537 = vmatmul.bf16.gmra.mxu0 %v1728
        %v2538 = vpop.f32.mrf.mxu0
        %v2539 = vadd.f32 0.0, %v2538
        %v2540 = vpop.f32.mrf.mxu0
        %v2541 = vadd.f32 0.0, %v2540
        %2542 = vmatmul.bf16.gmra.mxu0 %v1730
        %v2543 = vpop.f32.mrf.mxu0
        %v2544 = vadd.f32 0.0, %v2543
        %v2545 = vpop.f32.mrf.mxu0
        %v2546 = vadd.f32 0.0, %v2545
        %2547 = vmatmul.bf16.gmra.mxu0 %v1732
        %v2548 = vpop.f32.mrf.mxu0
        %v2549 = vadd.f32 0.0, %v2548
        %v2550 = vpop.f32.mrf.mxu0
        %v2551 = vadd.f32 0.0, %v2550
        %2552 = vmatmul.bf16.gmra.mxu0 %v1734
        %v2553 = vpop.f32.mrf.mxu0
        %v2554 = vadd.f32 0.0, %v2553
        %v2555 = vpop.f32.mrf.mxu0
        %v2556 = vadd.f32 0.0, %v2555
        %2557 = vdwg.mxu0
        %2558 = vmatpush.bf16.msra.mxu0 0
        %2559 = vmatpush.bf16.msra.mxu0 0
        %2560 = vmatpush.bf16.msra.mxu0 0
        %2561 = vmatpush.bf16.msra.mxu0 0
        %2562 = vmatpush.bf16.msra.mxu0 0
        %2563 = vmatpush.bf16.msra.mxu0 0
        %2564 = vmatpush.bf16.msra.mxu0 0
        %2565 = vmatpush.bf16.msra.mxu0 %v2094
        %2566 = vmatmul.bf16.gmra.mxu0 %v2170
        %v2567 = vpop.f32.mrf.mxu0
        %v2568 = vadd.f32 %v2539, %v2567
        %v2569 = vpop.f32.mrf.mxu0
        %v2570 = vadd.f32 %v2541, %v2569
        %2571 = vmatmul.bf16.gmra.mxu0 %v2173
        %v2572 = vpop.f32.mrf.mxu0
        %v2573 = vadd.f32 %v2544, %v2572
        %v2574 = vpop.f32.mrf.mxu0
        %v2575 = vadd.f32 %v2546, %v2574
        %2576 = vmatmul.bf16.gmra.mxu0 %v2176
        %v2577 = vpop.f32.mrf.mxu0
        %v2578 = vadd.f32 %v2549, %v2577
        %v2579 = vpop.f32.mrf.mxu0
        %v2580 = vadd.f32 %v2551, %v2579
        %2581 = vmatmul.bf16.gmra.mxu0 %v2179
        %v2582 = vpop.f32.mrf.mxu0
        %v2583 = vadd.f32 %v2554, %v2582
        %v2584 = vpop.f32.mrf.mxu0
        %v2585 = vadd.f32 %v2556, %v2584
        %2586 = vdwg.mxu0
        %2587 = vmatpush.bf16.msra.mxu0 %v2087
        %2588 = vmatpush.bf16.msra.mxu0 %v2079
        %2589 = vmatpush.bf16.msra.mxu0 %v2071
        %2590 = vmatpush.bf16.msra.mxu0 %v2063
        %2591 = vmatpush.bf16.msra.mxu0 %v2055
        %2592 = vmatpush.bf16.msra.mxu0 %v2047
        %2593 = vmatpush.bf16.msra.mxu0 %v2039
        %2594 = vmatpush.bf16.msra.mxu0 %v2031
        %2595 = vmatmul.bf16.gmra.mxu0 %v1728
        %v2596 = vpop.f32.mrf.mxu0
        %v2597 = vadd.f32 0.0, %v2596
        %v2598 = vpop.f32.mrf.mxu0
        %v2599 = vadd.f32 0.0, %v2598
        %2600 = vmatmul.bf16.gmra.mxu0 %v1730
        %v2601 = vpop.f32.mrf.mxu0
        %v2602 = vadd.f32 0.0, %v2601
        %v2603 = vpop.f32.mrf.mxu0
        %v2604 = vadd.f32 0.0, %v2603
        %2605 = vmatmul.bf16.gmra.mxu0 %v1732
        %v2606 = vpop.f32.mrf.mxu0
        %v2607 = vadd.f32 0.0, %v2606
        %v2608 = vpop.f32.mrf.mxu0
        %v2609 = vadd.f32 0.0, %v2608
        %2610 = vmatmul.bf16.gmra.mxu0 %v1734
        %v2611 = vpop.f32.mrf.mxu0
        %v2612 = vadd.f32 0.0, %v2611
        %v2613 = vpop.f32.mrf.mxu0
        %v2614 = vadd.f32 0.0, %v2613
        %2615 = vdwg.mxu0
        %2616 = vmatpush.bf16.msra.mxu0 0
        %2617 = vmatpush.bf16.msra.mxu0 0
        %2618 = vmatpush.bf16.msra.mxu0 0
        %2619 = vmatpush.bf16.msra.mxu0 0
        %2620 = vmatpush.bf16.msra.mxu0 0
        %2621 = vmatpush.bf16.msra.mxu0 0
        %2622 = vmatpush.bf16.msra.mxu0 0
        %2623 = vmatpush.bf16.msra.mxu0 %v2095
        %2624 = vmatmul.bf16.gmra.mxu0 %v2170
        %v2625 = vpop.f32.mrf.mxu0
        %v2626 = vadd.f32 %v2597, %v2625
        %v2627 = vpop.f32.mrf.mxu0
        %v2628 = vadd.f32 %v2599, %v2627
        %2629 = vmatmul.bf16.gmra.mxu0 %v2173
        %v2630 = vpop.f32.mrf.mxu0
        %v2631 = vadd.f32 %v2602, %v2630
        %v2632 = vpop.f32.mrf.mxu0
        %v2633 = vadd.f32 %v2604, %v2632
        %2634 = vmatmul.bf16.gmra.mxu0 %v2176
        %v2635 = vpop.f32.mrf.mxu0
        %v2636 = vadd.f32 %v2607, %v2635
        %v2637 = vpop.f32.mrf.mxu0
        %v2638 = vadd.f32 %v2609, %v2637
        %2639 = vmatmul.bf16.gmra.mxu0 %v2179
        %v2640 = vpop.f32.mrf.mxu0
        %v2641 = vadd.f32 %v2612, %v2640
        %v2642 = vpop.f32.mrf.mxu0
        %v2643 = vadd.f32 %v2614, %v2642
        %2644 = vdwg.mxu0
        %vm2645 = vcmp.gt.f32.partialorder %v543, 0.0
        %vm2646 = vcmp.gt.f32.partialorder %v572, 0.0
        %vm2647 = vcmp.gt.f32.partialorder %v601, 0.0
        %vm2648 = vcmp.gt.f32.partialorder %v630, 0.0
        %vm2649 = vcmp.gt.f32.partialorder %v659, 0.0
        %vm2650 = vcmp.gt.f32.partialorder %v688, 0.0
        %vm2651 = vcmp.gt.f32.partialorder %v717, 0.0
        %vm2652 = vcmp.gt.f32.partialorder %v746, 0.0
        %vm2653 = vcmp.gt.f32.partialorder %v545, 0.0
        %vm2654 = vcmp.gt.f32.partialorder %v574, 0.0
        %vm2655 = vcmp.gt.f32.partialorder %v603, 0.0
        %vm2656 = vcmp.gt.f32.partialorder %v632, 0.0
        %vm2657 = vcmp.gt.f32.partialorder %v661, 0.0
        %vm2658 = vcmp.gt.f32.partialorder %v690, 0.0
        %vm2659 = vcmp.gt.f32.partialorder %v719, 0.0
        %vm2660 = vcmp.gt.f32.partialorder %v748, 0.0
        %vm2661 = vcmp.gt.f32.partialorder %v548, 0.0
        %vm2662 = vcmp.gt.f32.partialorder %v577, 0.0
        %vm2663 = vcmp.gt.f32.partialorder %v606, 0.0
        %vm2664 = vcmp.gt.f32.partialorder %v635, 0.0
        %vm2665 = vcmp.gt.f32.partialorder %v664, 0.0
        %vm2666 = vcmp.gt.f32.partialorder %v693, 0.0
        %vm2667 = vcmp.gt.f32.partialorder %v722, 0.0
        %vm2668 = vcmp.gt.f32.partialorder %v751, 0.0
        %vm2669 = vcmp.gt.f32.partialorder %v550, 0.0
        %vm2670 = vcmp.gt.f32.partialorder %v579, 0.0
        %vm2671 = vcmp.gt.f32.partialorder %v608, 0.0
        %vm2672 = vcmp.gt.f32.partialorder %v637, 0.0
        %vm2673 = vcmp.gt.f32.partialorder %v666, 0.0
        %vm2674 = vcmp.gt.f32.partialorder %v695, 0.0
        %vm2675 = vcmp.gt.f32.partialorder %v724, 0.0
        %vm2676 = vcmp.gt.f32.partialorder %v753, 0.0
        %vm2677 = vcmp.gt.f32.partialorder %v553, 0.0
        %vm2678 = vcmp.gt.f32.partialorder %v582, 0.0
        %vm2679 = vcmp.gt.f32.partialorder %v611, 0.0
        %vm2680 = vcmp.gt.f32.partialorder %v640, 0.0
        %vm2681 = vcmp.gt.f32.partialorder %v669, 0.0
        %vm2682 = vcmp.gt.f32.partialorder %v698, 0.0
        %vm2683 = vcmp.gt.f32.partialorder %v727, 0.0
        %vm2684 = vcmp.gt.f32.partialorder %v756, 0.0
        %vm2685 = vcmp.gt.f32.partialorder %v555, 0.0
        %vm2686 = vcmp.gt.f32.partialorder %v584, 0.0
        %vm2687 = vcmp.gt.f32.partialorder %v613, 0.0
        %vm2688 = vcmp.gt.f32.partialorder %v642, 0.0
        %vm2689 = vcmp.gt.f32.partialorder %v671, 0.0
        %vm2690 = vcmp.gt.f32.partialorder %v700, 0.0
        %vm2691 = vcmp.gt.f32.partialorder %v729, 0.0
        %vm2692 = vcmp.gt.f32.partialorder %v758, 0.0
        %vm2693 = vcmp.gt.f32.partialorder %v558, 0.0
        %vm2694 = vcmp.gt.f32.partialorder %v587, 0.0
        %vm2695 = vcmp.gt.f32.partialorder %v616, 0.0
        %vm2696 = vcmp.gt.f32.partialorder %v645, 0.0
        %vm2697 = vcmp.gt.f32.partialorder %v674, 0.0
        %vm2698 = vcmp.gt.f32.partialorder %v703, 0.0
        %vm2699 = vcmp.gt.f32.partialorder %v732, 0.0
        %vm2700 = vcmp.gt.f32.partialorder %v761, 0.0
        %vm2701 = vcmp.gt.f32.partialorder %v560, 0.0
        %vm2702 = vcmp.gt.f32.partialorder %v589, 0.0
        %vm2703 = vcmp.gt.f32.partialorder %v618, 0.0
        %vm2704 = vcmp.gt.f32.partialorder %v647, 0.0
        %vm2705 = vcmp.gt.f32.partialorder %v676, 0.0
        %vm2706 = vcmp.gt.f32.partialorder %v705, 0.0
        %vm2707 = vcmp.gt.f32.partialorder %v734, 0.0
        %vm2708 = vcmp.gt.f32.partialorder %v763, 0.0
        %v2709 = vmul.f32 %v543, 0.01
        %v2710 = vmul.f32 %v572, 0.01
        %v2711 = vmul.f32 %v601, 0.01
        %v2712 = vmul.f32 %v630, 0.01
        %v2713 = vmul.f32 %v659, 0.01
        %v2714 = vmul.f32 %v688, 0.01
        %v2715 = vmul.f32 %v717, 0.01
        %v2716 = vmul.f32 %v746, 0.01
        %v2717 = vmul.f32 %v545, 0.01
        %v2718 = vmul.f32 %v574, 0.01
        %v2719 = vmul.f32 %v603, 0.01
        %v2720 = vmul.f32 %v632, 0.01
        %v2721 = vmul.f32 %v661, 0.01
        %v2722 = vmul.f32 %v690, 0.01
        %v2723 = vmul.f32 %v719, 0.01
        %v2724 = vmul.f32 %v748, 0.01
        %v2725 = vmul.f32 %v548, 0.01
        %v2726 = vmul.f32 %v577, 0.01
        %v2727 = vmul.f32 %v606, 0.01
        %v2728 = vmul.f32 %v635, 0.01
        %v2729 = vmul.f32 %v664, 0.01
        %v2730 = vmul.f32 %v693, 0.01
        %v2731 = vmul.f32 %v722, 0.01
        %v2732 = vmul.f32 %v751, 0.01
        %v2733 = vmul.f32 %v550, 0.01
        %v2734 = vmul.f32 %v579, 0.01
        %v2735 = vmul.f32 %v608, 0.01
        %v2736 = vmul.f32 %v637, 0.01
        %v2737 = vmul.f32 %v666, 0.01
        %v2738 = vmul.f32 %v695, 0.01
        %v2739 = vmul.f32 %v724, 0.01
        %v2740 = vmul.f32 %v753, 0.01
        %v2741 = vmul.f32 %v553, 0.01
        %v2742 = vmul.f32 %v582, 0.01
        %v2743 = vmul.f32 %v611, 0.01
        %v2744 = vmul.f32 %v640, 0.01
        %v2745 = vmul.f32 %v669, 0.01
        %v2746 = vmul.f32 %v698, 0.01
        %v2747 = vmul.f32 %v727, 0.01
        %v2748 = vmul.f32 %v756, 0.01
        %v2749 = vmul.f32 %v555, 0.01
        %v2750 = vmul.f32 %v584, 0.01
        %v2751 = vmul.f32 %v613, 0.01
        %v2752 = vmul.f32 %v642, 0.01
        %v2753 = vmul.f32 %v671, 0.01
        %v2754 = vmul.f32 %v700, 0.01
        %v2755 = vmul.f32 %v729, 0.01
        %v2756 = vmul.f32 %v758, 0.01
        %v2757 = vmul.f32 %v558, 0.01
        %v2758 = vmul.f32 %v587, 0.01
        %v2759 = vmul.f32 %v616, 0.01
        %v2760 = vmul.f32 %v645, 0.01
        %v2761 = vmul.f32 %v674, 0.01
        %v2762 = vmul.f32 %v703, 0.01
        %v2763 = vmul.f32 %v732, 0.01
        %v2764 = vmul.f32 %v761, 0.01
        %v2765 = vmul.f32 %v560, 0.01
        %v2766 = vmul.f32 %v589, 0.01
        %v2767 = vmul.f32 %v618, 0.01
        %v2768 = vmul.f32 %v647, 0.01
        %v2769 = vmul.f32 %v676, 0.01
        %v2770 = vmul.f32 %v705, 0.01
        %v2771 = vmul.f32 %v734, 0.01
        %v2772 = vmul.f32 %v763, 0.01
        %v2773 = vsel %vm2645, %v543, %v2709
        %v2774 = vsel %vm2646, %v572, %v2710
        %v2775 = vsel %vm2647, %v601, %v2711
        %v2776 = vsel %vm2648, %v630, %v2712
        %v2777 = vsel %vm2649, %v659, %v2713
        %v2778 = vsel %vm2650, %v688, %v2714
        %v2779 = vsel %vm2651, %v717, %v2715
        %v2780 = vsel %vm2652, %v746, %v2716
        %v2781 = vsel %vm2653, %v545, %v2717
        %v2782 = vsel %vm2654, %v574, %v2718
        %v2783 = vsel %vm2655, %v603, %v2719
        %v2784 = vsel %vm2656, %v632, %v2720
        %v2785 = vsel %vm2657, %v661, %v2721
        %v2786 = vsel %vm2658, %v690, %v2722
        %v2787 = vsel %vm2659, %v719, %v2723
        %v2788 = vsel %vm2660, %v748, %v2724
        %v2789 = vsel %vm2661, %v548, %v2725
        %v2790 = vsel %vm2662, %v577, %v2726
        %v2791 = vsel %vm2663, %v606, %v2727
        %v2792 = vsel %vm2664, %v635, %v2728
        %v2793 = vsel %vm2665, %v664, %v2729
        %v2794 = vsel %vm2666, %v693, %v2730
        %v2795 = vsel %vm2667, %v722, %v2731
        %v2796 = vsel %vm2668, %v751, %v2732
        %v2797 = vsel %vm2669, %v550, %v2733
        %v2798 = vsel %vm2670, %v579, %v2734
        %v2799 = vsel %vm2671, %v608, %v2735
        %v2800 = vsel %vm2672, %v637, %v2736
        %v2801 = vsel %vm2673, %v666, %v2737
        %v2802 = vsel %vm2674, %v695, %v2738
        %v2803 = vsel %vm2675, %v724, %v2739
        %v2804 = vsel %vm2676, %v753, %v2740
        %v2805 = vsel %vm2677, %v553, %v2741
        %v2806 = vsel %vm2678, %v582, %v2742
        %v2807 = vsel %vm2679, %v611, %v2743
        %v2808 = vsel %vm2680, %v640, %v2744
        %v2809 = vsel %vm2681, %v669, %v2745
        %v2810 = vsel %vm2682, %v698, %v2746
        %v2811 = vsel %vm2683, %v727, %v2747
        %v2812 = vsel %vm2684, %v756, %v2748
        %v2813 = vsel %vm2685, %v555, %v2749
        %v2814 = vsel %vm2686, %v584, %v2750
        %v2815 = vsel %vm2687, %v613, %v2751
        %v2816 = vsel %vm2688, %v642, %v2752
        %v2817 = vsel %vm2689, %v671, %v2753
        %v2818 = vsel %vm2690, %v700, %v2754
        %v2819 = vsel %vm2691, %v729, %v2755
        %v2820 = vsel %vm2692, %v758, %v2756
        %v2821 = vsel %vm2693, %v558, %v2757
        %v2822 = vsel %vm2694, %v587, %v2758
        %v2823 = vsel %vm2695, %v616, %v2759
        %v2824 = vsel %vm2696, %v645, %v2760
        %v2825 = vsel %vm2697, %v674, %v2761
        %v2826 = vsel %vm2698, %v703, %v2762
        %v2827 = vsel %vm2699, %v732, %v2763
        %v2828 = vsel %vm2700, %v761, %v2764
        %v2829 = vsel %vm2701, %v560, %v2765
        %v2830 = vsel %vm2702, %v589, %v2766
        %v2831 = vsel %vm2703, %v618, %v2767
        %v2832 = vsel %vm2704, %v647, %v2768
        %v2833 = vsel %vm2705, %v676, %v2769
        %v2834 = vsel %vm2706, %v705, %v2770
        %v2835 = vsel %vm2707, %v734, %v2771
        %v2836 = vsel %vm2708, %v763, %v2772
        %vm2837 = vcmp.gt.f32.partialorder %v2220, 0.0
        %vm2838 = vcmp.gt.f32.partialorder %v2278, 0.0
        %vm2839 = vcmp.gt.f32.partialorder %v2336, 0.0
        %vm2840 = vcmp.gt.f32.partialorder %v2394, 0.0
        %vm2841 = vcmp.gt.f32.partialorder %v2452, 0.0
        %vm2842 = vcmp.gt.f32.partialorder %v2510, 0.0
        %vm2843 = vcmp.gt.f32.partialorder %v2568, 0.0
        %vm2844 = vcmp.gt.f32.partialorder %v2626, 0.0
        %vm2845 = vcmp.gt.f32.partialorder %v2222, 0.0
        %vm2846 = vcmp.gt.f32.partialorder %v2280, 0.0
        %vm2847 = vcmp.gt.f32.partialorder %v2338, 0.0
        %vm2848 = vcmp.gt.f32.partialorder %v2396, 0.0
        %vm2849 = vcmp.gt.f32.partialorder %v2454, 0.0
        %vm2850 = vcmp.gt.f32.partialorder %v2512, 0.0
        %vm2851 = vcmp.gt.f32.partialorder %v2570, 0.0
        %vm2852 = vcmp.gt.f32.partialorder %v2628, 0.0
        %vm2853 = vcmp.gt.f32.partialorder %v2225, 0.0
        %vm2854 = vcmp.gt.f32.partialorder %v2283, 0.0
        %vm2855 = vcmp.gt.f32.partialorder %v2341, 0.0
        %vm2856 = vcmp.gt.f32.partialorder %v2399, 0.0
        %vm2857 = vcmp.gt.f32.partialorder %v2457, 0.0
        %vm2858 = vcmp.gt.f32.partialorder %v2515, 0.0
        %vm2859 = vcmp.gt.f32.partialorder %v2573, 0.0
        %vm2860 = vcmp.gt.f32.partialorder %v2631, 0.0
        %vm2861 = vcmp.gt.f32.partialorder %v2227, 0.0
        %vm2862 = vcmp.gt.f32.partialorder %v2285, 0.0
        %vm2863 = vcmp.gt.f32.partialorder %v2343, 0.0
        %vm2864 = vcmp.gt.f32.partialorder %v2401, 0.0
        %vm2865 = vcmp.gt.f32.partialorder %v2459, 0.0
        %vm2866 = vcmp.gt.f32.partialorder %v2517, 0.0
        %vm2867 = vcmp.gt.f32.partialorder %v2575, 0.0
        %vm2868 = vcmp.gt.f32.partialorder %v2633, 0.0
        %vm2869 = vcmp.gt.f32.partialorder %v2230, 0.0
        %vm2870 = vcmp.gt.f32.partialorder %v2288, 0.0
        %vm2871 = vcmp.gt.f32.partialorder %v2346, 0.0
        %vm2872 = vcmp.gt.f32.partialorder %v2404, 0.0
        %vm2873 = vcmp.gt.f32.partialorder %v2462, 0.0
        %vm2874 = vcmp.gt.f32.partialorder %v2520, 0.0
        %vm2875 = vcmp.gt.f32.partialorder %v2578, 0.0
        %vm2876 = vcmp.gt.f32.partialorder %v2636, 0.0
        %vm2877 = vcmp.gt.f32.partialorder %v2232, 0.0
        %vm2878 = vcmp.gt.f32.partialorder %v2290, 0.0
        %vm2879 = vcmp.gt.f32.partialorder %v2348, 0.0
        %vm2880 = vcmp.gt.f32.partialorder %v2406, 0.0
        %vm2881 = vcmp.gt.f32.partialorder %v2464, 0.0
        %vm2882 = vcmp.gt.f32.partialorder %v2522, 0.0
        %vm2883 = vcmp.gt.f32.partialorder %v2580, 0.0
        %vm2884 = vcmp.gt.f32.partialorder %v2638, 0.0
        %vm2885 = vcmp.gt.f32.partialorder %v2235, 0.0
        %vm2886 = vcmp.gt.f32.partialorder %v2293, 0.0
        %vm2887 = vcmp.gt.f32.partialorder %v2351, 0.0
        %vm2888 = vcmp.gt.f32.partialorder %v2409, 0.0
        %vm2889 = vcmp.gt.f32.partialorder %v2467, 0.0
        %vm2890 = vcmp.gt.f32.partialorder %v2525, 0.0
        %vm2891 = vcmp.gt.f32.partialorder %v2583, 0.0
        %vm2892 = vcmp.gt.f32.partialorder %v2641, 0.0
        %vm2893 = vcmp.gt.f32.partialorder %v2237, 0.0
        %vm2894 = vcmp.gt.f32.partialorder %v2295, 0.0
        %vm2895 = vcmp.gt.f32.partialorder %v2353, 0.0
        %vm2896 = vcmp.gt.f32.partialorder %v2411, 0.0
        %vm2897 = vcmp.gt.f32.partialorder %v2469, 0.0
        %vm2898 = vcmp.gt.f32.partialorder %v2527, 0.0
        %vm2899 = vcmp.gt.f32.partialorder %v2585, 0.0
        %vm2900 = vcmp.gt.f32.partialorder %v2643, 0.0
        %v2901 = vmul.f32 %v2220, 0.01
        %v2902 = vmul.f32 %v2278, 0.01
        %v2903 = vmul.f32 %v2336, 0.01
        %v2904 = vmul.f32 %v2394, 0.01
        %v2905 = vmul.f32 %v2452, 0.01
        %v2906 = vmul.f32 %v2510, 0.01
        %v2907 = vmul.f32 %v2568, 0.01
        %v2908 = vmul.f32 %v2626, 0.01
        %v2909 = vmul.f32 %v2222, 0.01
        %v2910 = vmul.f32 %v2280, 0.01
        %v2911 = vmul.f32 %v2338, 0.01
        %v2912 = vmul.f32 %v2396, 0.01
        %v2913 = vmul.f32 %v2454, 0.01
        %v2914 = vmul.f32 %v2512, 0.01
        %v2915 = vmul.f32 %v2570, 0.01
        %v2916 = vmul.f32 %v2628, 0.01
        %v2917 = vmul.f32 %v2225, 0.01
        %v2918 = vmul.f32 %v2283, 0.01
        %v2919 = vmul.f32 %v2341, 0.01
        %v2920 = vmul.f32 %v2399, 0.01
        %v2921 = vmul.f32 %v2457, 0.01
        %v2922 = vmul.f32 %v2515, 0.01
        %v2923 = vmul.f32 %v2573, 0.01
        %v2924 = vmul.f32 %v2631, 0.01
        %v2925 = vmul.f32 %v2227, 0.01
        %v2926 = vmul.f32 %v2285, 0.01
        %v2927 = vmul.f32 %v2343, 0.01
        %v2928 = vmul.f32 %v2401, 0.01
        %v2929 = vmul.f32 %v2459, 0.01
        %v2930 = vmul.f32 %v2517, 0.01
        %v2931 = vmul.f32 %v2575, 0.01
        %v2932 = vmul.f32 %v2633, 0.01
        %v2933 = vmul.f32 %v2230, 0.01
        %v2934 = vmul.f32 %v2288, 0.01
        %v2935 = vmul.f32 %v2346, 0.01
        %v2936 = vmul.f32 %v2404, 0.01
        %v2937 = vmul.f32 %v2462, 0.01
        %v2938 = vmul.f32 %v2520, 0.01
        %v2939 = vmul.f32 %v2578, 0.01
        %v2940 = vmul.f32 %v2636, 0.01
        %v2941 = vmul.f32 %v2232, 0.01
        %v2942 = vmul.f32 %v2290, 0.01
        %v2943 = vmul.f32 %v2348, 0.01
        %v2944 = vmul.f32 %v2406, 0.01
        %v2945 = vmul.f32 %v2464, 0.01
        %v2946 = vmul.f32 %v2522, 0.01
        %v2947 = vmul.f32 %v2580, 0.01
        %v2948 = vmul.f32 %v2638, 0.01
        %v2949 = vmul.f32 %v2235, 0.01
        %v2950 = vmul.f32 %v2293, 0.01
        %v2951 = vmul.f32 %v2351, 0.01
        %v2952 = vmul.f32 %v2409, 0.01
        %v2953 = vmul.f32 %v2467, 0.01
        %v2954 = vmul.f32 %v2525, 0.01
        %v2955 = vmul.f32 %v2583, 0.01
        %v2956 = vmul.f32 %v2641, 0.01
        %v2957 = vmul.f32 %v2237, 0.01
        %v2958 = vmul.f32 %v2295, 0.01
        %v2959 = vmul.f32 %v2353, 0.01
        %v2960 = vmul.f32 %v2411, 0.01
        %v2961 = vmul.f32 %v2469, 0.01
        %v2962 = vmul.f32 %v2527, 0.01
        %v2963 = vmul.f32 %v2585, 0.01
        %v2964 = vmul.f32 %v2643, 0.01
        %v2965 = vsel %vm2837, %v2220, %v2901
        %v2966 = vsel %vm2838, %v2278, %v2902
        %v2967 = vsel %vm2839, %v2336, %v2903
        %v2968 = vsel %vm2840, %v2394, %v2904
        %v2969 = vsel %vm2841, %v2452, %v2905
        %v2970 = vsel %vm2842, %v2510, %v2906
        %v2971 = vsel %vm2843, %v2568, %v2907
        %v2972 = vsel %vm2844, %v2626, %v2908
        %v2973 = vsel %vm2845, %v2222, %v2909
        %v2974 = vsel %vm2846, %v2280, %v2910
        %v2975 = vsel %vm2847, %v2338, %v2911
        %v2976 = vsel %vm2848, %v2396, %v2912
        %v2977 = vsel %vm2849, %v2454, %v2913
        %v2978 = vsel %vm2850, %v2512, %v2914
        %v2979 = vsel %vm2851, %v2570, %v2915
        %v2980 = vsel %vm2852, %v2628, %v2916
        %v2981 = vsel %vm2853, %v2225, %v2917
        %v2982 = vsel %vm2854, %v2283, %v2918
        %v2983 = vsel %vm2855, %v2341, %v2919
        %v2984 = vsel %vm2856, %v2399, %v2920
        %v2985 = vsel %vm2857, %v2457, %v2921
        %v2986 = vsel %vm2858, %v2515, %v2922
        %v2987 = vsel %vm2859, %v2573, %v2923
        %v2988 = vsel %vm2860, %v2631, %v2924
        %v2989 = vsel %vm2861, %v2227, %v2925
        %v2990 = vsel %vm2862, %v2285, %v2926
        %v2991 = vsel %vm2863, %v2343, %v2927
        %v2992 = vsel %vm2864, %v2401, %v2928
        %v2993 = vsel %vm2865, %v2459, %v2929
        %v2994 = vsel %vm2866, %v2517, %v2930
        %v2995 = vsel %vm2867, %v2575, %v2931
        %v2996 = vsel %vm2868, %v2633, %v2932
        %v2997 = vsel %vm2869, %v2230, %v2933
        %v2998 = vsel %vm2870, %v2288, %v2934
        %v2999 = vsel %vm2871, %v2346, %v2935
        %v3000 = vsel %vm2872, %v2404, %v2936
        %v3001 = vsel %vm2873, %v2462, %v2937
        %v3002 = vsel %vm2874, %v2520, %v2938
        %v3003 = vsel %vm2875, %v2578, %v2939
        %v3004 = vsel %vm2876, %v2636, %v2940
        %v3005 = vsel %vm2877, %v2232, %v2941
        %v3006 = vsel %vm2878, %v2290, %v2942
        %v3007 = vsel %vm2879, %v2348, %v2943
        %v3008 = vsel %vm2880, %v2406, %v2944
        %v3009 = vsel %vm2881, %v2464, %v2945
        %v3010 = vsel %vm2882, %v2522, %v2946
        %v3011 = vsel %vm2883, %v2580, %v2947
        %v3012 = vsel %vm2884, %v2638, %v2948
        %v3013 = vsel %vm2885, %v2235, %v2949
        %v3014 = vsel %vm2886, %v2293, %v2950
        %v3015 = vsel %vm2887, %v2351, %v2951
        %v3016 = vsel %vm2888, %v2409, %v2952
        %v3017 = vsel %vm2889, %v2467, %v2953
        %v3018 = vsel %vm2890, %v2525, %v2954
        %v3019 = vsel %vm2891, %v2583, %v2955
        %v3020 = vsel %vm2892, %v2641, %v2956
        %v3021 = vsel %vm2893, %v2237, %v2957
        %v3022 = vsel %vm2894, %v2295, %v2958
        %v3023 = vsel %vm2895, %v2353, %v2959
        %v3024 = vsel %vm2896, %v2411, %v2960
        %v3025 = vsel %vm2897, %v2469, %v2961
        %v3026 = vsel %vm2898, %v2527, %v2962
        %v3027 = vsel %vm2899, %v2585, %v2963
        %v3028 = vsel %vm2900, %v2643, %v2964
        %v3029 = vpack.c.bf16 %v2781, %v2773
        %v3030 = vpack.c.bf16 %v2782, %v2774
        %v3031 = vpack.c.bf16 %v2783, %v2775
        %v3032 = vpack.c.bf16 %v2784, %v2776
        %v3033 = vpack.c.bf16 %v2785, %v2777
        %v3034 = vpack.c.bf16 %v2786, %v2778
        %v3035 = vpack.c.bf16 %v2787, %v2779
        %v3036 = vpack.c.bf16 %v2788, %v2780
        %v3037 = vpack.c.bf16 %v2797, %v2789
        %v3038 = vpack.c.bf16 %v2798, %v2790
        %v3039 = vpack.c.bf16 %v2799, %v2791
        %v3040 = vpack.c.bf16 %v2800, %v2792
        %v3041 = vpack.c.bf16 %v2801, %v2793
        %v3042 = vpack.c.bf16 %v2802, %v2794
        %v3043 = vpack.c.bf16 %v2803, %v2795
        %v3044 = vpack.c.bf16 %v2804, %v2796
        %v3045 = vpack.c.bf16 %v2813, %v2805
        %v3046 = vpack.c.bf16 %v2814, %v2806
        %v3047 = vpack.c.bf16 %v2815, %v2807
        %v3048 = vpack.c.bf16 %v2816, %v2808
        %v3049 = vpack.c.bf16 %v2817, %v2809
        %v3050 = vpack.c.bf16 %v2818, %v2810
        %v3051 = vpack.c.bf16 %v2819, %v2811
        %v3052 = vpack.c.bf16 %v2820, %v2812
        %v3053 = vpack.c.bf16 %v2829, %v2821
        %v3054 = vpack.c.bf16 %v2830, %v2822
        %v3055 = vpack.c.bf16 %v2831, %v2823
        %v3056 = vpack.c.bf16 %v2832, %v2824
        %v3057 = vpack.c.bf16 %v2833, %v2825
        %v3058 = vpack.c.bf16 %v2834, %v2826
        %v3059 = vpack.c.bf16 %v2835, %v2827
        %v3060 = vpack.c.bf16 %v2836, %v2828
        %v3061 = vpack.c.bf16 %v2973, %v2965
        %v3062 = vpack.c.bf16 %v2974, %v2966
        %v3063 = vpack.c.bf16 %v2975, %v2967
        %v3064 = vpack.c.bf16 %v2976, %v2968
        %v3065 = vpack.c.bf16 %v2977, %v2969
        %v3066 = vpack.c.bf16 %v2978, %v2970
        %v3067 = vpack.c.bf16 %v2979, %v2971
        %v3068 = vpack.c.bf16 %v2980, %v2972
        %v3069 = vpack.c.bf16 %v2989, %v2981
        %v3070 = vpack.c.bf16 %v2990, %v2982
        %v3071 = vpack.c.bf16 %v2991, %v2983
        %v3072 = vpack.c.bf16 %v2992, %v2984
        %v3073 = vpack.c.bf16 %v2993, %v2985
        %v3074 = vpack.c.bf16 %v2994, %v2986
        %v3075 = vpack.c.bf16 %v2995, %v2987
        %v3076 = vpack.c.bf16 %v2996, %v2988
        %v3077 = vpack.c.bf16 %v3005, %v2997
        %v3078 = vpack.c.bf16 %v3006, %v2998
        %v3079 = vpack.c.bf16 %v3007, %v2999
        %v3080 = vpack.c.bf16 %v3008, %v3000
        %v3081 = vpack.c.bf16 %v3009, %v3001
        %v3082 = vpack.c.bf16 %v3010, %v3002
        %v3083 = vpack.c.bf16 %v3011, %v3003
        %v3084 = vpack.c.bf16 %v3012, %v3004
        %v3085 = vpack.c.bf16 %v3021, %v3013
        %v3086 = vpack.c.bf16 %v3022, %v3014
        %v3087 = vpack.c.bf16 %v3023, %v3015
        %v3088 = vpack.c.bf16 %v3024, %v3016
        %v3089 = vpack.c.bf16 %v3025, %v3017
        %v3090 = vpack.c.bf16 %v3026, %v3018
        %v3091 = vpack.c.bf16 %v3027, %v3019
        %v3092 = vpack.c.bf16 %v3028, %v3020
        %v3093 = vld [vmem:[%s5] sm:$0xf]
        %v3094 = vld [vmem:[%s5 + $0x4] sm:$0xf]
        %v3095 = vld [vmem:[%s5 + $0x8] sm:$0xf]
        %v3096 = vld [vmem:[%s5 + $0xc] sm:$0xf]
        %v3097 = vld [vmem:[%s5 + $0x10] sm:$0xf]
        %v3098 = vld [vmem:[%s5 + $0x14] sm:$0xf]
        %v3099 = vld [vmem:[%s5 + $0x18] sm:$0xf]
        %v3100 = vld [vmem:[%s5 + $0x1c] sm:$0xf]
        %v3109 = vunpack.c.l.b16 %v3093
        %v3110 = vunpack.c.l.b16 %v3094
        %v3111 = vunpack.c.l.b16 %v3095
        %v3112 = vunpack.c.l.b16 %v3096
        %v3113 = vunpack.c.l.b16 %v3097
        %v3114 = vunpack.c.l.b16 %v3098
        %v3115 = vunpack.c.l.b16 %v3099
        %v3116 = vunpack.c.l.b16 %v3100
        %v3117 = vpack.c.b16 %v3110, %v3109
        %v3118 = vpack.c.b16 %v3112, %v3111
        %v3119 = vpack.c.b16 %v3114, %v3113
        %v3120 = vpack.c.b16 %v3116, %v3115
        %3125 = vmatpush.bf16.msra.mxu0 %v3085
        %3126 = vmatpush.bf16.msra.mxu0 %v3077
        %3127 = vmatpush.bf16.msra.mxu0 %v3069
        %3128 = vmatpush.bf16.msra.mxu0 %v3061
        %3129 = vmatpush.bf16.msra.mxu0 %v3053
        %3130 = vmatpush.bf16.msra.mxu0 %v3045
        %3131 = vmatpush.bf16.msra.mxu0 %v3037
        %3132 = vmatpush.bf16.msra.mxu0 %v3029
        %3133 = vmatmul.bf16.gmra.mxu0 %v3117
        %v3134 = vpop.f32.mrf.mxu0
        %v3135 = vadd.f32 0.0, %v3134
        %v3136 = vpop.f32.mrf.mxu0
        %v3137 = vadd.f32 0.0, %v3136
        %3138 = vmatmul.bf16.gmra.mxu0 %v3118
        %v3139 = vpop.f32.mrf.mxu0
        %v3140 = vadd.f32 0.0, %v3139
        %v3141 = vpop.f32.mrf.mxu0
        %v3142 = vadd.f32 0.0, %v3141
        %3143 = vmatmul.bf16.gmra.mxu0 %v3119
        %v3144 = vpop.f32.mrf.mxu0
        %v3145 = vadd.f32 0.0, %v3144
        %v3146 = vpop.f32.mrf.mxu0
        %v3147 = vadd.f32 0.0, %v3146
        %3148 = vmatmul.bf16.gmra.mxu0 %v3120
        %v3149 = vpop.f32.mrf.mxu0
        %v3150 = vadd.f32 0.0, %v3149
        %v3151 = vpop.f32.mrf.mxu0
        %v3152 = vadd.f32 0.0, %v3151
        %3153 = vdwg.mxu0
        %3154 = vmatpush.bf16.msra.mxu0 %v3086
        %3155 = vmatpush.bf16.msra.mxu0 %v3078
        %3156 = vmatpush.bf16.msra.mxu0 %v3070
        %3157 = vmatpush.bf16.msra.mxu0 %v3062
        %3158 = vmatpush.bf16.msra.mxu0 %v3054
        %3159 = vmatpush.bf16.msra.mxu0 %v3046
        %3160 = vmatpush.bf16.msra.mxu0 %v3038
        %3161 = vmatpush.bf16.msra.mxu0 %v3030
        %3162 = vmatmul.bf16.gmra.mxu0 %v3117
        %v3163 = vpop.f32.mrf.mxu0
        %v3164 = vadd.f32 0.0, %v3163
        %v3165 = vpop.f32.mrf.mxu0
        %v3166 = vadd.f32 0.0, %v3165
        %3167 = vmatmul.bf16.gmra.mxu0 %v3118
        %v3168 = vpop.f32.mrf.mxu0
        %v3169 = vadd.f32 0.0, %v3168
        %v3170 = vpop.f32.mrf.mxu0
        %v3171 = vadd.f32 0.0, %v3170
        %3172 = vmatmul.bf16.gmra.mxu0 %v3119
        %v3173 = vpop.f32.mrf.mxu0
        %v3174 = vadd.f32 0.0, %v3173
        %v3175 = vpop.f32.mrf.mxu0
        %v3176 = vadd.f32 0.0, %v3175
        %3177 = vmatmul.bf16.gmra.mxu0 %v3120
        %v3178 = vpop.f32.mrf.mxu0
        %v3179 = vadd.f32 0.0, %v3178
        %v3180 = vpop.f32.mrf.mxu0
        %v3181 = vadd.f32 0.0, %v3180
        %3182 = vdwg.mxu0
        %3183 = vmatpush.bf16.msra.mxu0 %v3087
        %3184 = vmatpush.bf16.msra.mxu0 %v3079
        %3185 = vmatpush.bf16.msra.mxu0 %v3071
        %3186 = vmatpush.bf16.msra.mxu0 %v3063
        %3187 = vmatpush.bf16.msra.mxu0 %v3055
        %3188 = vmatpush.bf16.msra.mxu0 %v3047
        %3189 = vmatpush.bf16.msra.mxu0 %v3039
        %3190 = vmatpush.bf16.msra.mxu0 %v3031
        %3191 = vmatmul.bf16.gmra.mxu0 %v3117
        %v3192 = vpop.f32.mrf.mxu0
        %v3193 = vadd.f32 0.0, %v3192
        %v3194 = vpop.f32.mrf.mxu0
        %v3195 = vadd.f32 0.0, %v3194
        %3196 = vmatmul.bf16.gmra.mxu0 %v3118
        %v3197 = vpop.f32.mrf.mxu0
        %v3198 = vadd.f32 0.0, %v3197
        %v3199 = vpop.f32.mrf.mxu0
        %v3200 = vadd.f32 0.0, %v3199
        %3201 = vmatmul.bf16.gmra.mxu0 %v3119
        %v3202 = vpop.f32.mrf.mxu0
        %v3203 = vadd.f32 0.0, %v3202
        %v3204 = vpop.f32.mrf.mxu0
        %v3205 = vadd.f32 0.0, %v3204
        %3206 = vmatmul.bf16.gmra.mxu0 %v3120
        %v3207 = vpop.f32.mrf.mxu0
        %v3208 = vadd.f32 0.0, %v3207
        %v3209 = vpop.f32.mrf.mxu0
        %v3210 = vadd.f32 0.0, %v3209
        %3211 = vdwg.mxu0
        %3212 = vmatpush.bf16.msra.mxu0 %v3088
        %3213 = vmatpush.bf16.msra.mxu0 %v3080
        %3214 = vmatpush.bf16.msra.mxu0 %v3072
        %3215 = vmatpush.bf16.msra.mxu0 %v3064
        %3216 = vmatpush.bf16.msra.mxu0 %v3056
        %3217 = vmatpush.bf16.msra.mxu0 %v3048
        %3218 = vmatpush.bf16.msra.mxu0 %v3040
        %3219 = vmatpush.bf16.msra.mxu0 %v3032
        %3220 = vmatmul.bf16.gmra.mxu0 %v3117
        %v3221 = vpop.f32.mrf.mxu0
        %v3222 = vadd.f32 0.0, %v3221
        %v3223 = vpop.f32.mrf.mxu0
        %v3224 = vadd.f32 0.0, %v3223
        %3225 = vmatmul.bf16.gmra.mxu0 %v3118
        %v3226 = vpop.f32.mrf.mxu0
        %v3227 = vadd.f32 0.0, %v3226
        %v3228 = vpop.f32.mrf.mxu0
        %v3229 = vadd.f32 0.0, %v3228
        %3230 = vmatmul.bf16.gmra.mxu0 %v3119
        %v3231 = vpop.f32.mrf.mxu0
        %v3232 = vadd.f32 0.0, %v3231
        %v3233 = vpop.f32.mrf.mxu0
        %v3234 = vadd.f32 0.0, %v3233
        %3235 = vmatmul.bf16.gmra.mxu0 %v3120
        %v3236 = vpop.f32.mrf.mxu0
        %v3237 = vadd.f32 0.0, %v3236
        %v3238 = vpop.f32.mrf.mxu0
        %v3239 = vadd.f32 0.0, %v3238
        %3240 = vdwg.mxu0
        %3241 = vmatpush.bf16.msra.mxu0 %v3089
        %3242 = vmatpush.bf16.msra.mxu0 %v3081
        %3243 = vmatpush.bf16.msra.mxu0 %v3073
        %3244 = vmatpush.bf16.msra.mxu0 %v3065
        %3245 = vmatpush.bf16.msra.mxu0 %v3057
        %3246 = vmatpush.bf16.msra.mxu0 %v3049
        %3247 = vmatpush.bf16.msra.mxu0 %v3041
        %3248 = vmatpush.bf16.msra.mxu0 %v3033
        %3249 = vmatmul.bf16.gmra.mxu0 %v3117
        %v3250 = vpop.f32.mrf.mxu0
        %v3251 = vadd.f32 0.0, %v3250
        %v3252 = vpop.f32.mrf.mxu0
        %v3253 = vadd.f32 0.0, %v3252
        %3254 = vmatmul.bf16.gmra.mxu0 %v3118
        %v3255 = vpop.f32.mrf.mxu0
        %v3256 = vadd.f32 0.0, %v3255
        %v3257 = vpop.f32.mrf.mxu0
        %v3258 = vadd.f32 0.0, %v3257
        %3259 = vmatmul.bf16.gmra.mxu0 %v3119
        %v3260 = vpop.f32.mrf.mxu0
        %v3261 = vadd.f32 0.0, %v3260
        %v3262 = vpop.f32.mrf.mxu0
        %v3263 = vadd.f32 0.0, %v3262
        %3264 = vmatmul.bf16.gmra.mxu0 %v3120
        %v3265 = vpop.f32.mrf.mxu0
        %v3266 = vadd.f32 0.0, %v3265
        %v3267 = vpop.f32.mrf.mxu0
        %v3268 = vadd.f32 0.0, %v3267
        %3269 = vdwg.mxu0
        %3270 = vmatpush.bf16.msra.mxu0 %v3090
        %3271 = vmatpush.bf16.msra.mxu0 %v3082
        %3272 = vmatpush.bf16.msra.mxu0 %v3074
        %3273 = vmatpush.bf16.msra.mxu0 %v3066
        %3274 = vmatpush.bf16.msra.mxu0 %v3058
        %3275 = vmatpush.bf16.msra.mxu0 %v3050
        %3276 = vmatpush.bf16.msra.mxu0 %v3042
        %3277 = vmatpush.bf16.msra.mxu0 %v3034
        %3278 = vmatmul.bf16.gmra.mxu0 %v3117
        %v3279 = vpop.f32.mrf.mxu0
        %v3280 = vadd.f32 0.0, %v3279
        %v3281 = vpop.f32.mrf.mxu0
        %v3282 = vadd.f32 0.0, %v3281
        %3283 = vmatmul.bf16.gmra.mxu0 %v3118
        %v3284 = vpop.f32.mrf.mxu0
        %v3285 = vadd.f32 0.0, %v3284
        %v3286 = vpop.f32.mrf.mxu0
        %v3287 = vadd.f32 0.0, %v3286
        %3288 = vmatmul.bf16.gmra.mxu0 %v3119
        %v3289 = vpop.f32.mrf.mxu0
        %v3290 = vadd.f32 0.0, %v3289
        %v3291 = vpop.f32.mrf.mxu0
        %v3292 = vadd.f32 0.0, %v3291
        %3293 = vmatmul.bf16.gmra.mxu0 %v3120
        %v3294 = vpop.f32.mrf.mxu0
        %v3295 = vadd.f32 0.0, %v3294
        %v3296 = vpop.f32.mrf.mxu0
        %v3297 = vadd.f32 0.0, %v3296
        %3298 = vdwg.mxu0
        %3299 = vmatpush.bf16.msra.mxu0 %v3091
        %3300 = vmatpush.bf16.msra.mxu0 %v3083
        %3301 = vmatpush.bf16.msra.mxu0 %v3075
        %3302 = vmatpush.bf16.msra.mxu0 %v3067
        %3303 = vmatpush.bf16.msra.mxu0 %v3059
        %3304 = vmatpush.bf16.msra.mxu0 %v3051
        %3305 = vmatpush.bf16.msra.mxu0 %v3043
        %3306 = vmatpush.bf16.msra.mxu0 %v3035
        %3307 = vmatmul.bf16.gmra.mxu0 %v3117
        %v3308 = vpop.f32.mrf.mxu0
        %v3309 = vadd.f32 0.0, %v3308
        %v3310 = vpop.f32.mrf.mxu0
        %v3311 = vadd.f32 0.0, %v3310
        %3312 = vmatmul.bf16.gmra.mxu0 %v3118
        %v3313 = vpop.f32.mrf.mxu0
        %v3314 = vadd.f32 0.0, %v3313
        %v3315 = vpop.f32.mrf.mxu0
        %v3316 = vadd.f32 0.0, %v3315
        %3317 = vmatmul.bf16.gmra.mxu0 %v3119
        %v3318 = vpop.f32.mrf.mxu0
        %v3319 = vadd.f32 0.0, %v3318
        %v3320 = vpop.f32.mrf.mxu0
        %v3321 = vadd.f32 0.0, %v3320
        %3322 = vmatmul.bf16.gmra.mxu0 %v3120
        %v3323 = vpop.f32.mrf.mxu0
        %v3324 = vadd.f32 0.0, %v3323
        %v3325 = vpop.f32.mrf.mxu0
        %v3326 = vadd.f32 0.0, %v3325
        %3327 = vdwg.mxu0
        %3328 = vmatpush.bf16.msra.mxu0 %v3092
        %3329 = vmatpush.bf16.msra.mxu0 %v3084
        %3330 = vmatpush.bf16.msra.mxu0 %v3076
        %3331 = vmatpush.bf16.msra.mxu0 %v3068
        %3332 = vmatpush.bf16.msra.mxu0 %v3060
        %3333 = vmatpush.bf16.msra.mxu0 %v3052
        %3334 = vmatpush.bf16.msra.mxu0 %v3044
        %3335 = vmatpush.bf16.msra.mxu0 %v3036
        %3336 = vmatmul.bf16.gmra.mxu0 %v3117
        %v3337 = vpop.f32.mrf.mxu0
        %v3338 = vadd.f32 0.0, %v3337
        %v3339 = vpop.f32.mrf.mxu0
        %v3340 = vadd.f32 0.0, %v3339
        %3341 = vmatmul.bf16.gmra.mxu0 %v3118
        %v3342 = vpop.f32.mrf.mxu0
        %v3343 = vadd.f32 0.0, %v3342
        %v3344 = vpop.f32.mrf.mxu0
        %v3345 = vadd.f32 0.0, %v3344
        %3346 = vmatmul.bf16.gmra.mxu0 %v3119
        %v3347 = vpop.f32.mrf.mxu0
        %v3348 = vadd.f32 0.0, %v3347
        %v3349 = vpop.f32.mrf.mxu0
        %v3350 = vadd.f32 0.0, %v3349
        %3351 = vmatmul.bf16.gmra.mxu0 %v3120
        %v3352 = vpop.f32.mrf.mxu0
        %v3353 = vadd.f32 0.0, %v3352
        %v3354 = vpop.f32.mrf.mxu0
        %v3355 = vadd.f32 0.0, %v3354
        %3356 = vdwg.mxu0
        %v3357 = vld [vmem:[%s6] sm:$0xf]
        %v3358 = vld [vmem:[%s6 + $0x4] sm:$0xf]
        %v3359 = vld [vmem:[%s6 + $0x8] sm:$0xf]
        %v3360 = vld [vmem:[%s6 + $0xc] sm:$0xf]
        %vm3361 = vcmp.gt.f32.partialorder %v3135, 0.0
        %vm3362 = vcmp.gt.f32.partialorder %v3164, 0.0
        %vm3363 = vcmp.gt.f32.partialorder %v3193, 0.0
        %vm3364 = vcmp.gt.f32.partialorder %v3222, 0.0
        %vm3365 = vcmp.gt.f32.partialorder %v3251, 0.0
        %vm3366 = vcmp.gt.f32.partialorder %v3280, 0.0
        %vm3367 = vcmp.gt.f32.partialorder %v3309, 0.0
        %vm3368 = vcmp.gt.f32.partialorder %v3338, 0.0
        %vm3369 = vcmp.gt.f32.partialorder %v3137, 0.0
        %vm3370 = vcmp.gt.f32.partialorder %v3166, 0.0
        %vm3371 = vcmp.gt.f32.partialorder %v3195, 0.0
        %vm3372 = vcmp.gt.f32.partialorder %v3224, 0.0
        %vm3373 = vcmp.gt.f32.partialorder %v3253, 0.0
        %vm3374 = vcmp.gt.f32.partialorder %v3282, 0.0
        %vm3375 = vcmp.gt.f32.partialorder %v3311, 0.0
        %vm3376 = vcmp.gt.f32.partialorder %v3340, 0.0
        %vm3377 = vcmp.gt.f32.partialorder %v3140, 0.0
        %vm3378 = vcmp.gt.f32.partialorder %v3169, 0.0
        %vm3379 = vcmp.gt.f32.partialorder %v3198, 0.0
        %vm3380 = vcmp.gt.f32.partialorder %v3227, 0.0
        %vm3381 = vcmp.gt.f32.partialorder %v3256, 0.0
        %vm3382 = vcmp.gt.f32.partialorder %v3285, 0.0
        %vm3383 = vcmp.gt.f32.partialorder %v3314, 0.0
        %vm3384 = vcmp.gt.f32.partialorder %v3343, 0.0
        %vm3385 = vcmp.gt.f32.partialorder %v3142, 0.0
        %vm3386 = vcmp.gt.f32.partialorder %v3171, 0.0
        %vm3387 = vcmp.gt.f32.partialorder %v3200, 0.0
        %vm3388 = vcmp.gt.f32.partialorder %v3229, 0.0
        %vm3389 = vcmp.gt.f32.partialorder %v3258, 0.0
        %vm3390 = vcmp.gt.f32.partialorder %v3287, 0.0
        %vm3391 = vcmp.gt.f32.partialorder %v3316, 0.0
        %vm3392 = vcmp.gt.f32.partialorder %v3345, 0.0
        %vm3393 = vcmp.gt.f32.partialorder %v3145, 0.0
        %vm3394 = vcmp.gt.f32.partialorder %v3174, 0.0
        %vm3395 = vcmp.gt.f32.partialorder %v3203, 0.0
        %vm3396 = vcmp.gt.f32.partialorder %v3232, 0.0
        %vm3397 = vcmp.gt.f32.partialorder %v3261, 0.0
        %vm3398 = vcmp.gt.f32.partialorder %v3290, 0.0
        %vm3399 = vcmp.gt.f32.partialorder %v3319, 0.0
        %vm3400 = vcmp.gt.f32.partialorder %v3348, 0.0
        %vm3401 = vcmp.gt.f32.partialorder %v3147, 0.0
        %vm3402 = vcmp.gt.f32.partialorder %v3176, 0.0
        %vm3403 = vcmp.gt.f32.partialorder %v3205, 0.0
        %vm3404 = vcmp.gt.f32.partialorder %v3234, 0.0
        %vm3405 = vcmp.gt.f32.partialorder %v3263, 0.0
        %vm3406 = vcmp.gt.f32.partialorder %v3292, 0.0
        %vm3407 = vcmp.gt.f32.partialorder %v3321, 0.0
        %vm3408 = vcmp.gt.f32.partialorder %v3350, 0.0
        %vm3409 = vcmp.gt.f32.partialorder %v3150, 0.0
        %vm3410 = vcmp.gt.f32.partialorder %v3179, 0.0
        %vm3411 = vcmp.gt.f32.partialorder %v3208, 0.0
        %vm3412 = vcmp.gt.f32.partialorder %v3237, 0.0
        %vm3413 = vcmp.gt.f32.partialorder %v3266, 0.0
        %vm3414 = vcmp.gt.f32.partialorder %v3295, 0.0
        %vm3415 = vcmp.gt.f32.partialorder %v3324, 0.0
        %vm3416 = vcmp.gt.f32.partialorder %v3353, 0.0
        %vm3417 = vcmp.gt.f32.partialorder %v3152, 0.0
        %vm3418 = vcmp.gt.f32.partialorder %v3181, 0.0
        %vm3419 = vcmp.gt.f32.partialorder %v3210, 0.0
        %vm3420 = vcmp.gt.f32.partialorder %v3239, 0.0
        %vm3421 = vcmp.gt.f32.partialorder %v3268, 0.0
        %vm3422 = vcmp.gt.f32.partialorder %v3297, 0.0
        %vm3423 = vcmp.gt.f32.partialorder %v3326, 0.0
        %vm3424 = vcmp.gt.f32.partialorder %v3355, 0.0
        %v3425 = vmul.f32 %v3135, 0.01
        %v3426 = vmul.f32 %v3164, 0.01
        %v3427 = vmul.f32 %v3193, 0.01
        %v3428 = vmul.f32 %v3222, 0.01
        %v3429 = vmul.f32 %v3251, 0.01
        %v3430 = vmul.f32 %v3280, 0.01
        %v3431 = vmul.f32 %v3309, 0.01
        %v3432 = vmul.f32 %v3338, 0.01
        %v3433 = vmul.f32 %v3137, 0.01
        %v3434 = vmul.f32 %v3166, 0.01
        %v3435 = vmul.f32 %v3195, 0.01
        %v3436 = vmul.f32 %v3224, 0.01
        %v3437 = vmul.f32 %v3253, 0.01
        %v3438 = vmul.f32 %v3282, 0.01
        %v3439 = vmul.f32 %v3311, 0.01
        %v3440 = vmul.f32 %v3340, 0.01
        %v3441 = vmul.f32 %v3140, 0.01
        %v3442 = vmul.f32 %v3169, 0.01
        %v3443 = vmul.f32 %v3198, 0.01
        %v3444 = vmul.f32 %v3227, 0.01
        %v3445 = vmul.f32 %v3256, 0.01
        %v3446 = vmul.f32 %v3285, 0.01
        %v3447 = vmul.f32 %v3314, 0.01
        %v3448 = vmul.f32 %v3343, 0.01
        %v3449 = vmul.f32 %v3142, 0.01
        %v3450 = vmul.f32 %v3171, 0.01
        %v3451 = vmul.f32 %v3200, 0.01
        %v3452 = vmul.f32 %v3229, 0.01
        %v3453 = vmul.f32 %v3258, 0.01
        %v3454 = vmul.f32 %v3287, 0.01
        %v3455 = vmul.f32 %v3316, 0.01
        %v3456 = vmul.f32 %v3345, 0.01
        %v3457 = vmul.f32 %v3145, 0.01
        %v3458 = vmul.f32 %v3174, 0.01
        %v3459 = vmul.f32 %v3203, 0.01
        %v3460 = vmul.f32 %v3232, 0.01
        %v3461 = vmul.f32 %v3261, 0.01
        %v3462 = vmul.f32 %v3290, 0.01
        %v3463 = vmul.f32 %v3319, 0.01
        %v3464 = vmul.f32 %v3348, 0.01
        %v3465 = vmul.f32 %v3147, 0.01
        %v3466 = vmul.f32 %v3176, 0.01
        %v3467 = vmul.f32 %v3205, 0.01
        %v3468 = vmul.f32 %v3234, 0.01
        %v3469 = vmul.f32 %v3263, 0.01
        %v3470 = vmul.f32 %v3292, 0.01
        %v3471 = vmul.f32 %v3321, 0.01
        %v3472 = vmul.f32 %v3350, 0.01
        %v3473 = vmul.f32 %v3150, 0.01
        %v3474 = vmul.f32 %v3179, 0.01
        %v3475 = vmul.f32 %v3208, 0.01
        %v3476 = vmul.f32 %v3237, 0.01
        %v3477 = vmul.f32 %v3266, 0.01
        %v3478 = vmul.f32 %v3295, 0.01
        %v3479 = vmul.f32 %v3324, 0.01
        %v3480 = vmul.f32 %v3353, 0.01
        %v3481 = vmul.f32 %v3152, 0.01
        %v3482 = vmul.f32 %v3181, 0.01
        %v3483 = vmul.f32 %v3210, 0.01
        %v3484 = vmul.f32 %v3239, 0.01
        %v3485 = vmul.f32 %v3268, 0.01
        %v3486 = vmul.f32 %v3297, 0.01
        %v3487 = vmul.f32 %v3326, 0.01
        %v3488 = vmul.f32 %v3355, 0.01
        %v3489 = vsel %vm3361, %v3135, %v3425
        %v3490 = vsel %vm3362, %v3164, %v3426
        %v3491 = vsel %vm3363, %v3193, %v3427
        %v3492 = vsel %vm3364, %v3222, %v3428
        %v3493 = vsel %vm3365, %v3251, %v3429
        %v3494 = vsel %vm3366, %v3280, %v3430
        %v3495 = vsel %vm3367, %v3309, %v3431
        %v3496 = vsel %vm3368, %v3338, %v3432
        %v3497 = vsel %vm3369, %v3137, %v3433
        %v3498 = vsel %vm3370, %v3166, %v3434
        %v3499 = vsel %vm3371, %v3195, %v3435
        %v3500 = vsel %vm3372, %v3224, %v3436
        %v3501 = vsel %vm3373, %v3253, %v3437
        %v3502 = vsel %vm3374, %v3282, %v3438
        %v3503 = vsel %vm3375, %v3311, %v3439
        %v3504 = vsel %vm3376, %v3340, %v3440
        %v3505 = vsel %vm3377, %v3140, %v3441
        %v3506 = vsel %vm3378, %v3169, %v3442
        %v3507 = vsel %vm3379, %v3198, %v3443
        %v3508 = vsel %vm3380, %v3227, %v3444
        %v3509 = vsel %vm3381, %v3256, %v3445
        %v3510 = vsel %vm3382, %v3285, %v3446
        %v3511 = vsel %vm3383, %v3314, %v3447
        %v3512 = vsel %vm3384, %v3343, %v3448
        %v3513 = vsel %vm3385, %v3142, %v3449
        %v3514 = vsel %vm3386, %v3171, %v3450
        %v3515 = vsel %vm3387, %v3200, %v3451
        %v3516 = vsel %vm3388, %v3229, %v3452
        %v3517 = vsel %vm3389, %v3258, %v3453
        %v3518 = vsel %vm3390, %v3287, %v3454
        %v3519 = vsel %vm3391, %v3316, %v3455
        %v3520 = vsel %vm3392, %v3345, %v3456
        %v3521 = vsel %vm3393, %v3145, %v3457
        %v3522 = vsel %vm3394, %v3174, %v3458
        %v3523 = vsel %vm3395, %v3203, %v3459
        %v3524 = vsel %vm3396, %v3232, %v3460
        %v3525 = vsel %vm3397, %v3261, %v3461
        %v3526 = vsel %vm3398, %v3290, %v3462
        %v3527 = vsel %vm3399, %v3319, %v3463
        %v3528 = vsel %vm3400, %v3348, %v3464
        %v3529 = vsel %vm3401, %v3147, %v3465
        %v3530 = vsel %vm3402, %v3176, %v3466
        %v3531 = vsel %vm3403, %v3205, %v3467
        %v3532 = vsel %vm3404, %v3234, %v3468
        %v3533 = vsel %vm3405, %v3263, %v3469
        %v3534 = vsel %vm3406, %v3292, %v3470
        %v3535 = vsel %vm3407, %v3321, %v3471
        %v3536 = vsel %vm3408, %v3350, %v3472
        %v3537 = vsel %vm3409, %v3150, %v3473
        %v3538 = vsel %vm3410, %v3179, %v3474
        %v3539 = vsel %vm3411, %v3208, %v3475
        %v3540 = vsel %vm3412, %v3237, %v3476
        %v3541 = vsel %vm3413, %v3266, %v3477
        %v3542 = vsel %vm3414, %v3295, %v3478
        %v3543 = vsel %vm3415, %v3324, %v3479
        %v3544 = vsel %vm3416, %v3353, %v3480
        %v3545 = vsel %vm3417, %v3152, %v3481
        %v3546 = vsel %vm3418, %v3181, %v3482
        %v3547 = vsel %vm3419, %v3210, %v3483
        %v3548 = vsel %vm3420, %v3239, %v3484
        %v3549 = vsel %vm3421, %v3268, %v3485
        %v3550 = vsel %vm3422, %v3297, %v3486
        %v3551 = vsel %vm3423, %v3326, %v3487
        %v3552 = vsel %vm3424, %v3355, %v3488
        %v3553 = vpack.c.bf16 %v3497, %v3489
        %v3554 = vpack.c.bf16 %v3498, %v3490
        %v3555 = vpack.c.bf16 %v3499, %v3491
        %v3556 = vpack.c.bf16 %v3500, %v3492
        %v3557 = vpack.c.bf16 %v3501, %v3493
        %v3558 = vpack.c.bf16 %v3502, %v3494
        %v3559 = vpack.c.bf16 %v3503, %v3495
        %v3560 = vpack.c.bf16 %v3504, %v3496
        %v3561 = vpack.c.bf16 %v3513, %v3505
        %v3562 = vpack.c.bf16 %v3514, %v3506
        %v3563 = vpack.c.bf16 %v3515, %v3507
        %v3564 = vpack.c.bf16 %v3516, %v3508
        %v3565 = vpack.c.bf16 %v3517, %v3509
        %v3566 = vpack.c.bf16 %v3518, %v3510
        %v3567 = vpack.c.bf16 %v3519, %v3511
        %v3568 = vpack.c.bf16 %v3520, %v3512
        %v3569 = vpack.c.bf16 %v3529, %v3521
        %v3570 = vpack.c.bf16 %v3530, %v3522
        %v3571 = vpack.c.bf16 %v3531, %v3523
        %v3572 = vpack.c.bf16 %v3532, %v3524
        %v3573 = vpack.c.bf16 %v3533, %v3525
        %v3574 = vpack.c.bf16 %v3534, %v3526
        %v3575 = vpack.c.bf16 %v3535, %v3527
        %v3576 = vpack.c.bf16 %v3536, %v3528
        %v3577 = vpack.c.bf16 %v3545, %v3537
        %v3578 = vpack.c.bf16 %v3546, %v3538
        %v3579 = vpack.c.bf16 %v3547, %v3539
        %v3580 = vpack.c.bf16 %v3548, %v3540
        %v3581 = vpack.c.bf16 %v3549, %v3541
        %v3582 = vpack.c.bf16 %v3550, %v3542
        %v3583 = vpack.c.bf16 %v3551, %v3543
        %v3584 = vpack.c.bf16 %v3552, %v3544
        %v3589 = vunpack.c.l.b16 %v3357
        %v3590 = vunpack.c.l.b16 %v3358
        %v3591 = vunpack.c.l.b16 %v3359
        %v3592 = vunpack.c.l.b16 %v3360
        %v3593 = vpack.c.b16 %v3590, %v3589
        %v3594 = vpack.c.b16 %v3592, %v3591
        %vm3595 = vcmask 523264
        %v3597 = vsel %vm3595, %v3593, 0
        %v3600 = vsel %vm3595, %v3594, 0
        %3602 = vmatpush.bf16.msra.mxu0 0
        %3603 = vmatpush.bf16.msra.mxu0 0
        %3604 = vmatpush.bf16.msra.mxu0 0
        %3605 = vmatpush.bf16.msra.mxu0 0
        %3606 = vmatpush.bf16.msra.mxu0 %v3577
        %3607 = vmatpush.bf16.msra.mxu0 %v3569
        %3608 = vmatpush.bf16.msra.mxu0 %v3561
        %3609 = vmatpush.bf16.msra.mxu0 %v3553
        %3610 = vmatmul.bf16.gmra.mxu0 %v3597
        %v3611 = vpop.f32.mrf.mxu0
        %v3612 = vadd.f32 0.0, %v3611
        %v3613 = vpop.f32.mrf.mxu0
        %v3614 = vadd.f32 0.0, %v3613
        %3615 = vmatmul.bf16.gmra.mxu0 %v3600
        %v3616 = vpop.f32.mrf.mxu0
        %v3617 = vadd.f32 0.0, %v3616
        %v3618 = vpop.f32.mrf.mxu0
        %v3619 = vadd.f32 0.0, %v3618
        %3620 = vdwg.mxu0
        %3621 = vmatpush.bf16.msra.mxu0 0
        %3622 = vmatpush.bf16.msra.mxu0 0
        %3623 = vmatpush.bf16.msra.mxu0 0
        %3624 = vmatpush.bf16.msra.mxu0 0
        %3625 = vmatpush.bf16.msra.mxu0 %v3578
        %3626 = vmatpush.bf16.msra.mxu0 %v3570
        %3627 = vmatpush.bf16.msra.mxu0 %v3562
        %3628 = vmatpush.bf16.msra.mxu0 %v3554
        %3629 = vmatmul.bf16.gmra.mxu0 %v3597
        %v3630 = vpop.f32.mrf.mxu0
        %v3631 = vadd.f32 0.0, %v3630
        %v3632 = vpop.f32.mrf.mxu0
        %v3633 = vadd.f32 0.0, %v3632
        %3634 = vmatmul.bf16.gmra.mxu0 %v3600
        %v3635 = vpop.f32.mrf.mxu0
        %v3636 = vadd.f32 0.0, %v3635
        %v3637 = vpop.f32.mrf.mxu0
        %v3638 = vadd.f32 0.0, %v3637
        %3639 = vdwg.mxu0
        %3640 = vmatpush.bf16.msra.mxu0 0
        %3641 = vmatpush.bf16.msra.mxu0 0
        %3642 = vmatpush.bf16.msra.mxu0 0
        %3643 = vmatpush.bf16.msra.mxu0 0
        %3644 = vmatpush.bf16.msra.mxu0 %v3579
        %3645 = vmatpush.bf16.msra.mxu0 %v3571
        %3646 = vmatpush.bf16.msra.mxu0 %v3563
        %3647 = vmatpush.bf16.msra.mxu0 %v3555
        %3648 = vmatmul.bf16.gmra.mxu0 %v3597
        %v3649 = vpop.f32.mrf.mxu0
        %v3650 = vadd.f32 0.0, %v3649
        %v3651 = vpop.f32.mrf.mxu0
        %v3652 = vadd.f32 0.0, %v3651
        %3653 = vmatmul.bf16.gmra.mxu0 %v3600
        %v3654 = vpop.f32.mrf.mxu0
        %v3655 = vadd.f32 0.0, %v3654
        %v3656 = vpop.f32.mrf.mxu0
        %v3657 = vadd.f32 0.0, %v3656
        %3658 = vdwg.mxu0
        %3659 = vmatpush.bf16.msra.mxu0 0
        %3660 = vmatpush.bf16.msra.mxu0 0
        %3661 = vmatpush.bf16.msra.mxu0 0
        %3662 = vmatpush.bf16.msra.mxu0 0
        %3663 = vmatpush.bf16.msra.mxu0 %v3580
        %3664 = vmatpush.bf16.msra.mxu0 %v3572
        %3665 = vmatpush.bf16.msra.mxu0 %v3564
        %3666 = vmatpush.bf16.msra.mxu0 %v3556
        %3667 = vmatmul.bf16.gmra.mxu0 %v3597
        %v3668 = vpop.f32.mrf.mxu0
        %v3669 = vadd.f32 0.0, %v3668
        %v3670 = vpop.f32.mrf.mxu0
        %v3671 = vadd.f32 0.0, %v3670
        %3672 = vmatmul.bf16.gmra.mxu0 %v3600
        %v3673 = vpop.f32.mrf.mxu0
        %v3674 = vadd.f32 0.0, %v3673
        %v3675 = vpop.f32.mrf.mxu0
        %v3676 = vadd.f32 0.0, %v3675
        %3677 = vdwg.mxu0
        %3678 = vmatpush.bf16.msra.mxu0 0
        %3679 = vmatpush.bf16.msra.mxu0 0
        %3680 = vmatpush.bf16.msra.mxu0 0
        %3681 = vmatpush.bf16.msra.mxu0 0
        %3682 = vmatpush.bf16.msra.mxu0 %v3581
        %3683 = vmatpush.bf16.msra.mxu0 %v3573
        %3684 = vmatpush.bf16.msra.mxu0 %v3565
        %3685 = vmatpush.bf16.msra.mxu0 %v3557
        %3686 = vmatmul.bf16.gmra.mxu0 %v3597
        %v3687 = vpop.f32.mrf.mxu0
        %v3688 = vadd.f32 0.0, %v3687
        %v3689 = vpop.f32.mrf.mxu0
        %v3690 = vadd.f32 0.0, %v3689
        %3691 = vmatmul.bf16.gmra.mxu0 %v3600
        %v3692 = vpop.f32.mrf.mxu0
        %v3693 = vadd.f32 0.0, %v3692
        %v3694 = vpop.f32.mrf.mxu0
        %v3695 = vadd.f32 0.0, %v3694
        %3696 = vdwg.mxu0
        %3697 = vmatpush.bf16.msra.mxu0 0
        %3698 = vmatpush.bf16.msra.mxu0 0
        %3699 = vmatpush.bf16.msra.mxu0 0
        %3700 = vmatpush.bf16.msra.mxu0 0
        %3701 = vmatpush.bf16.msra.mxu0 %v3582
        %3702 = vmatpush.bf16.msra.mxu0 %v3574
        %3703 = vmatpush.bf16.msra.mxu0 %v3566
        %3704 = vmatpush.bf16.msra.mxu0 %v3558
        %3705 = vmatmul.bf16.gmra.mxu0 %v3597
        %v3706 = vpop.f32.mrf.mxu0
        %v3707 = vadd.f32 0.0, %v3706
        %v3708 = vpop.f32.mrf.mxu0
        %v3709 = vadd.f32 0.0, %v3708
        %3710 = vmatmul.bf16.gmra.mxu0 %v3600
        %v3711 = vpop.f32.mrf.mxu0
        %v3712 = vadd.f32 0.0, %v3711
        %v3713 = vpop.f32.mrf.mxu0
        %v3714 = vadd.f32 0.0, %v3713
        %3715 = vdwg.mxu0
        %3716 = vmatpush.bf16.msra.mxu0 0
        %3717 = vmatpush.bf16.msra.mxu0 0
        %3718 = vmatpush.bf16.msra.mxu0 0
        %3719 = vmatpush.bf16.msra.mxu0 0
        %3720 = vmatpush.bf16.msra.mxu0 %v3583
        %3721 = vmatpush.bf16.msra.mxu0 %v3575
        %3722 = vmatpush.bf16.msra.mxu0 %v3567
        %3723 = vmatpush.bf16.msra.mxu0 %v3559
        %3724 = vmatmul.bf16.gmra.mxu0 %v3597
        %v3725 = vpop.f32.mrf.mxu0
        %v3726 = vadd.f32 0.0, %v3725
        %v3727 = vpop.f32.mrf.mxu0
        %v3728 = vadd.f32 0.0, %v3727
        %3729 = vmatmul.bf16.gmra.mxu0 %v3600
        %v3730 = vpop.f32.mrf.mxu0
        %v3731 = vadd.f32 0.0, %v3730
        %v3732 = vpop.f32.mrf.mxu0
        %v3733 = vadd.f32 0.0, %v3732
        %3734 = vdwg.mxu0
        %3735 = vmatpush.bf16.msra.mxu0 0
        %3736 = vmatpush.bf16.msra.mxu0 0
        %3737 = vmatpush.bf16.msra.mxu0 0
        %3738 = vmatpush.bf16.msra.mxu0 0
        %3739 = vmatpush.bf16.msra.mxu0 %v3584
        %3740 = vmatpush.bf16.msra.mxu0 %v3576
        %3741 = vmatpush.bf16.msra.mxu0 %v3568
        %3742 = vmatpush.bf16.msra.mxu0 %v3560
        %3743 = vmatmul.bf16.gmra.mxu0 %v3597
        %v3744 = vpop.f32.mrf.mxu0
        %v3745 = vadd.f32 0.0, %v3744
        %v3746 = vpop.f32.mrf.mxu0
        %v3747 = vadd.f32 0.0, %v3746
        %3748 = vmatmul.bf16.gmra.mxu0 %v3600
        %v3749 = vpop.f32.mrf.mxu0
        %v3750 = vadd.f32 0.0, %v3749
        %v3751 = vpop.f32.mrf.mxu0
        %v3752 = vadd.f32 0.0, %v3751
        %3753 = vdwg.mxu0
        %v3754 = vld [vmem:[%s7] sm:$0xf]
        %v3755 = vld [vmem:[%s7 + $0x4] sm:$0xf]
        %v3756 = vld [vmem:[%s7 + $0x8] sm:$0xf]
        %v3757 = vld [vmem:[%s7 + $0xc] sm:$0xf]
        %vm3758 = vcmp.gt.f32.partialorder %v3612, 0.0
        %vm3759 = vcmp.gt.f32.partialorder %v3631, 0.0
        %vm3760 = vcmp.gt.f32.partialorder %v3650, 0.0
        %vm3761 = vcmp.gt.f32.partialorder %v3669, 0.0
        %vm3762 = vcmp.gt.f32.partialorder %v3688, 0.0
        %vm3763 = vcmp.gt.f32.partialorder %v3707, 0.0
        %vm3764 = vcmp.gt.f32.partialorder %v3726, 0.0
        %vm3765 = vcmp.gt.f32.partialorder %v3745, 0.0
        %vm3766 = vcmp.gt.f32.partialorder %v3614, 0.0
        %vm3767 = vcmp.gt.f32.partialorder %v3633, 0.0
        %vm3768 = vcmp.gt.f32.partialorder %v3652, 0.0
        %vm3769 = vcmp.gt.f32.partialorder %v3671, 0.0
        %vm3770 = vcmp.gt.f32.partialorder %v3690, 0.0
        %vm3771 = vcmp.gt.f32.partialorder %v3709, 0.0
        %vm3772 = vcmp.gt.f32.partialorder %v3728, 0.0
        %vm3773 = vcmp.gt.f32.partialorder %v3747, 0.0
        %vm3774 = vcmp.gt.f32.partialorder %v3617, 0.0
        %vm3775 = vcmp.gt.f32.partialorder %v3636, 0.0
        %vm3776 = vcmp.gt.f32.partialorder %v3655, 0.0
        %vm3777 = vcmp.gt.f32.partialorder %v3674, 0.0
        %vm3778 = vcmp.gt.f32.partialorder %v3693, 0.0
        %vm3779 = vcmp.gt.f32.partialorder %v3712, 0.0
        %vm3780 = vcmp.gt.f32.partialorder %v3731, 0.0
        %vm3781 = vcmp.gt.f32.partialorder %v3750, 0.0
        %vm3782 = vcmp.gt.f32.partialorder %v3619, 0.0
        %vm3783 = vcmp.gt.f32.partialorder %v3638, 0.0
        %vm3784 = vcmp.gt.f32.partialorder %v3657, 0.0
        %vm3785 = vcmp.gt.f32.partialorder %v3676, 0.0
        %vm3786 = vcmp.gt.f32.partialorder %v3695, 0.0
        %vm3787 = vcmp.gt.f32.partialorder %v3714, 0.0
        %vm3788 = vcmp.gt.f32.partialorder %v3733, 0.0
        %vm3789 = vcmp.gt.f32.partialorder %v3752, 0.0
        %v3790 = vmul.f32 %v3612, 0.01
        %v3791 = vmul.f32 %v3631, 0.01
        %v3792 = vmul.f32 %v3650, 0.01
        %v3793 = vmul.f32 %v3669, 0.01
        %v3794 = vmul.f32 %v3688, 0.01
        %v3795 = vmul.f32 %v3707, 0.01
        %v3796 = vmul.f32 %v3726, 0.01
        %v3797 = vmul.f32 %v3745, 0.01
        %v3798 = vmul.f32 %v3614, 0.01
        %v3799 = vmul.f32 %v3633, 0.01
        %v3800 = vmul.f32 %v3652, 0.01
        %v3801 = vmul.f32 %v3671, 0.01
        %v3802 = vmul.f32 %v3690, 0.01
        %v3803 = vmul.f32 %v3709, 0.01
        %v3804 = vmul.f32 %v3728, 0.01
        %v3805 = vmul.f32 %v3747, 0.01
        %v3806 = vmul.f32 %v3617, 0.01
        %v3807 = vmul.f32 %v3636, 0.01
        %v3808 = vmul.f32 %v3655, 0.01
        %v3809 = vmul.f32 %v3674, 0.01
        %v3810 = vmul.f32 %v3693, 0.01
        %v3811 = vmul.f32 %v3712, 0.01
        %v3812 = vmul.f32 %v3731, 0.01
        %v3813 = vmul.f32 %v3750, 0.01
        %v3814 = vmul.f32 %v3619, 0.01
        %v3815 = vmul.f32 %v3638, 0.01
        %v3816 = vmul.f32 %v3657, 0.01
        %v3817 = vmul.f32 %v3676, 0.01
        %v3818 = vmul.f32 %v3695, 0.01
        %v3819 = vmul.f32 %v3714, 0.01
        %v3820 = vmul.f32 %v3733, 0.01
        %v3821 = vmul.f32 %v3752, 0.01
        %v3822 = vsel %vm3758, %v3612, %v3790
        %v3823 = vsel %vm3759, %v3631, %v3791
        %v3824 = vsel %vm3760, %v3650, %v3792
        %v3825 = vsel %vm3761, %v3669, %v3793
        %v3826 = vsel %vm3762, %v3688, %v3794
        %v3827 = vsel %vm3763, %v3707, %v3795
        %v3828 = vsel %vm3764, %v3726, %v3796
        %v3829 = vsel %vm3765, %v3745, %v3797
        %v3830 = vsel %vm3766, %v3614, %v3798
        %v3831 = vsel %vm3767, %v3633, %v3799
        %v3832 = vsel %vm3768, %v3652, %v3800
        %v3833 = vsel %vm3769, %v3671, %v3801
        %v3834 = vsel %vm3770, %v3690, %v3802
        %v3835 = vsel %vm3771, %v3709, %v3803
        %v3836 = vsel %vm3772, %v3728, %v3804
        %v3837 = vsel %vm3773, %v3747, %v3805
        %v3838 = vsel %vm3774, %v3617, %v3806
        %v3839 = vsel %vm3775, %v3636, %v3807
        %v3840 = vsel %vm3776, %v3655, %v3808
        %v3841 = vsel %vm3777, %v3674, %v3809
        %v3842 = vsel %vm3778, %v3693, %v3810
        %v3843 = vsel %vm3779, %v3712, %v3811
        %v3844 = vsel %vm3780, %v3731, %v3812
        %v3845 = vsel %vm3781, %v3750, %v3813
        %v3846 = vsel %vm3782, %v3619, %v3814
        %v3847 = vsel %vm3783, %v3638, %v3815
        %v3848 = vsel %vm3784, %v3657, %v3816
        %v3849 = vsel %vm3785, %v3676, %v3817
        %v3850 = vsel %vm3786, %v3695, %v3818
        %v3851 = vsel %vm3787, %v3714, %v3819
        %v3852 = vsel %vm3788, %v3733, %v3820
        %v3853 = vsel %vm3789, %v3752, %v3821
        %v3854 = vpack.c.bf16 %v3830, %v3822
        %v3855 = vpack.c.bf16 %v3831, %v3823
        %v3856 = vpack.c.bf16 %v3832, %v3824
        %v3857 = vpack.c.bf16 %v3833, %v3825
        %v3858 = vpack.c.bf16 %v3834, %v3826
        %v3859 = vpack.c.bf16 %v3835, %v3827
        %v3860 = vpack.c.bf16 %v3836, %v3828
        %v3861 = vpack.c.bf16 %v3837, %v3829
        %v3862 = vpack.c.bf16 %v3846, %v3838
        %v3863 = vpack.c.bf16 %v3847, %v3839
        %v3864 = vpack.c.bf16 %v3848, %v3840
        %v3865 = vpack.c.bf16 %v3849, %v3841
        %v3866 = vpack.c.bf16 %v3850, %v3842
        %v3867 = vpack.c.bf16 %v3851, %v3843
        %v3868 = vpack.c.bf16 %v3852, %v3844
        %v3869 = vpack.c.bf16 %v3853, %v3845
        %v3874 = vunpack.c.l.b16 %v3754
        %v3875 = vunpack.c.l.b16 %v3755
        %v3876 = vunpack.c.l.b16 %v3756
        %v3877 = vunpack.c.l.b16 %v3757
        %v3878 = vpack.c.b16 %v3875, %v3874
        %v3879 = vpack.c.b16 %v3877, %v3876
        %vm3880 = vcmask 261120
        %v3882 = vsel %vm3880, %v3878, 0
        %v3885 = vsel %vm3880, %v3879, 0
        %3887 = vmatpush.bf16.msra.mxu0 0
        %3888 = vmatpush.bf16.msra.mxu0 0
        %3889 = vmatpush.bf16.msra.mxu0 0
        %3890 = vmatpush.bf16.msra.mxu0 0
        %3891 = vmatpush.bf16.msra.mxu0 0
        %3892 = vmatpush.bf16.msra.mxu0 0
        %3893 = vmatpush.bf16.msra.mxu0 %v3862
        %3894 = vmatpush.bf16.msra.mxu0 %v3854
        %3895 = vmatmul.bf16.gmra.mxu0 %v3882
        %v3896 = vpop.f32.mrf.mxu0
        %v3897 = vadd.f32 0.0, %v3896
        %v3898 = vpop.f32.mrf.mxu0
        %v3899 = vadd.f32 0.0, %v3898
        %3900 = vmatmul.bf16.gmra.mxu0 %v3885
        %v3901 = vpop.f32.mrf.mxu0
        %v3902 = vadd.f32 0.0, %v3901
        %v3903 = vpop.f32.mrf.mxu0
        %v3904 = vadd.f32 0.0, %v3903
        %3905 = vdwg.mxu0
        %3906 = vmatpush.bf16.msra.mxu0 0
        %3907 = vmatpush.bf16.msra.mxu0 0
        %3908 = vmatpush.bf16.msra.mxu0 0
        %3909 = vmatpush.bf16.msra.mxu0 0
        %3910 = vmatpush.bf16.msra.mxu0 0
        %3911 = vmatpush.bf16.msra.mxu0 0
        %3912 = vmatpush.bf16.msra.mxu0 %v3863
        %3913 = vmatpush.bf16.msra.mxu0 %v3855
        %3914 = vmatmul.bf16.gmra.mxu0 %v3882
        %v3915 = vpop.f32.mrf.mxu0
        %v3916 = vadd.f32 0.0, %v3915
        %v3917 = vpop.f32.mrf.mxu0
        %v3918 = vadd.f32 0.0, %v3917
        %3919 = vmatmul.bf16.gmra.mxu0 %v3885
        %v3920 = vpop.f32.mrf.mxu0
        %v3921 = vadd.f32 0.0, %v3920
        %v3922 = vpop.f32.mrf.mxu0
        %v3923 = vadd.f32 0.0, %v3922
        %3924 = vdwg.mxu0
        %3925 = vmatpush.bf16.msra.mxu0 0
        %3926 = vmatpush.bf16.msra.mxu0 0
        %3927 = vmatpush.bf16.msra.mxu0 0
        %3928 = vmatpush.bf16.msra.mxu0 0
        %3929 = vmatpush.bf16.msra.mxu0 0
        %3930 = vmatpush.bf16.msra.mxu0 0
        %3931 = vmatpush.bf16.msra.mxu0 %v3864
        %3932 = vmatpush.bf16.msra.mxu0 %v3856
        %3933 = vmatmul.bf16.gmra.mxu0 %v3882
        %v3934 = vpop.f32.mrf.mxu0
        %v3935 = vadd.f32 0.0, %v3934
        %v3936 = vpop.f32.mrf.mxu0
        %v3937 = vadd.f32 0.0, %v3936
        %3938 = vmatmul.bf16.gmra.mxu0 %v3885
        %v3939 = vpop.f32.mrf.mxu0
        %v3940 = vadd.f32 0.0, %v3939
        %v3941 = vpop.f32.mrf.mxu0
        %v3942 = vadd.f32 0.0, %v3941
        %3943 = vdwg.mxu0
        %3944 = vmatpush.bf16.msra.mxu0 0
        %3945 = vmatpush.bf16.msra.mxu0 0
        %3946 = vmatpush.bf16.msra.mxu0 0
        %3947 = vmatpush.bf16.msra.mxu0 0
        %3948 = vmatpush.bf16.msra.mxu0 0
        %3949 = vmatpush.bf16.msra.mxu0 0
        %3950 = vmatpush.bf16.msra.mxu0 %v3865
        %3951 = vmatpush.bf16.msra.mxu0 %v3857
        %3952 = vmatmul.bf16.gmra.mxu0 %v3882
        %v3953 = vpop.f32.mrf.mxu0
        %v3954 = vadd.f32 0.0, %v3953
        %v3955 = vpop.f32.mrf.mxu0
        %v3956 = vadd.f32 0.0, %v3955
        %3957 = vmatmul.bf16.gmra.mxu0 %v3885
        %v3958 = vpop.f32.mrf.mxu0
        %v3959 = vadd.f32 0.0, %v3958
        %v3960 = vpop.f32.mrf.mxu0
        %v3961 = vadd.f32 0.0, %v3960
        %3962 = vdwg.mxu0
        %3963 = vmatpush.bf16.msra.mxu0 0
        %3964 = vmatpush.bf16.msra.mxu0 0
        %3965 = vmatpush.bf16.msra.mxu0 0
        %3966 = vmatpush.bf16.msra.mxu0 0
        %3967 = vmatpush.bf16.msra.mxu0 0
        %3968 = vmatpush.bf16.msra.mxu0 0
        %3969 = vmatpush.bf16.msra.mxu0 %v3866
        %3970 = vmatpush.bf16.msra.mxu0 %v3858
        %3971 = vmatmul.bf16.gmra.mxu0 %v3882
        %v3972 = vpop.f32.mrf.mxu0
        %v3973 = vadd.f32 0.0, %v3972
        %v3974 = vpop.f32.mrf.mxu0
        %v3975 = vadd.f32 0.0, %v3974
        %3976 = vmatmul.bf16.gmra.mxu0 %v3885
        %v3977 = vpop.f32.mrf.mxu0
        %v3978 = vadd.f32 0.0, %v3977
        %v3979 = vpop.f32.mrf.mxu0
        %v3980 = vadd.f32 0.0, %v3979
        %3981 = vdwg.mxu0
        %3982 = vmatpush.bf16.msra.mxu0 0
        %3983 = vmatpush.bf16.msra.mxu0 0
        %3984 = vmatpush.bf16.msra.mxu0 0
        %3985 = vmatpush.bf16.msra.mxu0 0
        %3986 = vmatpush.bf16.msra.mxu0 0
        %3987 = vmatpush.bf16.msra.mxu0 0
        %3988 = vmatpush.bf16.msra.mxu0 %v3867
        %3989 = vmatpush.bf16.msra.mxu0 %v3859
        %3990 = vmatmul.bf16.gmra.mxu0 %v3882
        %v3991 = vpop.f32.mrf.mxu0
        %v3992 = vadd.f32 0.0, %v3991
        %v3993 = vpop.f32.mrf.mxu0
        %v3994 = vadd.f32 0.0, %v3993
        %3995 = vmatmul.bf16.gmra.mxu0 %v3885
        %v3996 = vpop.f32.mrf.mxu0
        %v3997 = vadd.f32 0.0, %v3996
        %v3998 = vpop.f32.mrf.mxu0
        %v3999 = vadd.f32 0.0, %v3998
        %4000 = vdwg.mxu0
        %4001 = vmatpush.bf16.msra.mxu0 0
        %4002 = vmatpush.bf16.msra.mxu0 0
        %4003 = vmatpush.bf16.msra.mxu0 0
        %4004 = vmatpush.bf16.msra.mxu0 0
        %4005 = vmatpush.bf16.msra.mxu0 0
        %4006 = vmatpush.bf16.msra.mxu0 0
        %4007 = vmatpush.bf16.msra.mxu0 %v3868
        %4008 = vmatpush.bf16.msra.mxu0 %v3860
        %4009 = vmatmul.bf16.gmra.mxu0 %v3882
        %v4010 = vpop.f32.mrf.mxu0
        %v4011 = vadd.f32 0.0, %v4010
        %v4012 = vpop.f32.mrf.mxu0
        %v4013 = vadd.f32 0.0, %v4012
        %4014 = vmatmul.bf16.gmra.mxu0 %v3885
        %v4015 = vpop.f32.mrf.mxu0
        %v4016 = vadd.f32 0.0, %v4015
        %v4017 = vpop.f32.mrf.mxu0
        %v4018 = vadd.f32 0.0, %v4017
        %4019 = vdwg.mxu0
        %4020 = vmatpush.bf16.msra.mxu0 0
        %4021 = vmatpush.bf16.msra.mxu0 0
        %4022 = vmatpush.bf16.msra.mxu0 0
        %4023 = vmatpush.bf16.msra.mxu0 0
        %4024 = vmatpush.bf16.msra.mxu0 0
        %4025 = vmatpush.bf16.msra.mxu0 0
        %4026 = vmatpush.bf16.msra.mxu0 %v3869
        %4027 = vmatpush.bf16.msra.mxu0 %v3861
        %4028 = vmatmul.bf16.gmra.mxu0 %v3882
        %v4029 = vpop.f32.mrf.mxu0
        %v4030 = vadd.f32 0.0, %v4029
        %v4031 = vpop.f32.mrf.mxu0
        %v4032 = vadd.f32 0.0, %v4031
        %4033 = vmatmul.bf16.gmra.mxu0 %v3885
        %v4034 = vpop.f32.mrf.mxu0
        %v4035 = vadd.f32 0.0, %v4034
        %v4036 = vpop.f32.mrf.mxu0
        %v4037 = vadd.f32 0.0, %v4036
        %4038 = vdwg.mxu0
        %v4039 = vsub.f32 %v3897, %v3902
        %v4040 = vsub.f32 %v3916, %v3921
        %v4041 = vsub.f32 %v3935, %v3940
        %v4042 = vsub.f32 %v3954, %v3959
        %v4043 = vsub.f32 %v3973, %v3978
        %v4044 = vsub.f32 %v3992, %v3997
        %v4045 = vsub.f32 %v4011, %v4016
        %v4046 = vsub.f32 %v4030, %v4035
        %v4047 = vsub.f32 %v3899, %v3904
        %v4048 = vsub.f32 %v3918, %v3923
        %v4049 = vsub.f32 %v3937, %v3942
        %v4050 = vsub.f32 %v3956, %v3961
        %v4051 = vsub.f32 %v3975, %v3980
        %v4052 = vsub.f32 %v3994, %v3999
        %v4053 = vsub.f32 %v4013, %v4018
        %v4054 = vsub.f32 %v4032, %v4037
        %v4055 = vand.u32 2147483647, %v4039
        %v4056 = vand.u32 2147483647, %v4040
        %v4057 = vand.u32 2147483647, %v4041
        %v4058 = vand.u32 2147483647, %v4042
        %v4059 = vand.u32 2147483647, %v4043
        %v4060 = vand.u32 2147483647, %v4044
        %v4061 = vand.u32 2147483647, %v4045
        %v4062 = vand.u32 2147483647, %v4046
        %v4063 = vand.u32 2147483647, %v4047
        %v4064 = vand.u32 2147483647, %v4048
        %v4065 = vand.u32 2147483647, %v4049
        %v4066 = vand.u32 2147483647, %v4050
        %v4067 = vand.u32 2147483647, %v4051
        %v4068 = vand.u32 2147483647, %v4052
        %v4069 = vand.u32 2147483647, %v4053
        %v4070 = vand.u32 2147483647, %v4054
        %v4071 = vld [vmem:[%s8] sm:$0xff]
        %v4072 = vld [vmem:[%s8 + $0x8] sm:$0xff]
        %v4074 = vsel %vm2168, %v4071, 0
        %v4077 = vsel %vm2168, %v4072, 0
        %4079 = vmatpush.msra.mxu0 0.0
        %4080 = vmatpush.msra.mxu0 0.0
        %4081 = vmatpush.msra.mxu0 0.0
        %4082 = vmatpush.msra.mxu0 0.0
        %4083 = vmatpush.msra.mxu0 0.0
        %4084 = vmatpush.msra.mxu0 0.0
        %4085 = vmatpush.msra.mxu0 0.0
        %4086 = vmatpush.msra.mxu0 0.0
        %4087 = vmatpush.msra.mxu0 0.0
        %4088 = vmatpush.msra.mxu0 0.0
        %4089 = vmatpush.msra.mxu0 0.0
        %4090 = vmatpush.msra.mxu0 0.0
        %4091 = vmatpush.msra.mxu0 0.0
        %4092 = vmatpush.msra.mxu0 0.0
        %4093 = vmatpush.msra.mxu0 %v4063
        %4094 = vmatpush.msra.mxu0 %v4055
        %4095 = vmatmul.f32.gmra.mxu0 %v4074
        %v4096 = vpop.f32.mrf.mxu0
        %v4097 = vadd.f32 0.0, %v4096
        %4098 = vmatmul.f32.gmra.mxu0 %v4077
        %v4099 = vpop.f32.mrf.mxu0
        %v4100 = vadd.f32 0.0, %v4099
        %4101 = vdwg.mxu0
        %4102 = vmatpush.msra.mxu0 0.0
        %4103 = vmatpush.msra.mxu0 0.0
        %4104 = vmatpush.msra.mxu0 0.0
        %4105 = vmatpush.msra.mxu0 0.0
        %4106 = vmatpush.msra.mxu0 0.0
        %4107 = vmatpush.msra.mxu0 0.0
        %4108 = vmatpush.msra.mxu0 0.0
        %4109 = vmatpush.msra.mxu0 0.0
        %4110 = vmatpush.msra.mxu0 0.0
        %4111 = vmatpush.msra.mxu0 0.0
        %4112 = vmatpush.msra.mxu0 0.0
        %4113 = vmatpush.msra.mxu0 0.0
        %4114 = vmatpush.msra.mxu0 0.0
        %4115 = vmatpush.msra.mxu0 0.0
        %4116 = vmatpush.msra.mxu0 %v4064
        %4117 = vmatpush.msra.mxu0 %v4056
        %4118 = vmatmul.f32.gmra.mxu0 %v4074
        %v4119 = vpop.f32.mrf.mxu0
        %v4120 = vadd.f32 0.0, %v4119
        %4121 = vmatmul.f32.gmra.mxu0 %v4077
        %v4122 = vpop.f32.mrf.mxu0
        %v4123 = vadd.f32 0.0, %v4122
        %4124 = vdwg.mxu0
        %4125 = vmatpush.msra.mxu0 0.0
        %4126 = vmatpush.msra.mxu0 0.0
        %4127 = vmatpush.msra.mxu0 0.0
        %4128 = vmatpush.msra.mxu0 0.0
        %4129 = vmatpush.msra.mxu0 0.0
        %4130 = vmatpush.msra.mxu0 0.0
        %4131 = vmatpush.msra.mxu0 0.0
        %4132 = vmatpush.msra.mxu0 0.0
        %4133 = vmatpush.msra.mxu0 0.0
        %4134 = vmatpush.msra.mxu0 0.0
        %4135 = vmatpush.msra.mxu0 0.0
        %4136 = vmatpush.msra.mxu0 0.0
        %4137 = vmatpush.msra.mxu0 0.0
        %4138 = vmatpush.msra.mxu0 0.0
        %4139 = vmatpush.msra.mxu0 %v4065
        %4140 = vmatpush.msra.mxu0 %v4057
        %4141 = vmatmul.f32.gmra.mxu0 %v4074
        %v4142 = vpop.f32.mrf.mxu0
        %v4143 = vadd.f32 0.0, %v4142
        %4144 = vmatmul.f32.gmra.mxu0 %v4077
        %v4145 = vpop.f32.mrf.mxu0
        %v4146 = vadd.f32 0.0, %v4145
        %4147 = vdwg.mxu0
        %4148 = vmatpush.msra.mxu0 0.0
        %4149 = vmatpush.msra.mxu0 0.0
        %4150 = vmatpush.msra.mxu0 0.0
        %4151 = vmatpush.msra.mxu0 0.0
        %4152 = vmatpush.msra.mxu0 0.0
        %4153 = vmatpush.msra.mxu0 0.0
        %4154 = vmatpush.msra.mxu0 0.0
        %4155 = vmatpush.msra.mxu0 0.0
        %4156 = vmatpush.msra.mxu0 0.0
        %4157 = vmatpush.msra.mxu0 0.0
        %4158 = vmatpush.msra.mxu0 0.0
        %4159 = vmatpush.msra.mxu0 0.0
        %4160 = vmatpush.msra.mxu0 0.0
        %4161 = vmatpush.msra.mxu0 0.0
        %4162 = vmatpush.msra.mxu0 %v4066
        %4163 = vmatpush.msra.mxu0 %v4058
        %4164 = vmatmul.f32.gmra.mxu0 %v4074
        %v4165 = vpop.f32.mrf.mxu0
        %v4166 = vadd.f32 0.0, %v4165
        %4167 = vmatmul.f32.gmra.mxu0 %v4077
        %v4168 = vpop.f32.mrf.mxu0
        %v4169 = vadd.f32 0.0, %v4168
        %4170 = vdwg.mxu0
        %4171 = vmatpush.msra.mxu0 0.0
        %4172 = vmatpush.msra.mxu0 0.0
        %4173 = vmatpush.msra.mxu0 0.0
        %4174 = vmatpush.msra.mxu0 0.0
        %4175 = vmatpush.msra.mxu0 0.0
        %4176 = vmatpush.msra.mxu0 0.0
        %4177 = vmatpush.msra.mxu0 0.0
        %4178 = vmatpush.msra.mxu0 0.0
        %4179 = vmatpush.msra.mxu0 0.0
        %4180 = vmatpush.msra.mxu0 0.0
        %4181 = vmatpush.msra.mxu0 0.0
        %4182 = vmatpush.msra.mxu0 0.0
        %4183 = vmatpush.msra.mxu0 0.0
        %4184 = vmatpush.msra.mxu0 0.0
        %4185 = vmatpush.msra.mxu0 %v4067
        %4186 = vmatpush.msra.mxu0 %v4059
        %4187 = vmatmul.f32.gmra.mxu0 %v4074
        %v4188 = vpop.f32.mrf.mxu0
        %v4189 = vadd.f32 0.0, %v4188
        %4190 = vmatmul.f32.gmra.mxu0 %v4077
        %v4191 = vpop.f32.mrf.mxu0
        %v4192 = vadd.f32 0.0, %v4191
        %4193 = vdwg.mxu0
        %4194 = vmatpush.msra.mxu0 0.0
        %4195 = vmatpush.msra.mxu0 0.0
        %4196 = vmatpush.msra.mxu0 0.0
        %4197 = vmatpush.msra.mxu0 0.0
        %4198 = vmatpush.msra.mxu0 0.0
        %4199 = vmatpush.msra.mxu0 0.0
        %4200 = vmatpush.msra.mxu0 0.0
        %4201 = vmatpush.msra.mxu0 0.0
        %4202 = vmatpush.msra.mxu0 0.0
        %4203 = vmatpush.msra.mxu0 0.0
        %4204 = vmatpush.msra.mxu0 0.0
        %4205 = vmatpush.msra.mxu0 0.0
        %4206 = vmatpush.msra.mxu0 0.0
        %4207 = vmatpush.msra.mxu0 0.0
        %4208 = vmatpush.msra.mxu0 %v4068
        %4209 = vmatpush.msra.mxu0 %v4060
        %4210 = vmatmul.f32.gmra.mxu0 %v4074
        %v4211 = vpop.f32.mrf.mxu0
        %v4212 = vadd.f32 0.0, %v4211
        %4213 = vmatmul.f32.gmra.mxu0 %v4077
        %v4214 = vpop.f32.mrf.mxu0
        %v4215 = vadd.f32 0.0, %v4214
        %4216 = vdwg.mxu0
        %4217 = vmatpush.msra.mxu0 0.0
        %4218 = vmatpush.msra.mxu0 0.0
        %4219 = vmatpush.msra.mxu0 0.0
        %4220 = vmatpush.msra.mxu0 0.0
        %4221 = vmatpush.msra.mxu0 0.0
        %4222 = vmatpush.msra.mxu0 0.0
        %4223 = vmatpush.msra.mxu0 0.0
        %4224 = vmatpush.msra.mxu0 0.0
        %4225 = vmatpush.msra.mxu0 0.0
        %4226 = vmatpush.msra.mxu0 0.0
        %4227 = vmatpush.msra.mxu0 0.0
        %4228 = vmatpush.msra.mxu0 0.0
        %4229 = vmatpush.msra.mxu0 0.0
        %4230 = vmatpush.msra.mxu0 0.0
        %4231 = vmatpush.msra.mxu0 %v4069
        %4232 = vmatpush.msra.mxu0 %v4061
        %4233 = vmatmul.f32.gmra.mxu0 %v4074
        %v4234 = vpop.f32.mrf.mxu0
        %v4235 = vadd.f32 0.0, %v4234
        %4236 = vmatmul.f32.gmra.mxu0 %v4077
        %v4237 = vpop.f32.mrf.mxu0
        %v4238 = vadd.f32 0.0, %v4237
        %4239 = vdwg.mxu0
        %4240 = vmatpush.msra.mxu0 0.0
        %4241 = vmatpush.msra.mxu0 0.0
        %4242 = vmatpush.msra.mxu0 0.0
        %4243 = vmatpush.msra.mxu0 0.0
        %4244 = vmatpush.msra.mxu0 0.0
        %4245 = vmatpush.msra.mxu0 0.0
        %4246 = vmatpush.msra.mxu0 0.0
        %4247 = vmatpush.msra.mxu0 0.0
        %4248 = vmatpush.msra.mxu0 0.0
        %4249 = vmatpush.msra.mxu0 0.0
        %4250 = vmatpush.msra.mxu0 0.0
        %4251 = vmatpush.msra.mxu0 0.0
        %4252 = vmatpush.msra.mxu0 0.0
        %4253 = vmatpush.msra.mxu0 0.0
        %4254 = vmatpush.msra.mxu0 %v4070
        %4255 = vmatpush.msra.mxu0 %v4062
        %4256 = vmatmul.f32.gmra.mxu0 %v4074
        %v4257 = vpop.f32.mrf.mxu0
        %v4258 = vadd.f32 0.0, %v4257
        %4259 = vmatmul.f32.gmra.mxu0 %v4077
        %v4260 = vpop.f32.mrf.mxu0
        %v4261 = vadd.f32 0.0, %v4260
        %4262 = vdwg.mxu0
        %v4263 = vmul.f32 %v4055, %v4097
        %v4264 = vmul.f32 %v4056, %v4120
        %v4265 = vmul.f32 %v4057, %v4143
        %v4266 = vmul.f32 %v4058, %v4166
        %v4267 = vmul.f32 %v4059, %v4189
        %v4268 = vmul.f32 %v4060, %v4212
        %v4269 = vmul.f32 %v4061, %v4235
        %v4270 = vmul.f32 %v4062, %v4258
        %v4271 = vmul.f32 %v4063, %v4100
        %v4272 = vmul.f32 %v4064, %v4123
        %v4273 = vmul.f32 %v4065, %v4146
        %v4274 = vmul.f32 %v4066, %v4169
        %v4275 = vmul.f32 %v4067, %v4192
        %v4276 = vmul.f32 %v4068, %v4215
        %v4277 = vmul.f32 %v4069, %v4238
        %v4278 = vmul.f32 %v4070, %v4261
        %v4279 = vadd.f32 %v4263, %v4271
        %v4280 = vrot.slane %v4279, 4
        %v4281 = vadd.f32 %v4279, %v4280
        %v4282 = vrot.slane %v4281, 2
        %v4283 = vadd.f32 %v4281, %v4282
        %v4284 = vrot.slane %v4283, 1
        %v4285 = vadd.f32 %v4283, %v4284
        %v4286 = vadd.f32 %v4264, %v4272
        %v4287 = vrot.slane %v4286, 4
        %v4288 = vadd.f32 %v4286, %v4287
        %v4289 = vrot.slane %v4288, 2
        %v4290 = vadd.f32 %v4288, %v4289
        %v4291 = vrot.slane %v4290, 1
        %v4292 = vadd.f32 %v4290, %v4291
        %v4293 = vadd.f32 %v4265, %v4273
        %v4294 = vrot.slane %v4293, 4
        %v4295 = vadd.f32 %v4293, %v4294
        %v4296 = vrot.slane %v4295, 2
        %v4297 = vadd.f32 %v4295, %v4296
        %v4298 = vrot.slane %v4297, 1
        %v4299 = vadd.f32 %v4297, %v4298
        %v4300 = vadd.f32 %v4266, %v4274
        %v4301 = vrot.slane %v4300, 4
        %v4302 = vadd.f32 %v4300, %v4301
        %v4303 = vrot.slane %v4302, 2
        %v4304 = vadd.f32 %v4302, %v4303
        %v4305 = vrot.slane %v4304, 1
        %v4306 = vadd.f32 %v4304, %v4305
        %v4307 = vadd.f32 %v4267, %v4275
        %v4308 = vrot.slane %v4307, 4
        %v4309 = vadd.f32 %v4307, %v4308
        %v4310 = vrot.slane %v4309, 2
        %v4311 = vadd.f32 %v4309, %v4310
        %v4312 = vrot.slane %v4311, 1
        %v4313 = vadd.f32 %v4311, %v4312
        %v4314 = vadd.f32 %v4268, %v4276
        %v4315 = vrot.slane %v4314, 4
        %v4316 = vadd.f32 %v4314, %v4315
        %v4317 = vrot.slane %v4316, 2
        %v4318 = vadd.f32 %v4316, %v4317
        %v4319 = vrot.slane %v4318, 1
        %v4320 = vadd.f32 %v4318, %v4319
        %v4321 = vadd.f32 %v4269, %v4277
        %v4322 = vrot.slane %v4321, 4
        %v4323 = vadd.f32 %v4321, %v4322
        %v4324 = vrot.slane %v4323, 2
        %v4325 = vadd.f32 %v4323, %v4324
        %v4326 = vrot.slane %v4325, 1
        %v4327 = vadd.f32 %v4325, %v4326
        %v4328 = vadd.f32 %v4270, %v4278
        %v4329 = vrot.slane %v4328, 4
        %v4330 = vadd.f32 %v4328, %v4329
        %v4331 = vrot.slane %v4330, 2
        %v4332 = vadd.f32 %v4330, %v4331
        %v4333 = vrot.slane %v4332, 1
        %v4334 = vadd.f32 %v4332, %v4333
        %v4335 = vadd.f32 %v4285, 1e-08
        %v4336 = vadd.f32 %v4292, 1e-08
        %v4337 = vadd.f32 %v4299, 1e-08
        %v4338 = vadd.f32 %v4306, 1e-08
        %v4339 = vadd.f32 %v4313, 1e-08
        %v4340 = vadd.f32 %v4320, 1e-08
        %v4341 = vadd.f32 %v4327, 1e-08
        %v4342 = vadd.f32 %v4334, 1e-08
        %v4343 = vrsqrt.pop %v4335
        %v4344 = vmul.f32 %v4343, %v4335
        %v4345 = vmul.f32 %v4344, %v4343
        %v4346 = vmul.f32 0.5, %v4345
        %v4347 = vsub.f32 1.5, %v4346
        %v4348 = vmul.f32 %v4343, %v4347
        %v4349 = vmul.f32 %v4335, %v4348
        %vm4350 = vcmp.eq.f32.partialorder %v4335, inf
        %v4351 = vsel %vm4350, %v4335, %v4349
        %vm4352 = vcmp.eq.f32.partialorder %v4335, 0.0
        %v4353 = vand.u32 %v4335, 2147483648
        %v4354 = vsel %vm4352, %v4353, %v4351
        %v4355 = vrsqrt.pop %v4336
        %v4356 = vmul.f32 %v4355, %v4336
        %v4357 = vmul.f32 %v4356, %v4355
        %v4358 = vmul.f32 0.5, %v4357
        %v4359 = vsub.f32 1.5, %v4358
        %v4360 = vmul.f32 %v4355, %v4359
        %v4361 = vmul.f32 %v4336, %v4360
        %vm4362 = vcmp.eq.f32.partialorder %v4336, inf
        %v4363 = vsel %vm4362, %v4336, %v4361
        %vm4364 = vcmp.eq.f32.partialorder %v4336, 0.0
        %v4365 = vand.u32 %v4336, 2147483648
        %v4366 = vsel %vm4364, %v4365, %v4363
        %v4367 = vrsqrt.pop %v4337
        %v4368 = vmul.f32 %v4367, %v4337
        %v4369 = vmul.f32 %v4368, %v4367
        %v4370 = vmul.f32 0.5, %v4369
        %v4371 = vsub.f32 1.5, %v4370
        %v4372 = vmul.f32 %v4367, %v4371
        %v4373 = vmul.f32 %v4337, %v4372
        %vm4374 = vcmp.eq.f32.partialorder %v4337, inf
        %v4375 = vsel %vm4374, %v4337, %v4373
        %vm4376 = vcmp.eq.f32.partialorder %v4337, 0.0
        %v4377 = vand.u32 %v4337, 2147483648
        %v4378 = vsel %vm4376, %v4377, %v4375
        %v4379 = vrsqrt.pop %v4338
        %v4380 = vmul.f32 %v4379, %v4338
        %v4381 = vmul.f32 %v4380, %v4379
        %v4382 = vmul.f32 0.5, %v4381
        %v4383 = vsub.f32 1.5, %v4382
        %v4384 = vmul.f32 %v4379, %v4383
        %v4385 = vmul.f32 %v4338, %v4384
        %vm4386 = vcmp.eq.f32.partialorder %v4338, inf
        %v4387 = vsel %vm4386, %v4338, %v4385
        %vm4388 = vcmp.eq.f32.partialorder %v4338, 0.0
        %v4389 = vand.u32 %v4338, 2147483648
        %v4390 = vsel %vm4388, %v4389, %v4387
        %v4391 = vrsqrt.pop %v4339
        %v4392 = vmul.f32 %v4391, %v4339
        %v4393 = vmul.f32 %v4392, %v4391
        %v4394 = vmul.f32 0.5, %v4393
        %v4395 = vsub.f32 1.5, %v4394
        %v4396 = vmul.f32 %v4391, %v4395
        %v4397 = vmul.f32 %v4339, %v4396
        %vm4398 = vcmp.eq.f32.partialorder %v4339, inf
        %v4399 = vsel %vm4398, %v4339, %v4397
        %vm4400 = vcmp.eq.f32.partialorder %v4339, 0.0
        %v4401 = vand.u32 %v4339, 2147483648
        %v4402 = vsel %vm4400, %v4401, %v4399
        %v4403 = vrsqrt.pop %v4340
        %v4404 = vmul.f32 %v4403, %v4340
        %v4405 = vmul.f32 %v4404, %v4403
        %v4406 = vmul.f32 0.5, %v4405
        %v4407 = vsub.f32 1.5, %v4406
        %v4408 = vmul.f32 %v4403, %v4407
        %v4409 = vmul.f32 %v4340, %v4408
        %vm4410 = vcmp.eq.f32.partialorder %v4340, inf
        %v4411 = vsel %vm4410, %v4340, %v4409
        %vm4412 = vcmp.eq.f32.partialorder %v4340, 0.0
        %v4413 = vand.u32 %v4340, 2147483648
        %v4414 = vsel %vm4412, %v4413, %v4411
        %v4415 = vrsqrt.pop %v4341
        %v4416 = vmul.f32 %v4415, %v4341
        %v4417 = vmul.f32 %v4416, %v4415
        %v4418 = vmul.f32 0.5, %v4417
        %v4419 = vsub.f32 1.5, %v4418
        %v4420 = vmul.f32 %v4415, %v4419
        %v4421 = vmul.f32 %v4341, %v4420
        %vm4422 = vcmp.eq.f32.partialorder %v4341, inf
        %v4423 = vsel %vm4422, %v4341, %v4421
        %vm4424 = vcmp.eq.f32.partialorder %v4341, 0.0
        %v4425 = vand.u32 %v4341, 2147483648
        %v4426 = vsel %vm4424, %v4425, %v4423
        %v4427 = vrsqrt.pop %v4342
        %v4428 = vmul.f32 %v4427, %v4342
        %v4429 = vmul.f32 %v4428, %v4427
        %v4430 = vmul.f32 0.5, %v4429
        %v4431 = vsub.f32 1.5, %v4430
        %v4432 = vmul.f32 %v4427, %v4431
        %v4433 = vmul.f32 %v4342, %v4432
        %vm4434 = vcmp.eq.f32.partialorder %v4342, inf
        %v4435 = vsel %vm4434, %v4342, %v4433
        %vm4436 = vcmp.eq.f32.partialorder %v4342, 0.0
        %v4437 = vand.u32 %v4342, 2147483648
        %v4438 = vsel %vm4436, %v4437, %v4435
        %vm4439 = vcmask 1040384
        %v4440 = vsel %vm4439, %v4354, 0.0
        %v4441 = vsel %vm4439, %v4366, 0.0
        %v4442 = vadd.f32 %v4440, %v4441
        %v4443 = vsel %vm4439, %v4378, 0.0
        %v4444 = vadd.f32 %v4442, %v4443
        %v4445 = vsel %vm4439, %v4390, 0.0
        %v4446 = vadd.f32 %v4444, %v4445
        %v4447 = vsel %vm4439, %v4402, 0.0
        %v4448 = vadd.f32 %v4446, %v4447
        %v4449 = vsel %vm4439, %v4414, 0.0
        %v4450 = vadd.f32 %v4448, %v4449
        %v4451 = vsel %vm4439, %v4426, 0.0
        %v4452 = vadd.f32 %v4450, %v4451
        %v4453 = vsel %vm4439, %v4438, 0.0
        %v4454 = vadd.f32 %v4452, %v4453
        %4455 = vadd.xlane.f32.xlu0 %v4454
        %v4456 = vpop.xlane.xlu0 %4455
        %v4457 = vrot.slane %v4456, 4
        %v4458 = vadd.f32 %v4456, %v4457
        %v4459 = vrot.slane %v4458, 2
        %v4460 = vadd.f32 %v4458, %v4459
        %v4461 = vrot.slane %v4460, 1
        %v4462 = vadd.f32 %v4460, %v4461
        %s4463 = vtos %v4462
        %s4464 = smul.f32 %s4463, 0.0009765625
        %v4465 = vstv %s4464
        %4466 = vst [vmem:[%s340] sm:$0xff] %v4465
        %s4467 = sand.u32 %s230, 1
        %s4468 = scalar_lea.sflag [#allocation3], %s4467
        %s4469 = sand.u32 %s230, 1
        %s4470 = smul.addr %s4469, 8
        %s4471 = scalar_lea.vmem [#allocation2], %s4470
        // Predicated region
        $region57: #{tpu_custom_call.1} parent=55 // pred_check
          %p4472 = pneg %p240
        $region58: #{tpu_custom_call.1} parent=55 // pred_check_branch
          %4474 = sbr.rel (%p4472) target = $region60
        $region59: #{tpu_custom_call.1} parent=55 // pred_region
          %4476 = vsyncadd %s4468, 0
          %s4477 = smul.addr %s23, 8
          %s4478 = scalar_lea.hbm %s9, %s4477
          %s4480 = sshll.u32 %s4471, 4
          %s4481 = int_to_ptr.vmem [resolvable:$true] %s4480
          %s4482 = sshll.u32 %s4478, 4
          %s4483 = int_to_ptr.hbm [resolvable:$true] %s4482
          %4485 = dma.vmem_to_hbm [thread:$0]  %s4481, 128, %s4483, %s4468
        $region60: #{tpu_custom_call.1} parent=55 // pred_fallthru
          _
      $region56: #{tpu_custom_call.1} parent=5 // pred_fallthru
        _
      %p4486 = scmp.le.s32.totalorder 2, %s18
      // Predicated region
      $region61: #{tpu_custom_call.1} parent=5 // pred_check
        %p4487 = pneg %p4486
      $region62: #{tpu_custom_call.1} parent=5 // pred_check_branch
        %4489 = sbr.rel (%p4487) target = $region64
      $region63: #{tpu_custom_call.1} parent=5 // pred_region
        %s4490 = ssub.s32 %s18, 2
        // Predicated region
        $region65: #{tpu_custom_call.1} parent=63 // pred_check
          %p4491 = pneg %p246
        $region66: #{tpu_custom_call.1} parent=63 // pred_check_branch
          %4493 = sbr.rel (%p4491) target = $region68
        $region67: #{tpu_custom_call.1} parent=63 // pred_region
          %s4494 = sand.u32 %s231, 1
          %s4495 = scalar_lea.sflag [#allocation3], %s4494
          %s4496 = sand.u32 %s231, 1
          %s4497 = smul.addr %s4496, 8
          %s4498 = scalar_lea.vmem [#allocation2], %s4497
          %4500 = dma.done %s4495, 128
        $region68: #{tpu_custom_call.1} parent=63 // pred_fallthru
          _
      $region64: #{tpu_custom_call.1} parent=5 // pred_fallthru
        _
    $region6: #{tpu_custom_call.1} parent=1 // loop_footer
      %s22 = sadd.s32 1, %s18
    $region7: #{tpu_custom_call.1} parent=1 // loop_footer_branch
      %17 = sbr.rel target = $region3
    $region8: #{tpu_custom_call.1} parent=1 // loop_exit
      _
    %4501 = vsyncpa [#allocation3], 1
    %s4502 = scalar_lea.sflag [#allocation3], 1
    %4503 = vsyncpa %s4502, 1

</llo_original>
